<compile_context>
chip_gen: v5e
topology: v5e:2x2
jax: 0.10.0
libtpu: 0.0.40
codegen_flags: <defaults>
</compile_context>

<pallas_src>
import math

import jax
import jax.numpy as jnp
from jax import lax
from jax.experimental import pallas as pl
from jax.experimental.pallas import tpu as pltpu

# ---------------- model hyperparams (small, shape-consistent) ----------------
B = 2          # batch
S = 8          # seq_len
D = 256        # model dim
NH = 2         # n_heads
HD = D // NH   # head_dim = 128
H = 512        # mlp hidden dim
V = 256        # vocab size
N_LAYERS = 2
EPS = 1e-6
THETA = 10000.0
M = B * S      # folded GEMM M dimension


# ------------------------------ Pallas kernels -------------------------------
def llama_layers_kernel(x_ref, cos_ref, sin_ref, bias_ref,
                        wq_ref, wv_ref, arms_ref, frms_ref,
                        w1_ref, w3_ref, w2_ref, o_ref):
    """All decoder layers, one grid step per layer.

    The activation lives in o_ref (same output block revisited every step).
    """
    layer = pl.program_id(0)

    # Layer 0: seed the resident activation with the embeddings.
    @pl.when(layer == 0)
    def _():
        o_ref[...] = x_ref[...]

    x = o_ref[...]                        # (M, D) f32
    cos = cos_ref[...]                    # (M, D) f32
    sin = sin_ref[...]                    # (M, D) f32, rotation sign folded in
    bias = bias_ref[...]                  # (M, M) f32 block-diag causal bias

    wq = wq_ref[0]                        # (D, D)  bf16
    wv = wv_ref[0]                        # (D, D)  bf16
    w1 = w1_ref[0]                        # (D, H)  bf16
    w3 = w3_ref[0]                        # (D, H)  bf16
    w2 = w2_ref[0]                        # (H, D)  bf16
    arms = arms_ref[0]                    # (1, D)  f32
    frms = frms_ref[0]                    # (1, D)  f32

    # --- RMSNorm (attention pre-norm), f32 ---
    var = jnp.mean(x * x, axis=-1, keepdims=True)
    h = x * lax.rsqrt(var + EPS) * arms                  # (M, D) f32
    h_bf = h.astype(jnp.bfloat16)

    # --- Q / V projections (k == q in the reference: xk = self.query(x)) ---
    q = jnp.dot(h_bf, wq, preferred_element_type=jnp.float32)   # (M, D)
    v = jnp.dot(h_bf, wv, preferred_element_type=jnp.float32)   # (M, D)

    # --- RoPE over the full model dim: t*cos + roll(t, D/2)*sin_signed ---
    half = D // 2
    q = q * cos + pltpu.roll(q, shift=half, axis=1) * sin       # (M, D) f32
    # k = q (same projection, same rotation) -> reuse q directly below.

    # --- causal multi-head attention (block-diagonal over folded batch) ---
    scale = 1.0 / math.sqrt(HD)
    head_outs = []
    for hh in range(NH):
        lo = hh * HD
        qs = q[:, lo:lo + HD].astype(jnp.bfloat16)               # (M, HD)
        vs = v[:, lo:lo + HD].astype(jnp.bfloat16)               # (M, HD)
        # scores = q . k^T with k == q; contract last dims (no transpose).
        s = lax.dot_general(qs, qs,
                            dimension_numbers=(((1,), (1,)), ((), ())),
                            preferred_element_type=jnp.float32)  # (M, M)
        s = s * scale + bias
        m_ = jnp.max(s, axis=-1, keepdims=True)
        p = jnp.exp(s - m_)
        denom = jnp.sum(p, axis=-1, keepdims=True)
        p = p * pl.reciprocal(denom, approx=True)
        head_outs.append(jnp.dot(p.astype(jnp.bfloat16), vs,
                                 preferred_element_type=jnp.float32))
    attn = jnp.concatenate(head_outs, axis=-1)                   # (M, D) f32

    # --- residual ---
    h1 = x + attn

    # --- RMSNorm (ffn pre-norm) ---
    var2 = jnp.mean(h1 * h1, axis=-1, keepdims=True)
    g = h1 * lax.rsqrt(var2 + EPS) * frms                        # (M, D) f32
    g_bf = g.astype(jnp.bfloat16)

    # --- SwiGLU MLP: w2( silu(w1(g)) * w3(g) ) ---
    a = jnp.dot(g_bf, w1, preferred_element_type=jnp.float32)    # (M, H) f32
    swish = a * jax.nn.sigmoid(a)
    b = jnp.dot(g_bf, w3, preferred_element_type=jnp.float32)    # (M, H) f32
    mlp = jnp.dot((swish * b).astype(jnp.bfloat16), w2,
                  preferred_element_type=jnp.float32)            # (M, D) f32

    # Update the resident activation (written back to HBM after last layer).
    o_ref[...] = h1 + mlp


def lm_head_kernel(x_ref, w_ref, b_ref, o_ref):
    o_ref[...] = (jnp.dot(x_ref[...].astype(jnp.bfloat16), w_ref[...],
                          preferred_element_type=jnp.float32) + b_ref[...])


# ------------------------------ wrappers --------------------------------------
def llama_decoder_stack(x2d, cos2d, sin2d, attn_bias, params):
    """x2d: (B*S, D) f32 -> (B*S, D) f32, all N_LAYERS fused."""
    resident = lambda shape: pl.BlockSpec(shape, lambda l: (0, 0))
    per_layer = lambda shape: pl.BlockSpec(shape, lambda l: (l, 0, 0))
    return pl.pallas_call(
        llama_layers_kernel,
        out_shape=jax.ShapeDtypeStruct((M, D), jnp.float32),
        grid=(N_LAYERS,),
        in_specs=[
            resident((M, D)),            # x (embeddings)
            resident((M, D)),            # cos
            resident((M, D)),            # sin (sign-folded)
            resident((M, M)),            # additive causal mask
            per_layer((1, D, D)),        # wq  (in, out) bf16
            per_layer((1, D, D)),        # wv  (in, out) bf16
            per_layer((1, 1, D)),        # attn rms weight f32
            per_layer((1, 1, D)),        # ffn rms weight f32
            per_layer((1, D, H)),        # w1  bf16
            per_layer((1, D, H)),        # w3  bf16
            per_layer((1, H, D)),        # w2  bf16
        ],
        out_specs=pl.BlockSpec((M, D), lambda l: (0, 0)),
        compiler_params=pltpu.CompilerParams(
            dimension_semantics=("arbitrary",)),
    )(x2d, cos2d, sin2d, attn_bias,
      params["wq"], params["wv"], params["attn_rms"], params["ffn_rms"],
      params["w1"], params["w3"], params["w2"])


def lm_head(x2d, w, b):
    """x2d: (B*S, D) -> logits (B*S, V). Single grid-less call, all in VMEM."""
    return pl.pallas_call(
        lm_head_kernel,
        out_shape=jax.ShapeDtypeStruct((M, V), jnp.float32),
    )(x2d, w, b)


def precompute_rotary(dim, seq_len, theta=10000.0):
    num = jnp.arange(0, dim, 2, dtype=jnp.float32)
    inv = 1.0 / (theta ** (num / dim))
    m = jnp.arange(seq_len, dtype=jnp.float32)
    freqs = jnp.outer(m, inv)
    emb = jnp.concatenate([freqs, freqs], axis=-1)   # (seq, dim)
    return jnp.cos(emb), jnp.sin(emb)


def make_rope_tables():
    """Batch-tiled cos and sign-folded sin so rope(t) = t*cos + roll(t)*sin."""
    cos, sin = precompute_rotary(D, S, THETA)
    half = D // 2
    sin_signed = jnp.concatenate([-sin[:, :half], sin[:, half:]], axis=-1)
    return jnp.tile(cos, (B, 1)), jnp.tile(sin_signed, (B, 1))   # (B*S, D)


def make_attn_bias():
    """Block-diagonal causal additive mask over the folded (B*S) axis."""
    idx = jnp.arange(M)
    same_batch = (idx[:, None] // S) == (idx[None, :] // S)
    causal = (idx[None, :] % S) <= (idx[:, None] % S)
    return jnp.where(same_batch & causal, 0.0, -1e30).astype(jnp.float32)


def init_params(key):
    def nrm(k, shape, dtype, scale=0.02):
        return (scale * jax.random.normal(k, shape)).astype(dtype)

    keys = jax.random.split(key, 7)
    bf16 = jnp.bfloat16
    return {
        "embed": nrm(keys[0], (V, D), jnp.float32),
        "lm_w": nrm(keys[1], (D, V), bf16),                  # (in, out)
        "lm_b": jnp.zeros((1, V), jnp.float32),
        # Per-layer weights stacked on a leading layer axis (pre-transposed).
        "wq": nrm(keys[2], (N_LAYERS, D, D), bf16),
        "wv": nrm(keys[3], (N_LAYERS, D, D), bf16),
        "w1": nrm(keys[4], (N_LAYERS, D, H), bf16),
        "w3": nrm(keys[5], (N_LAYERS, D, H), bf16),
        "w2": nrm(keys[6], (N_LAYERS, H, D), bf16),
        "attn_rms": jnp.ones((N_LAYERS, 1, D), jnp.float32),
        "ffn_rms": jnp.ones((N_LAYERS, 1, D), jnp.float32),
    }


@jax.jit
def llama_forward(token_ids, params, cos2d, sin2d, attn_bias):
    # Embedding lookup (gather) stays in plain JAX glue; fold batch into M.
    x2d = jnp.take(params["embed"], token_ids.reshape(-1), axis=0)  # (B*S, D)
    x2d = llama_decoder_stack(x2d, cos2d, sin2d, attn_bias, params)
    logits = lm_head(x2d, params["lm_w"], params["lm_b"])           # (B*S, V)
    return logits.reshape(B, S, V)


if __name__ == "__main__":
    key = jax.random.PRNGKey(0)
    k_tok, k_param = jax.random.split(key)
    token_ids = jax.random.randint(k_tok, (B, S), 0, V, dtype=jnp.int32)
    params = init_params(k_param)
    cos2d, sin2d = make_rope_tables()
    attn_bias = make_attn_bias()

    logits = llama_forward(token_ids, params, cos2d, sin2d, attn_bias)
    jax.block_until_ready(logits)
    assert logits.shape == (B, S, V) and logits.dtype == jnp.float32
    assert bool(jnp.all(jnp.isfinite(logits)))
    print("KERNEL_OK")
</pallas_src>

<mosaic_0001>
module attributes {stable_mosaic.version = 11 : i64} {
  func.func @llama_layers_kernel(%arg0: i32, %arg1: memref<16x256xf32, #tpu.memory_space<vmem>>, %arg2: memref<16x256xf32, #tpu.memory_space<vmem>>, %arg3: memref<16x256xf32, #tpu.memory_space<vmem>>, %arg4: memref<16x16xf32, #tpu.memory_space<vmem>>, %arg5: memref<1x256x256xbf16, #tpu.memory_space<vmem>>, %arg6: memref<1x256x256xbf16, #tpu.memory_space<vmem>>, %arg7: memref<1x1x256xf32, #tpu.memory_space<vmem>>, %arg8: memref<1x1x256xf32, #tpu.memory_space<vmem>>, %arg9: memref<1x256x512xbf16, #tpu.memory_space<vmem>>, %arg10: memref<1x256x512xbf16, #tpu.memory_space<vmem>>, %arg11: memref<1x512x256xbf16, #tpu.memory_space<vmem>>, %arg12: memref<16x256xf32, #tpu.memory_space<vmem>>) attributes {dimension_semantics = [#tpu.dimension_semantics<arbitrary>], iteration_bounds = array<i64: 2>, scalar_prefetch = 0 : i64, scratch_operands = 0 : i64, tpu.core_type = #tpu.core_type<tc>, window_params = [{pipeline_mode = #tpu.pipeline_mode<synchronous>, transform_indices = @transform_0, window_bounds = array<i64: 16, 256>}, {pipeline_mode = #tpu.pipeline_mode<synchronous>, transform_indices = @transform_1, window_bounds = array<i64: 16, 256>}, {pipeline_mode = #tpu.pipeline_mode<synchronous>, transform_indices = @transform_2, window_bounds = array<i64: 16, 256>}, {pipeline_mode = #tpu.pipeline_mode<synchronous>, transform_indices = @transform_3, window_bounds = array<i64: 16, 16>}, {transform_indices = @transform_4, window_bounds = array<i64: 1, 256, 256>}, {transform_indices = @transform_5, window_bounds = array<i64: 1, 256, 256>}, {transform_indices = @transform_6, window_bounds = array<i64: 1, 1, 256>}, {transform_indices = @transform_7, window_bounds = array<i64: 1, 1, 256>}, {transform_indices = @transform_8, window_bounds = array<i64: 1, 256, 512>}, {transform_indices = @transform_9, window_bounds = array<i64: 1, 256, 512>}, {transform_indices = @transform_10, window_bounds = array<i64: 1, 512, 256>}, {pipeline_mode = #tpu.pipeline_mode<synchronous>, transform_indices = @transform_11, window_bounds = array<i64: 16, 256>}]} {
    %c0_i32 = arith.constant 0 : i32
    %0 = arith.cmpi eq, %arg0, %c0_i32 : i32
    %1 = arith.extui %0 : i1 to i32
    %c0_i32_0 = arith.constant 0 : i32
    %2 = arith.cmpi ne, %1, %c0_i32_0 : i32
    scf.if %2 {
      %c0_52 = arith.constant 0 : index
      %c0_53 = arith.constant 0 : index
      %108 = vector.load %arg1[%c0_52, %c0_53] : memref<16x256xf32, #tpu.memory_space<vmem>>, vector<16x256xf32>
      %c0_54 = arith.constant 0 : index
      %c0_55 = arith.constant 0 : index
      %109 = vector.load %arg12[%c0_54, %c0_55] : memref<16x256xf32, #tpu.memory_space<vmem>>, vector<16x256xf32>
      tpu.vector_store %arg12[%c0_54, %c0_55], %108 {strides = array<i32>} : memref<16x256xf32, #tpu.memory_space<vmem>>, vector<16x256xf32>,
    } else {
    }
    %c0 = arith.constant 0 : index
    %c0_1 = arith.constant 0 : index
    %3 = vector.load %arg12[%c0, %c0_1] : memref<16x256xf32, #tpu.memory_space<vmem>>, vector<16x256xf32>
    %c0_2 = arith.constant 0 : index
    %c0_3 = arith.constant 0 : index
    %4 = vector.load %arg2[%c0_2, %c0_3] : memref<16x256xf32, #tpu.memory_space<vmem>>, vector<16x256xf32>
    %c0_4 = arith.constant 0 : index
    %c0_5 = arith.constant 0 : index
    %5 = vector.load %arg3[%c0_4, %c0_5] : memref<16x256xf32, #tpu.memory_space<vmem>>, vector<16x256xf32>
    %c0_6 = arith.constant 0 : index
    %c0_7 = arith.constant 0 : index
    %6 = vector.load %arg4[%c0_6, %c0_7] : memref<16x16xf32, #tpu.memory_space<vmem>>, vector<16x16xf32>
    %c0_8 = arith.constant 0 : index
    %c0_9 = arith.constant 0 : index
    %c0_10 = arith.constant 0 : index
    %7 = vector.load %arg5[%c0_8, %c0_9, %c0_10] : memref<1x256x256xbf16, #tpu.memory_space<vmem>>, vector<1x256x256xbf16>
    %8 = vector.shape_cast %7 : vector<1x256x256xbf16> to vector<256x256xbf16>
    %c0_11 = arith.constant 0 : index
    %c0_12 = arith.constant 0 : index
    %c0_13 = arith.constant 0 : index
    %9 = vector.load %arg6[%c0_11, %c0_12, %c0_13] : memref<1x256x256xbf16, #tpu.memory_space<vmem>>, vector<1x256x256xbf16>
    %10 = vector.shape_cast %9 : vector<1x256x256xbf16> to vector<256x256xbf16>
    %c0_14 = arith.constant 0 : index
    %c0_15 = arith.constant 0 : index
    %c0_16 = arith.constant 0 : index
    %11 = vector.load %arg9[%c0_14, %c0_15, %c0_16] : memref<1x256x512xbf16, #tpu.memory_space<vmem>>, vector<1x256x512xbf16>
    %12 = vector.shape_cast %11 : vector<1x256x512xbf16> to vector<256x512xbf16>
    %c0_17 = arith.constant 0 : index
    %c0_18 = arith.constant 0 : index
    %c0_19 = arith.constant 0 : index
    %13 = vector.load %arg10[%c0_17, %c0_18, %c0_19] : memref<1x256x512xbf16, #tpu.memory_space<vmem>>, vector<1x256x512xbf16>
    %14 = vector.shape_cast %13 : vector<1x256x512xbf16> to vector<256x512xbf16>
    %c0_20 = arith.constant 0 : index
    %c0_21 = arith.constant 0 : index
    %c0_22 = arith.constant 0 : index
    %15 = vector.load %arg11[%c0_20, %c0_21, %c0_22] : memref<1x512x256xbf16, #tpu.memory_space<vmem>>, vector<1x512x256xbf16>
    %16 = vector.shape_cast %15 : vector<1x512x256xbf16> to vector<512x256xbf16>
    %c0_23 = arith.constant 0 : index
    %c0_24 = arith.constant 0 : index
    %c0_25 = arith.constant 0 : index
    %17 = vector.load %arg7[%c0_23, %c0_24, %c0_25] : memref<1x1x256xf32, #tpu.memory_space<vmem>>, vector<1x1x256xf32>
    %18 = vector.shape_cast %17 : vector<1x1x256xf32> to vector<1x256xf32>
    %c0_26 = arith.constant 0 : index
    %c0_27 = arith.constant 0 : index
    %c0_28 = arith.constant 0 : index
    %19 = vector.load %arg8[%c0_26, %c0_27, %c0_28] : memref<1x1x256xf32, #tpu.memory_space<vmem>>, vector<1x1x256xf32>
    %20 = vector.shape_cast %19 : vector<1x1x256xf32> to vector<1x256xf32>
    %21 = arith.mulf %3, %3 : vector<16x256xf32>
    %cst = arith.constant dense<0.000000e+00> : vector<16xf32>
    %22 = vector.multi_reduction <add>, %21, %cst [1] : vector<16x256xf32> to vector<16xf32>
    %23 = vector.shape_cast %22 : vector<16xf32> to vector<16x1xf32>
    %cst_29 = arith.constant 2.560000e+02 : f32
    %24 = vector.broadcast %cst_29 : f32 to vector<16x1xf32>
    %25 = arith.divf %23, %24 : vector<16x1xf32>
    %cst_30 = arith.constant 9.99999997E-7 : f32
    %26 = vector.broadcast %cst_30 : f32 to vector<16x1xf32>
    %27 = arith.addf %25, %26 : vector<16x1xf32>
    %28 = math.rsqrt %27 : vector<16x1xf32>
    %29 = vector.broadcast %28 : vector<16x1xf32> to vector<16x256xf32>
    %30 = arith.mulf %3, %29 : vector<16x256xf32>
    %31 = vector.broadcast %18 : vector<1x256xf32> to vector<16x256xf32>
    %32 = arith.mulf %30, %31 : vector<16x256xf32>
    %33 = arith.truncf %32 : vector<16x256xf32> to vector<16x256xbf16>
    %cst_31 = arith.constant dense<0.000000e+00> : vector<16x256xf32>
    %34 = tpu.matmul %33, %8, %cst_31 {dimension_numbers = #tpu.dot_dimension_numbers<[1], [0], [0], [1], [0, 0, 1, 1], [], []>} : vector<16x256xbf16>, vector<256x256xbf16>, vector<16x256xf32> -> vector<16x256xf32>
    %cst_32 = arith.constant dense<0.000000e+00> : vector<16x256xf32>
    %35 = tpu.matmul %33, %10, %cst_32 {dimension_numbers = #tpu.dot_dimension_numbers<[1], [0], [0], [1], [0, 0, 1, 1], [], []>} : vector<16x256xbf16>, vector<256x256xbf16>, vector<16x256xf32> -> vector<16x256xf32>
    %36 = arith.mulf %34, %4 : vector<16x256xf32>
    %c128_i32 = arith.constant 128 : i32
    %37 = tpu.dynamic_rotate %34 by %c128_i32 dim 1 : vector<16x256xf32>, i32 -> vector<16x256xf32>
    %38 = arith.mulf %37, %5 : vector<16x256xf32>
    %39 = arith.addf %36, %38 : vector<16x256xf32>
    %40 = vector.extract_strided_slice %39 {offsets = [0, 0], sizes = [16, 128], strides = [1, 1]} : vector<16x256xf32> to vector<16x128xf32>
    %41 = arith.truncf %40 : vector<16x128xf32> to vector<16x128xbf16>
    %42 = vector.extract_strided_slice %35 {offsets = [0, 0], sizes = [16, 128], strides = [1, 1]} : vector<16x256xf32> to vector<16x128xf32>
    %43 = arith.truncf %42 : vector<16x128xf32> to vector<16x128xbf16>
    %cst_33 = arith.constant dense<0.000000e+00> : vector<16x16xf32>
    %44 = tpu.matmul %41, %41, %cst_33 {dimension_numbers = #tpu.dot_dimension_numbers<[1], [1], [0], [0], [0, 0, 1, 0], [], []>} : vector<16x128xbf16>, vector<16x128xbf16>, vector<16x16xf32> -> vector<16x16xf32>
    %cst_34 = arith.constant 0.0883883461 : f32
    %45 = vector.broadcast %cst_34 : f32 to vector<16x16xf32>
    %46 = arith.mulf %44, %45 : vector<16x16xf32>
    %47 = arith.addf %46, %6 : vector<16x16xf32>
    %cst_35 = arith.constant dense<0xFF800000> : vector<16xf32>
    %48 = vector.multi_reduction <maximumf>, %47, %cst_35 [1] : vector<16x16xf32> to vector<16xf32>
    %49 = vector.shape_cast %48 : vector<16xf32> to vector<16x1xf32>
    %50 = vector.broadcast %49 : vector<16x1xf32> to vector<16x16xf32>
    %51 = arith.subf %47, %50 : vector<16x16xf32>
    %52 = math.exp %51 : vector<16x16xf32>
    %cst_36 = arith.constant dense<0.000000e+00> : vector<16xf32>
    %53 = vector.multi_reduction <add>, %52, %cst_36 [1] : vector<16x16xf32> to vector<16xf32>
    %54 = vector.shape_cast %53 : vector<16xf32> to vector<16x1xf32>
    %55 = tpu.reciprocal %54 {approx = true} : vector<16x1xf32> -> vector<16x1xf32>
    %56 = vector.broadcast %55 : vector<16x1xf32> to vector<16x16xf32>
    %57 = arith.mulf %52, %56 : vector<16x16xf32>
    %58 = arith.truncf %57 : vector<16x16xf32> to vector<16x16xbf16>
    %cst_37 = arith.constant dense<0.000000e+00> : vector<16x128xf32>
    %59 = tpu.matmul %58, %43, %cst_37 {dimension_numbers = #tpu.dot_dimension_numbers<[1], [0], [0], [1], [0, 0, 1, 1], [], []>} : vector<16x16xbf16>, vector<16x128xbf16>, vector<16x128xf32> -> vector<16x128xf32>
    %60 = vector.extract_strided_slice %39 {offsets = [0, 128], sizes = [16, 128], strides = [1, 1]} : vector<16x256xf32> to vector<16x128xf32>
    %61 = arith.truncf %60 : vector<16x128xf32> to vector<16x128xbf16>
    %62 = vector.extract_strided_slice %35 {offsets = [0, 128], sizes = [16, 128], strides = [1, 1]} : vector<16x256xf32> to vector<16x128xf32>
    %63 = arith.truncf %62 : vector<16x128xf32> to vector<16x128xbf16>
    %cst_38 = arith.constant dense<0.000000e+00> : vector<16x16xf32>
    %64 = tpu.matmul %61, %61, %cst_38 {dimension_numbers = #tpu.dot_dimension_numbers<[1], [1], [0], [0], [0, 0, 1, 0], [], []>} : vector<16x128xbf16>, vector<16x128xbf16>, vector<16x16xf32> -> vector<16x16xf32>
    %cst_39 = arith.constant 0.0883883461 : f32
    %65 = vector.broadcast %cst_39 : f32 to vector<16x16xf32>
    %66 = arith.mulf %64, %65 : vector<16x16xf32>
    %67 = arith.addf %66, %6 : vector<16x16xf32>
    %cst_40 = arith.constant dense<0xFF800000> : vector<16xf32>
    %68 = vector.multi_reduction <maximumf>, %67, %cst_40 [1] : vector<16x16xf32> to vector<16xf32>
    %69 = vector.shape_cast %68 : vector<16xf32> to vector<16x1xf32>
    %70 = vector.broadcast %69 : vector<16x1xf32> to vector<16x16xf32>
    %71 = arith.subf %67, %70 : vector<16x16xf32>
    %72 = math.exp %71 : vector<16x16xf32>
    %cst_41 = arith.constant dense<0.000000e+00> : vector<16xf32>
    %73 = vector.multi_reduction <add>, %72, %cst_41 [1] : vector<16x16xf32> to vector<16xf32>
    %74 = vector.shape_cast %73 : vector<16xf32> to vector<16x1xf32>
    %75 = tpu.reciprocal %74 {approx = true} : vector<16x1xf32> -> vector<16x1xf32>
    %76 = vector.broadcast %75 : vector<16x1xf32> to vector<16x16xf32>
    %77 = arith.mulf %72, %76 : vector<16x16xf32>
    %78 = arith.truncf %77 : vector<16x16xf32> to vector<16x16xbf16>
    %cst_42 = arith.constant dense<0.000000e+00> : vector<16x128xf32>
    %79 = tpu.matmul %78, %63, %cst_42 {dimension_numbers = #tpu.dot_dimension_numbers<[1], [0], [0], [1], [0, 0, 1, 1], [], []>} : vector<16x16xbf16>, vector<16x128xbf16>, vector<16x128xf32> -> vector<16x128xf32>
    %80 = tpu.concatenate %59, %79 in 1 : vector<16x128xf32>, vector<16x128xf32> -> vector<16x256xf32>
    %81 = arith.addf %3, %80 : vector<16x256xf32>
    %82 = arith.mulf %81, %81 : vector<16x256xf32>
    %cst_43 = arith.constant dense<0.000000e+00> : vector<16xf32>
    %83 = vector.multi_reduction <add>, %82, %cst_43 [1] : vector<16x256xf32> to vector<16xf32>
    %84 = vector.shape_cast %83 : vector<16xf32> to vector<16x1xf32>
    %cst_44 = arith.constant 2.560000e+02 : f32
    %85 = vector.broadcast %cst_44 : f32 to vector<16x1xf32>
    %86 = arith.divf %84, %85 : vector<16x1xf32>
    %cst_45 = arith.constant 9.99999997E-7 : f32
    %87 = vector.broadcast %cst_45 : f32 to vector<16x1xf32>
    %88 = arith.addf %86, %87 : vector<16x1xf32>
    %89 = math.rsqrt %88 : vector<16x1xf32>
    %90 = vector.broadcast %89 : vector<16x1xf32> to vector<16x256xf32>
    %91 = arith.mulf %81, %90 : vector<16x256xf32>
    %92 = vector.broadcast %20 : vector<1x256xf32> to vector<16x256xf32>
    %93 = arith.mulf %91, %92 : vector<16x256xf32>
    %94 = arith.truncf %93 : vector<16x256xf32> to vector<16x256xbf16>
    %cst_46 = arith.constant dense<0.000000e+00> : vector<16x512xf32>
    %95 = tpu.matmul %94, %12, %cst_46 {dimension_numbers = #tpu.dot_dimension_numbers<[1], [0], [0], [1], [0, 0, 1, 1], [], []>} : vector<16x256xbf16>, vector<256x512xbf16>, vector<16x512xf32> -> vector<16x512xf32>
    %96 = arith.negf %95 : vector<16x512xf32>
    %97 = math.exp %96 : vector<16x512xf32>
    %cst_47 = arith.constant 1.000000e+00 : f32
    %98 = vector.broadcast %cst_47 : f32 to vector<16x512xf32>
    %99 = arith.addf %98, %97 : vector<16x512xf32>
    %100 = arith.divf %98, %99 : vector<16x512xf32>
    %101 = arith.mulf %95, %100 : vector<16x512xf32>
    %cst_48 = arith.constant dense<0.000000e+00> : vector<16x512xf32>
    %102 = tpu.matmul %94, %14, %cst_48 {dimension_numbers = #tpu.dot_dimension_numbers<[1], [0], [0], [1], [0, 0, 1, 1], [], []>} : vector<16x256xbf16>, vector<256x512xbf16>, vector<16x512xf32> -> vector<16x512xf32>
    %103 = arith.mulf %101, %102 : vector<16x512xf32>
    %104 = arith.truncf %103 : vector<16x512xf32> to vector<16x512xbf16>
    %cst_49 = arith.constant dense<0.000000e+00> : vector<16x256xf32>
    %105 = tpu.matmul %104, %16, %cst_49 {dimension_numbers = #tpu.dot_dimension_numbers<[1], [0], [0], [1], [0, 0, 1, 1], [], []>} : vector<16x512xbf16>, vector<512x256xbf16>, vector<16x256xf32> -> vector<16x256xf32>
    %106 = arith.addf %81, %105 : vector<16x256xf32>
    %c0_50 = arith.constant 0 : index
    %c0_51 = arith.constant 0 : index
    %107 = vector.load %arg12[%c0_50, %c0_51] : memref<16x256xf32, #tpu.memory_space<vmem>>, vector<16x256xf32>
    tpu.vector_store %arg12[%c0_50, %c0_51], %106 {strides = array<i32>} : memref<16x256xf32, #tpu.memory_space<vmem>>, vector<16x256xf32>,
    return
  }
  func.func @transform_0(%arg0: i32) -> (i32, i32) {
    %c0_i32 = arith.constant 0 : i32
    %c0_i32_0 = arith.constant 0 : i32
    %c0_i32_1 = arith.constant 0 : i32
    return %c0_i32, %c0_i32_0 : i32, i32
  }
  func.func @transform_1(%arg0: i32) -> (i32, i32) {
    %c0_i32 = arith.constant 0 : i32
    %c0_i32_0 = arith.constant 0 : i32
    %c0_i32_1 = arith.constant 0 : i32
    return %c0_i32, %c0_i32_0 : i32, i32
  }
  func.func @transform_2(%arg0: i32) -> (i32, i32) {
    %c0_i32 = arith.constant 0 : i32
    %c0_i32_0 = arith.constant 0 : i32
    %c0_i32_1 = arith.constant 0 : i32
    return %c0_i32, %c0_i32_0 : i32, i32
  }
  func.func @transform_3(%arg0: i32) -> (i32, i32) {
    %c0_i32 = arith.constant 0 : i32
    %c0_i32_0 = arith.constant 0 : i32
    %c0_i32_1 = arith.constant 0 : i32
    return %c0_i32, %c0_i32_0 : i32, i32
  }
  func.func @transform_4(%arg0: i32) -> (i32, i32, i32) {
    %c0_i32 = arith.constant 0 : i32
    %c0_i32_0 = arith.constant 0 : i32
    %c0_i32_1 = arith.constant 0 : i32
    return %arg0, %c0_i32, %c0_i32_0 : i32, i32, i32
  }
  func.func @transform_5(%arg0: i32) -> (i32, i32, i32) {
    %c0_i32 = arith.constant 0 : i32
    %c0_i32_0 = arith.constant 0 : i32
    %c0_i32_1 = arith.constant 0 : i32
    return %arg0, %c0_i32, %c0_i32_0 : i32, i32, i32
  }
  func.func @transform_6(%arg0: i32) -> (i32, i32, i32) {
    %c0_i32 = arith.constant 0 : i32
    %c0_i32_0 = arith.constant 0 : i32
    %c0_i32_1 = arith.constant 0 : i32
    return %arg0, %c0_i32, %c0_i32_0 : i32, i32, i32
  }
  func.func @transform_7(%arg0: i32) -> (i32, i32, i32) {
    %c0_i32 = arith.constant 0 : i32
    %c0_i32_0 = arith.constant 0 : i32
    %c0_i32_1 = arith.constant 0 : i32
    return %arg0, %c0_i32, %c0_i32_0 : i32, i32, i32
  }
  func.func @transform_8(%arg0: i32) -> (i32, i32, i32) {
    %c0_i32 = arith.constant 0 : i32
    %c0_i32_0 = arith.constant 0 : i32
    %c0_i32_1 = arith.constant 0 : i32
    return %arg0, %c0_i32, %c0_i32_0 : i32, i32, i32
  }
  func.func @transform_9(%arg0: i32) -> (i32, i32, i32) {
    %c0_i32 = arith.constant 0 : i32
    %c0_i32_0 = arith.constant 0 : i32
    %c0_i32_1 = arith.constant 0 : i32
    return %arg0, %c0_i32, %c0_i32_0 : i32, i32, i32
  }
  func.func @transform_10(%arg0: i32) -> (i32, i32, i32) {
    %c0_i32 = arith.constant 0 : i32
    %c0_i32_0 = arith.constant 0 : i32
    %c0_i32_1 = arith.constant 0 : i32
    return %arg0, %c0_i32, %c0_i32_0 : i32, i32, i32
  }
  func.func @transform_11(%arg0: i32) -> (i32, i32) {
    %c0_i32 = arith.constant 0 : i32
    %c0_i32_0 = arith.constant 0 : i32
    %c0_i32_1 = arith.constant 0 : i32
    return %c0_i32, %c0_i32_0 : i32, i32
  }
}

module attributes {stable_mosaic.version = 11 : i64} {
  func.func @lm_head_kernel(%arg0: memref<16x256xf32, #tpu.memory_space<vmem>>, %arg1: memref<256x256xbf16, #tpu.memory_space<vmem>>, %arg2: memref<1x256xf32, #tpu.memory_space<vmem>>, %arg3: memref<16x256xf32, #tpu.memory_space<vmem>>) attributes {dimension_semantics = [], scalar_prefetch = 0 : i64, scratch_operands = 0 : i64, tpu.core_type = #tpu.core_type<tc>} {
    %c0 = arith.constant 0 : index
    %c0_0 = arith.constant 0 : index
    %0 = vector.load %arg0[%c0, %c0_0] : memref<16x256xf32, #tpu.memory_space<vmem>>, vector<16x256xf32>
    %1 = arith.truncf %0 : vector<16x256xf32> to vector<16x256xbf16>
    %c0_1 = arith.constant 0 : index
    %c0_2 = arith.constant 0 : index
    %2 = vector.load %arg1[%c0_1, %c0_2] : memref<256x256xbf16, #tpu.memory_space<vmem>>, vector<256x256xbf16>
    %cst = arith.constant dense<0.000000e+00> : vector<16x256xf32>
    %3 = tpu.matmul %1, %2, %cst {dimension_numbers = #tpu.dot_dimension_numbers<[1], [0], [0], [1], [0, 0, 1, 1], [], []>} : vector<16x256xbf16>, vector<256x256xbf16>, vector<16x256xf32> -> vector<16x256xf32>
    %c0_3 = arith.constant 0 : index
    %c0_4 = arith.constant 0 : index
    %4 = vector.load %arg2[%c0_3, %c0_4] : memref<1x256xf32, #tpu.memory_space<vmem>>, vector<1x256xf32>
    %5 = vector.broadcast %4 : vector<1x256xf32> to vector<16x256xf32>
    %6 = arith.addf %3, %5 : vector<16x256xf32>
    %c0_5 = arith.constant 0 : index
    %c0_6 = arith.constant 0 : index
    %7 = vector.load %arg3[%c0_5, %c0_6] : memref<16x256xf32, #tpu.memory_space<vmem>>, vector<16x256xf32>
    tpu.vector_store %arg3[%c0_5, %c0_6], %6 {strides = array<i32>} : memref<16x256xf32, #tpu.memory_space<vmem>>, vector<16x256xf32>,
    return
  }
}

</mosaic_0001>

<llo_original>
// kernel: llama_forward.3
$region0: #{llama_forward.3}
  #allocation0 [shape = 'u32[]', space=smem, size = 0x4, offset = 0x4, fixed_abs, tag = 'smem constant byte address 0x4 - core index']
  #allocation1 [shape = 'u32[72,128]{1,0:T(1,128)}', space=vmem, size = 0x9000, scoped, tag = 'internal scratch']
  %s0 = inlined_call_operand.vmem [shape: f32[16,256], index: 0, kind: input, shape index: {}]
  %s1 = inlined_call_operand.vmem [shape: bf16[256,256], index: 1, kind: input, shape index: {}]
  %s2 = inlined_call_operand.vmem [shape: f32[1,256], index: 2, kind: input, shape index: {}]
  %s3 = inlined_call_operand.hbm [shape: f32[16,256], index: 3, kind: output, shape index: {}]
  %s4 = sld [smem:[#allocation0]]
  $region22: #{llama_forward.3} parent=0
    _
  %s6 = ssub.s32 1, %s4
  %s7 = scalar_select 0, %s6, %s4
  $region1: #{llama_forward.3} parent=0
    #allocation2 [shape = 'u8[16384]{0}', space=vmem, size = 0x4000, scoped, tag = 'output window, operand 0, single buffered']
    #allocation3 [shape = 's32[1]{0}', space=sflag, size = 0x4, scoped, tag = 'scoped memory for llama_forward.3']
    %8 = vsyncpa [#allocation3], 0
    // Predicated region
    $region2: #{llama_forward.3} parent=1 // pred_check
      _
    $region3: #{llama_forward.3} parent=1 // pred_check_branch
      %10 = sbr.rel (0) target = $region5
    $region4: #{llama_forward.3} parent=1 // pred_region
      _
    $region5: #{llama_forward.3} parent=1 // pred_fallthru
      _
    // Predicated region
    $region6: #{llama_forward.3} parent=1 // pred_check
      _
    $region7: #{llama_forward.3} parent=1 // pred_check_branch
      %12 = sbr.rel (0) target = $region9
    $region8: #{llama_forward.3} parent=1 // pred_region
      _
    $region9: #{llama_forward.3} parent=1 // pred_fallthru
      _
    // Predicated region
    $region10: #{llama_forward.3} parent=1 // pred_check
      _
    $region11: #{llama_forward.3} parent=1 // pred_check_branch
      %14 = sbr.rel (0) target = $region13
    $region12: #{llama_forward.3} parent=1 // pred_region
      _
    $region13: #{llama_forward.3} parent=1 // pred_fallthru
      _
    %v15 = vld [vmem:[%s0] sm:$0xff]
    %v16 = vld [vmem:[%s0 + $0x8] sm:$0xff]
    %v17 = vld [vmem:[%s0 + $0x10] sm:$0xff]
    %v18 = vld [vmem:[%s0 + $0x18] sm:$0xff]
    %v19 = vpack.c.bf16 %v17, %v15
    %v20 = vpack.c.bf16 %v18, %v16
    %v21 = vld [vmem:[%s1] sm:$0xff]
    %v22 = vld [vmem:[%s1 + $0x8] sm:$0xff]
    %v23 = vld [vmem:[%s1 + $0x10] sm:$0xff]
    %v24 = vld [vmem:[%s1 + $0x18] sm:$0xff]
    %v25 = vld [vmem:[%s1 + $0x20] sm:$0xff]
    %v26 = vld [vmem:[%s1 + $0x28] sm:$0xff]
    %v27 = vld [vmem:[%s1 + $0x30] sm:$0xff]
    %v28 = vld [vmem:[%s1 + $0x38] sm:$0xff]
    %v29 = vld [vmem:[%s1 + $0x40] sm:$0xff]
    %v30 = vld [vmem:[%s1 + $0x48] sm:$0xff]
    %v31 = vld [vmem:[%s1 + $0x50] sm:$0xff]
    %v32 = vld [vmem:[%s1 + $0x58] sm:$0xff]
    %v33 = vld [vmem:[%s1 + $0x60] sm:$0xff]
    %v34 = vld [vmem:[%s1 + $0x68] sm:$0xff]
    %v35 = vld [vmem:[%s1 + $0x70] sm:$0xff]
    %v36 = vld [vmem:[%s1 + $0x78] sm:$0xff]
    %v37 = vld [vmem:[%s1 + $0x80] sm:$0xff]
    %v38 = vld [vmem:[%s1 + $0x88] sm:$0xff]
    %v39 = vld [vmem:[%s1 + $0x90] sm:$0xff]
    %v40 = vld [vmem:[%s1 + $0x98] sm:$0xff]
    %v41 = vld [vmem:[%s1 + $0xa0] sm:$0xff]
    %v42 = vld [vmem:[%s1 + $0xa8] sm:$0xff]
    %v43 = vld [vmem:[%s1 + $0xb0] sm:$0xff]
    %v44 = vld [vmem:[%s1 + $0xb8] sm:$0xff]
    %v45 = vld [vmem:[%s1 + $0xc0] sm:$0xff]
    %v46 = vld [vmem:[%s1 + $0xc8] sm:$0xff]
    %v47 = vld [vmem:[%s1 + $0xd0] sm:$0xff]
    %v48 = vld [vmem:[%s1 + $0xd8] sm:$0xff]
    %v49 = vld [vmem:[%s1 + $0xe0] sm:$0xff]
    %v50 = vld [vmem:[%s1 + $0xe8] sm:$0xff]
    %v51 = vld [vmem:[%s1 + $0xf0] sm:$0xff]
    %v52 = vld [vmem:[%s1 + $0xf8] sm:$0xff]
    %v53 = vld [vmem:[%s2] sm:$0x3]
    %v55 = vperm.slane %v53, 0
    %v56 = vperm.slane %v53, 1
    %v91 = vunpack.c.l.b16 %v21
    %v92 = vunpack.c.h.b16 %v21
    %v93 = vunpack.c.l.b16 %v22
    %v94 = vunpack.c.h.b16 %v22
    %v95 = vunpack.c.l.b16 %v23
    %v96 = vunpack.c.h.b16 %v23
    %v97 = vunpack.c.l.b16 %v24
    %v98 = vunpack.c.h.b16 %v24
    %v99 = vunpack.c.l.b16 %v25
    %v100 = vunpack.c.h.b16 %v25
    %v101 = vunpack.c.l.b16 %v26
    %v102 = vunpack.c.h.b16 %v26
    %v103 = vunpack.c.l.b16 %v27
    %v104 = vunpack.c.h.b16 %v27
    %v105 = vunpack.c.l.b16 %v28
    %v106 = vunpack.c.h.b16 %v28
    %v107 = vunpack.c.l.b16 %v29
    %v108 = vunpack.c.h.b16 %v29
    %v109 = vunpack.c.l.b16 %v30
    %v110 = vunpack.c.h.b16 %v30
    %v111 = vunpack.c.l.b16 %v31
    %v112 = vunpack.c.h.b16 %v31
    %v113 = vunpack.c.l.b16 %v32
    %v114 = vunpack.c.h.b16 %v32
    %v115 = vunpack.c.l.b16 %v33
    %v116 = vunpack.c.h.b16 %v33
    %v117 = vunpack.c.l.b16 %v34
    %v118 = vunpack.c.h.b16 %v34
    %v119 = vunpack.c.l.b16 %v35
    %v120 = vunpack.c.h.b16 %v35
    %v121 = vunpack.c.l.b16 %v36
    %v122 = vunpack.c.h.b16 %v36
    %v123 = vunpack.c.l.b16 %v37
    %v124 = vunpack.c.h.b16 %v37
    %v125 = vunpack.c.l.b16 %v38
    %v126 = vunpack.c.h.b16 %v38
    %v127 = vunpack.c.l.b16 %v39
    %v128 = vunpack.c.h.b16 %v39
    %v129 = vunpack.c.l.b16 %v40
    %v130 = vunpack.c.h.b16 %v40
    %v131 = vunpack.c.l.b16 %v41
    %v132 = vunpack.c.h.b16 %v41
    %v133 = vunpack.c.l.b16 %v42
    %v134 = vunpack.c.h.b16 %v42
    %v135 = vunpack.c.l.b16 %v43
    %v136 = vunpack.c.h.b16 %v43
    %v137 = vunpack.c.l.b16 %v44
    %v138 = vunpack.c.h.b16 %v44
    %v139 = vunpack.c.l.b16 %v45
    %v140 = vunpack.c.h.b16 %v45
    %v141 = vunpack.c.l.b16 %v46
    %v142 = vunpack.c.h.b16 %v46
    %v143 = vunpack.c.l.b16 %v47
    %v144 = vunpack.c.h.b16 %v47
    %v145 = vunpack.c.l.b16 %v48
    %v146 = vunpack.c.h.b16 %v48
    %v147 = vunpack.c.l.b16 %v49
    %v148 = vunpack.c.h.b16 %v49
    %v149 = vunpack.c.l.b16 %v50
    %v150 = vunpack.c.h.b16 %v50
    %v151 = vunpack.c.l.b16 %v51
    %v152 = vunpack.c.h.b16 %v51
    %v153 = vunpack.c.l.b16 %v52
    %v154 = vunpack.c.h.b16 %v52
    %v155 = vpack.c.b16 %v93, %v91
    %v156 = vpack.c.b16 %v94, %v92
    %v157 = vpack.c.b16 %v97, %v95
    %v158 = vpack.c.b16 %v98, %v96
    %v159 = vpack.c.b16 %v101, %v99
    %v160 = vpack.c.b16 %v102, %v100
    %v161 = vpack.c.b16 %v105, %v103
    %v162 = vpack.c.b16 %v106, %v104
    %v163 = vpack.c.b16 %v109, %v107
    %v164 = vpack.c.b16 %v110, %v108
    %v165 = vpack.c.b16 %v113, %v111
    %v166 = vpack.c.b16 %v114, %v112
    %v167 = vpack.c.b16 %v117, %v115
    %v168 = vpack.c.b16 %v118, %v116
    %v169 = vpack.c.b16 %v121, %v119
    %v170 = vpack.c.b16 %v122, %v120
    %v171 = vpack.c.b16 %v125, %v123
    %v172 = vpack.c.b16 %v126, %v124
    %v173 = vpack.c.b16 %v129, %v127
    %v174 = vpack.c.b16 %v130, %v128
    %v175 = vpack.c.b16 %v133, %v131
    %v176 = vpack.c.b16 %v134, %v132
    %v177 = vpack.c.b16 %v137, %v135
    %v178 = vpack.c.b16 %v138, %v136
    %v179 = vpack.c.b16 %v141, %v139
    %v180 = vpack.c.b16 %v142, %v140
    %v181 = vpack.c.b16 %v145, %v143
    %v182 = vpack.c.b16 %v146, %v144
    %v183 = vpack.c.b16 %v149, %v147
    %v184 = vpack.c.b16 %v150, %v148
    %v185 = vpack.c.b16 %v153, %v151
    %v186 = vpack.c.b16 %v154, %v152
    %219 = vmatpush.bf16.msra.mxu0 %v169
    %220 = vmatpush.bf16.msra.mxu0 %v167
    %221 = vmatpush.bf16.msra.mxu0 %v165
    %222 = vmatpush.bf16.msra.mxu0 %v163
    %223 = vmatpush.bf16.msra.mxu0 %v161
    %224 = vmatpush.bf16.msra.mxu0 %v159
    %225 = vmatpush.bf16.msra.mxu0 %v157
    %226 = vmatpush.bf16.msra.mxu0 %v155
    %227 = vmatmul.bf16.gmra.mxu0 %v19
    %v228 = vpop.f32.mrf.mxu0
    %v229 = vadd.f32 %v55, %v228
    %v230 = vpop.f32.mrf.mxu0
    %v231 = vadd.f32 %v55, %v230
    %232 = vdwg.mxu0
    %233 = vmatpush.bf16.msra.mxu0 %v185
    %234 = vmatpush.bf16.msra.mxu0 %v183
    %235 = vmatpush.bf16.msra.mxu0 %v181
    %236 = vmatpush.bf16.msra.mxu0 %v179
    %237 = vmatpush.bf16.msra.mxu0 %v177
    %238 = vmatpush.bf16.msra.mxu0 %v175
    %239 = vmatpush.bf16.msra.mxu0 %v173
    %240 = vmatpush.bf16.msra.mxu0 %v171
    %241 = vmatmul.bf16.gmra.mxu0 %v20
    %v242 = vpop.f32.mrf.mxu0
    %v243 = vadd.f32 %v229, %v242
    %v244 = vpop.f32.mrf.mxu0
    %v245 = vadd.f32 %v231, %v244
    %246 = vdwg.mxu0
    %247 = vmatpush.bf16.msra.mxu0 %v170
    %248 = vmatpush.bf16.msra.mxu0 %v168
    %249 = vmatpush.bf16.msra.mxu0 %v166
    %250 = vmatpush.bf16.msra.mxu0 %v164
    %251 = vmatpush.bf16.msra.mxu0 %v162
    %252 = vmatpush.bf16.msra.mxu0 %v160
    %253 = vmatpush.bf16.msra.mxu0 %v158
    %254 = vmatpush.bf16.msra.mxu0 %v156
    %255 = vmatmul.bf16.gmra.mxu0 %v19
    %v256 = vpop.f32.mrf.mxu0
    %v257 = vadd.f32 %v56, %v256
    %v258 = vpop.f32.mrf.mxu0
    %v259 = vadd.f32 %v56, %v258
    %260 = vdwg.mxu0
    %261 = vmatpush.bf16.msra.mxu0 %v186
    %262 = vmatpush.bf16.msra.mxu0 %v184
    %263 = vmatpush.bf16.msra.mxu0 %v182
    %264 = vmatpush.bf16.msra.mxu0 %v180
    %265 = vmatpush.bf16.msra.mxu0 %v178
    %266 = vmatpush.bf16.msra.mxu0 %v176
    %267 = vmatpush.bf16.msra.mxu0 %v174
    %268 = vmatpush.bf16.msra.mxu0 %v172
    %269 = vmatmul.bf16.gmra.mxu0 %v20
    %v270 = vpop.f32.mrf.mxu0
    %v271 = vadd.f32 %v257, %v270
    %v272 = vpop.f32.mrf.mxu0
    %v273 = vadd.f32 %v259, %v272
    %274 = vdwg.mxu0
    %275 = vst [vmem:[#allocation2] sm:$0xff] %v243
    %276 = vst [vmem:[#allocation2 + $0x8] sm:$0xff] %v271
    %277 = vst [vmem:[#allocation2 + $0x10] sm:$0xff] %v245
    %278 = vst [vmem:[#allocation2 + $0x18] sm:$0xff] %v273
    // Predicated region
    $region14: #{llama_forward.3} parent=1 // pred_check
      _
    $region15: #{llama_forward.3} parent=1 // pred_check_branch
      %280 = sbr.rel (0) target = $region17
    $region16: #{llama_forward.3} parent=1 // pred_region
      %282 = vsyncadd [#allocation3], 0
      %s283 = sshll.u32 [#allocation2], 4
      %s284 = int_to_ptr.vmem [resolvable:$true] %s283
      %s285 = sshll.u32 %s3, 4
      %s286 = int_to_ptr.hbm [resolvable:$true] %s285
      %291 = dma.vmem_to_hbm [thread:$0]  %s284, 512, %s286, [#allocation3], 256, 256, 16
    $region17: #{llama_forward.3} parent=1 // pred_fallthru
      _
    // Predicated region
    $region18: #{llama_forward.3} parent=1 // pred_check
      _
    $region19: #{llama_forward.3} parent=1 // pred_check_branch
      %293 = sbr.rel (0) target = $region21
    $region20: #{llama_forward.3} parent=1 // pred_region
      %295 = dma.done [#allocation3], 512
    $region21: #{llama_forward.3} parent=1 // pred_fallthru
      _
    %296 = vsyncpa [#allocation3], 1

// kernel: llama_forward.2
$region0: #{llama_forward.2}
  #allocation0 [shape = 'u32[]', space=smem, size = 0x4, offset = 0x4, fixed_abs, tag = 'smem constant byte address 0x4 - core index']
  #allocation1 [shape = 'u32[72,128]{1,0:T(1,128)}', space=vmem, size = 0x9000, scoped, tag = 'internal scratch']
  %s0 = inlined_call_operand.vmem [shape: f32[16,256], index: 0, kind: input, shape index: {}]
  %s1 = inlined_call_operand.vmem [shape: f32[16,256], index: 1, kind: input, shape index: {}]
  %s2 = inlined_call_operand.vmem [shape: f32[16,256], index: 2, kind: input, shape index: {}]
  %s3 = inlined_call_operand.vmem [shape: f32[16,16], index: 3, kind: input, shape index: {}]
  %s4 = inlined_call_operand.hbm [shape: bf16[2,256,256], index: 4, kind: input, shape index: {}]
  %s5 = inlined_call_operand.hbm [shape: bf16[2,256,256], index: 5, kind: input, shape index: {}]
  %s6 = inlined_call_operand.vmem [shape: f32[2,1,256], index: 6, kind: input, shape index: {}]
  %s7 = inlined_call_operand.vmem [shape: f32[2,1,256], index: 7, kind: input, shape index: {}]
  %s8 = inlined_call_operand.hbm [shape: bf16[2,256,512], index: 8, kind: input, shape index: {}]
  %s9 = inlined_call_operand.hbm [shape: bf16[2,256,512], index: 9, kind: input, shape index: {}]
  %s10 = inlined_call_operand.hbm [shape: bf16[2,512,256], index: 10, kind: input, shape index: {}]
  %s11 = inlined_call_operand.vmem [shape: f32[16,256], index: 11, kind: output, shape index: {}]
  %s12 = sld [smem:[#allocation0]]
  $region101: #{llama_forward.2} parent=0
    _
  %s14 = ssub.s32 1, %s12
  %s15 = scalar_select 0, %s14, %s12
  $region1: #{llama_forward.2} parent=0
    #allocation2 [shape = 'u8[262144]{0}', space=vmem, size = 0x40000, scoped, tag = 'input window, operand 4']
    #allocation3 [shape = 's32[2]{0}', space=sflag, size = 0x8, scoped, tag = 'scoped memory for llama_forward.2']
    #allocation4 [shape = 'u8[262144]{0}', space=vmem, size = 0x40000, scoped, tag = 'input window, operand 5']
    #allocation5 [shape = 's32[2]{0}', space=sflag, size = 0x8, scoped, tag = 'scoped memory for llama_forward.2']
    #allocation6 [shape = 'u8[524288]{0}', space=vmem, size = 0x80000, scoped, tag = 'input window, operand 8']
    #allocation7 [shape = 'u8[524288]{0}', space=vmem, size = 0x80000, scoped, tag = 'input window, operand 9']
    #allocation8 [shape = 's32[2]{0}', space=sflag, size = 0x8, scoped, tag = 'scoped memory for llama_forward.2']
    #allocation9 [shape = 'u8[524288]{0}', space=vmem, size = 0x80000, scoped, tag = 'input window, operand 10']
    %16 = vsyncpa [#allocation3], 0
    %s17 = scalar_lea.sflag [#allocation3], 1
    %18 = vsyncpa %s17, 0
    %19 = vsyncpa [#allocation5], 0
    %s20 = scalar_lea.sflag [#allocation5], 1
    %21 = vsyncpa %s20, 0
    %22 = vsyncpa [#allocation8], 0
    %s23 = scalar_lea.sflag [#allocation8], 1
    %24 = vsyncpa %s23, 0
    loop: start=0, step=1, limit=4
    $region2: #{llama_forward.2} parent=1 // loop_pre_header
      _
    $region3: #{llama_forward.2} parent=1 // loop_header
      %s26 = sphi 0, %s30
      %p27 = scmp.ge.s32.totalorder %s26, 4
      %s34 = sphi 0, %s34
      %s36 = sphi 0, %s34
      %s37 = sphi 0, %s36
      %s51 = sphi 0, %s37
      %s55 = sphi 0, %s55
      %s57 = sphi 0, %s55
      %s58 = sphi 0, %s57
      %s72 = sphi 0, %s58
      %s76 = sphi 0, %s76
      %s78 = sphi 0, %s76
      %s79 = sphi 0, %s78
      %s93 = sphi 0, %s79
      %s97 = sphi 0, %s97
      %s99 = sphi 0, %s97
      %s100 = sphi 0, %s99
      %s114 = sphi 0, %s100
      %s120 = sphi 0, %s122
      %s123 = sphi 0, %s120
      %s124 = sphi 0, %s123
      %s140 = sphi 0, %s124
      %s146 = sphi 0, %s148
      %s149 = sphi 0, %s146
      %s150 = sphi 0, %s149
      %s166 = sphi 0, %s150
      %s172 = sphi 0, %s174
      %s175 = sphi 0, %s172
      %s176 = sphi 0, %s175
      %s192 = sphi 0, %s176
      %s198 = sphi 0, %s200
      %s201 = sphi 0, %s198
      %s202 = sphi 0, %s201
      %s218 = sphi 0, %s202
      %s224 = sphi 0, %s226
      %s227 = sphi 0, %s224
      %s228 = sphi 0, %s227
      %s244 = sphi 0, %s228
      %s250 = sphi 0, %s252
      %s253 = sphi 0, %s250
      %s254 = sphi 0, %s253
      %s270 = sphi 0, %s254
      %s276 = sphi 0, %s278
      %s279 = sphi 0, %s276
      %s280 = sphi 0, %s279
      %s296 = sphi 0, %s280
      %s300 = sphi 0, %s300
      %s302 = sphi 0, %s300
      %s303 = sphi 0, %s302
      %s317 = sphi 0, %s303
    $region4: #{llama_forward.2} parent=1 // loop_header_branch
      %29 = sbr.rel (%p27) target = $region8
    $region5: #{llama_forward.2} parent=1 // loop_body
      %s31 = ssub.s32 %s26, 1
      %s32 = ssub.s32 %s26, 2
      %s33 = sadd.s32 %s26, 1
      %s35 = sadd.s32 %s34, 1
      %p38 = scmp.eq.s32.totalorder %s26, 1
      %p39 = scmp.ne.s32.totalorder %s34, %s36
      %p40 = scmp.eq.s32.totalorder %s26, 0
      %p41 = por %p39, %p40
      %p42 = scmp.ne.s32.totalorder %s34, %s36
      %p43 = scmp.eq.s32.totalorder %s31, 1
      %p44 = por %p42, %p43
      %p45 = scmp.ne.s32.totalorder %s36, %s37
      %p46 = scmp.eq.s32.totalorder %s31, 0
      %p47 = por %p45, %p46
      %p48 = scmp.ne.s32.totalorder %s36, %s37
      %p49 = scmp.eq.s32.totalorder %s32, 1
      %p50 = por %p48, %p49
      %p52 = scmp.ne.s32.totalorder %s37, %s51
      %p53 = scmp.eq.s32.totalorder %s32, 0
      %p54 = por %p52, %p53
      %s56 = sadd.s32 %s55, 1
      %p59 = scmp.eq.s32.totalorder %s26, 1
      %p60 = scmp.ne.s32.totalorder %s55, %s57
      %p61 = scmp.eq.s32.totalorder %s26, 0
      %p62 = por %p60, %p61
      %p63 = scmp.ne.s32.totalorder %s55, %s57
      %p64 = scmp.eq.s32.totalorder %s31, 1
      %p65 = por %p63, %p64
      %p66 = scmp.ne.s32.totalorder %s57, %s58
      %p67 = scmp.eq.s32.totalorder %s31, 0
      %p68 = por %p66, %p67
      %p69 = scmp.ne.s32.totalorder %s57, %s58
      %p70 = scmp.eq.s32.totalorder %s32, 1
      %p71 = por %p69, %p70
      %p73 = scmp.ne.s32.totalorder %s58, %s72
      %p74 = scmp.eq.s32.totalorder %s32, 0
      %p75 = por %p73, %p74
      %s77 = sadd.s32 %s76, 1
      %p80 = scmp.eq.s32.totalorder %s26, 1
      %p81 = scmp.ne.s32.totalorder %s76, %s78
      %p82 = scmp.eq.s32.totalorder %s26, 0
      %p83 = por %p81, %p82
      %p84 = scmp.ne.s32.totalorder %s76, %s78
      %p85 = scmp.eq.s32.totalorder %s31, 1
      %p86 = por %p84, %p85
      %p87 = scmp.ne.s32.totalorder %s78, %s79
      %p88 = scmp.eq.s32.totalorder %s31, 0
      %p89 = por %p87, %p88
      %p90 = scmp.ne.s32.totalorder %s78, %s79
      %p91 = scmp.eq.s32.totalorder %s32, 1
      %p92 = por %p90, %p91
      %p94 = scmp.ne.s32.totalorder %s79, %s93
      %p95 = scmp.eq.s32.totalorder %s32, 0
      %p96 = por %p94, %p95
      %s98 = sadd.s32 %s97, 1
      %p101 = scmp.eq.s32.totalorder %s26, 1
      %p102 = scmp.ne.s32.totalorder %s97, %s99
      %p103 = scmp.eq.s32.totalorder %s26, 0
      %p104 = por %p102, %p103
      %p105 = scmp.ne.s32.totalorder %s97, %s99
      %p106 = scmp.eq.s32.totalorder %s31, 1
      %p107 = por %p105, %p106
      %p108 = scmp.ne.s32.totalorder %s99, %s100
      %p109 = scmp.eq.s32.totalorder %s31, 0
      %p110 = por %p108, %p109
      %p111 = scmp.ne.s32.totalorder %s99, %s100
      %p112 = scmp.eq.s32.totalorder %s32, 1
      %p113 = por %p111, %p112
      %p115 = scmp.ne.s32.totalorder %s100, %s114
      %p116 = scmp.eq.s32.totalorder %s32, 0
      %p117 = por %p115, %p116
      %s118 = ssub.s32 %s26, %s33
      %p119 = scmp.eq.s32.totalorder %s118, 0
      %s121 = sadd.s32 %s120, 1
      %s122 = scalar_select %p119, %s120, %s121
      %p125 = pneg %p119
      %p126 = scmp.eq.s32.totalorder %s26, 1
      %p127 = por %p125, %p126
      %p128 = scmp.ne.s32.totalorder %s120, %s123
      %p129 = scmp.eq.s32.totalorder %s26, 0
      %p130 = por %p128, %p129
      %p131 = scmp.ne.s32.totalorder %s120, %s123
      %p132 = scmp.eq.s32.totalorder %s31, 1
      %p133 = por %p131, %p132
      %p134 = scmp.ne.s32.totalorder %s123, %s124
      %p135 = scmp.eq.s32.totalorder %s31, 0
      %p136 = por %p134, %p135
      %p137 = scmp.ne.s32.totalorder %s123, %s124
      %p138 = scmp.eq.s32.totalorder %s32, 1
      %p139 = por %p137, %p138
      %p141 = scmp.ne.s32.totalorder %s124, %s140
      %p142 = scmp.eq.s32.totalorder %s32, 0
      %p143 = por %p141, %p142
      %s144 = ssub.s32 %s26, %s33
      %p145 = scmp.eq.s32.totalorder %s144, 0
      %s147 = sadd.s32 %s146, 1
      %s148 = scalar_select %p145, %s146, %s147
      %p151 = pneg %p145
      %p152 = scmp.eq.s32.totalorder %s26, 1
      %p153 = por %p151, %p152
      %p154 = scmp.ne.s32.totalorder %s146, %s149
      %p155 = scmp.eq.s32.totalorder %s26, 0
      %p156 = por %p154, %p155
      %p157 = scmp.ne.s32.totalorder %s146, %s149
      %p158 = scmp.eq.s32.totalorder %s31, 1
      %p159 = por %p157, %p158
      %p160 = scmp.ne.s32.totalorder %s149, %s150
      %p161 = scmp.eq.s32.totalorder %s31, 0
      %p162 = por %p160, %p161
      %p163 = scmp.ne.s32.totalorder %s149, %s150
      %p164 = scmp.eq.s32.totalorder %s32, 1
      %p165 = por %p163, %p164
      %p167 = scmp.ne.s32.totalorder %s150, %s166
      %p168 = scmp.eq.s32.totalorder %s32, 0
      %p169 = por %p167, %p168
      %s170 = ssub.s32 %s26, %s33
      %p171 = scmp.eq.s32.totalorder %s170, 0
      %s173 = sadd.s32 %s172, 1
      %s174 = scalar_select %p171, %s172, %s173
      %p177 = pneg %p171
      %p178 = scmp.eq.s32.totalorder %s26, 1
      %p179 = por %p177, %p178
      %p180 = scmp.ne.s32.totalorder %s172, %s175
      %p181 = scmp.eq.s32.totalorder %s26, 0
      %p182 = por %p180, %p181
      %p183 = scmp.ne.s32.totalorder %s172, %s175
      %p184 = scmp.eq.s32.totalorder %s31, 1
      %p185 = por %p183, %p184
      %p186 = scmp.ne.s32.totalorder %s175, %s176
      %p187 = scmp.eq.s32.totalorder %s31, 0
      %p188 = por %p186, %p187
      %p189 = scmp.ne.s32.totalorder %s175, %s176
      %p190 = scmp.eq.s32.totalorder %s32, 1
      %p191 = por %p189, %p190
      %p193 = scmp.ne.s32.totalorder %s176, %s192
      %p194 = scmp.eq.s32.totalorder %s32, 0
      %p195 = por %p193, %p194
      %s196 = ssub.s32 %s26, %s33
      %p197 = scmp.eq.s32.totalorder %s196, 0
      %s199 = sadd.s32 %s198, 1
      %s200 = scalar_select %p197, %s198, %s199
      %p203 = pneg %p197
      %p204 = scmp.eq.s32.totalorder %s26, 1
      %p205 = por %p203, %p204
      %p206 = scmp.ne.s32.totalorder %s198, %s201
      %p207 = scmp.eq.s32.totalorder %s26, 0
      %p208 = por %p206, %p207
      %p209 = scmp.ne.s32.totalorder %s198, %s201
      %p210 = scmp.eq.s32.totalorder %s31, 1
      %p211 = por %p209, %p210
      %p212 = scmp.ne.s32.totalorder %s201, %s202
      %p213 = scmp.eq.s32.totalorder %s31, 0
      %p214 = por %p212, %p213
      %p215 = scmp.ne.s32.totalorder %s201, %s202
      %p216 = scmp.eq.s32.totalorder %s32, 1
      %p217 = por %p215, %p216
      %p219 = scmp.ne.s32.totalorder %s202, %s218
      %p220 = scmp.eq.s32.totalorder %s32, 0
      %p221 = por %p219, %p220
      %s222 = ssub.s32 %s26, %s33
      %p223 = scmp.eq.s32.totalorder %s222, 0
      %s225 = sadd.s32 %s224, 1
      %s226 = scalar_select %p223, %s224, %s225
      %p229 = pneg %p223
      %p230 = scmp.eq.s32.totalorder %s26, 1
      %p231 = por %p229, %p230
      %p232 = scmp.ne.s32.totalorder %s224, %s227
      %p233 = scmp.eq.s32.totalorder %s26, 0
      %p234 = por %p232, %p233
      %p235 = scmp.ne.s32.totalorder %s224, %s227
      %p236 = scmp.eq.s32.totalorder %s31, 1
      %p237 = por %p235, %p236
      %p238 = scmp.ne.s32.totalorder %s227, %s228
      %p239 = scmp.eq.s32.totalorder %s31, 0
      %p240 = por %p238, %p239
      %p241 = scmp.ne.s32.totalorder %s227, %s228
      %p242 = scmp.eq.s32.totalorder %s32, 1
      %p243 = por %p241, %p242
      %p245 = scmp.ne.s32.totalorder %s228, %s244
      %p246 = scmp.eq.s32.totalorder %s32, 0
      %p247 = por %p245, %p246
      %s248 = ssub.s32 %s26, %s33
      %p249 = scmp.eq.s32.totalorder %s248, 0
      %s251 = sadd.s32 %s250, 1
      %s252 = scalar_select %p249, %s250, %s251
      %p255 = pneg %p249
      %p256 = scmp.eq.s32.totalorder %s26, 1
      %p257 = por %p255, %p256
      %p258 = scmp.ne.s32.totalorder %s250, %s253
      %p259 = scmp.eq.s32.totalorder %s26, 0
      %p260 = por %p258, %p259
      %p261 = scmp.ne.s32.totalorder %s250, %s253
      %p262 = scmp.eq.s32.totalorder %s31, 1
      %p263 = por %p261, %p262
      %p264 = scmp.ne.s32.totalorder %s253, %s254
      %p265 = scmp.eq.s32.totalorder %s31, 0
      %p266 = por %p264, %p265
      %p267 = scmp.ne.s32.totalorder %s253, %s254
      %p268 = scmp.eq.s32.totalorder %s32, 1
      %p269 = por %p267, %p268
      %p271 = scmp.ne.s32.totalorder %s254, %s270
      %p272 = scmp.eq.s32.totalorder %s32, 0
      %p273 = por %p271, %p272
      %s274 = ssub.s32 %s26, %s33
      %p275 = scmp.eq.s32.totalorder %s274, 0
      %s277 = sadd.s32 %s276, 1
      %s278 = scalar_select %p275, %s276, %s277
      %p281 = pneg %p275
      %p282 = scmp.eq.s32.totalorder %s26, 1
      %p283 = por %p281, %p282
      %p284 = scmp.ne.s32.totalorder %s276, %s279
      %p285 = scmp.eq.s32.totalorder %s26, 0
      %p286 = por %p284, %p285
      %p287 = scmp.ne.s32.totalorder %s276, %s279
      %p288 = scmp.eq.s32.totalorder %s31, 1
      %p289 = por %p287, %p288
      %p290 = scmp.ne.s32.totalorder %s279, %s280
      %p291 = scmp.eq.s32.totalorder %s31, 0
      %p292 = por %p290, %p291
      %p293 = scmp.ne.s32.totalorder %s279, %s280
      %p294 = scmp.eq.s32.totalorder %s32, 1
      %p295 = por %p293, %p294
      %p297 = scmp.ne.s32.totalorder %s280, %s296
      %p298 = scmp.eq.s32.totalorder %s32, 0
      %p299 = por %p297, %p298
      %s301 = sadd.s32 %s300, 1
      %p304 = scmp.eq.s32.totalorder %s26, 1
      %p305 = scmp.ne.s32.totalorder %s300, %s302
      %p306 = scmp.eq.s32.totalorder %s26, 0
      %p307 = por %p305, %p306
      %p308 = scmp.ne.s32.totalorder %s300, %s302
      %p309 = scmp.eq.s32.totalorder %s31, 1
      %p310 = por %p308, %p309
      %p311 = scmp.ne.s32.totalorder %s302, %s303
      %p312 = scmp.eq.s32.totalorder %s31, 0
      %p313 = por %p311, %p312
      %p314 = scmp.ne.s32.totalorder %s302, %s303
      %p315 = scmp.eq.s32.totalorder %s32, 1
      %p316 = por %p314, %p315
      %p318 = scmp.ne.s32.totalorder %s303, %s317
      %p319 = scmp.eq.s32.totalorder %s32, 0
      %p320 = por %p318, %p319
      %p321 = scmp.le.s32.totalorder 1, %s26
      %p322 = scmp.lt.s32.totalorder %s26, 3
      %p323 = pnand %p321, %p322
      %p324 = pneg %p323
      // Predicated region
      $region9: #{llama_forward.2} parent=5 // pred_check
        _
      $region10: #{llama_forward.2} parent=5 // pred_check_branch
        %326 = sbr.rel (%p323) target = $region12
      $region11: #{llama_forward.2} parent=5 // pred_region
        %s327 = ssub.s32 %s26, 1
        // Predicated region
        $region13: #{llama_forward.2} parent=11 // pred_check
          %p328 = pneg %p47
        $region14: #{llama_forward.2} parent=11 // pred_check_branch
          %330 = sbr.rel (%p328) target = $region16
        $region15: #{llama_forward.2} parent=11 // pred_region
          _
        $region16: #{llama_forward.2} parent=11 // pred_fallthru
          _
        // Predicated region
        $region17: #{llama_forward.2} parent=11 // pred_check
          %p331 = pneg %p68
        $region18: #{llama_forward.2} parent=11 // pred_check_branch
          %333 = sbr.rel (%p331) target = $region20
        $region19: #{llama_forward.2} parent=11 // pred_region
          _
        $region20: #{llama_forward.2} parent=11 // pred_fallthru
          _
        // Predicated region
        $region21: #{llama_forward.2} parent=11 // pred_check
          %p334 = pneg %p89
        $region22: #{llama_forward.2} parent=11 // pred_check_branch
          %336 = sbr.rel (%p334) target = $region24
        $region23: #{llama_forward.2} parent=11 // pred_region
          _
        $region24: #{llama_forward.2} parent=11 // pred_fallthru
          _
        // Predicated region
        $region25: #{llama_forward.2} parent=11 // pred_check
          %p337 = pneg %p110
        $region26: #{llama_forward.2} parent=11 // pred_check_branch
          %339 = sbr.rel (%p337) target = $region28
        $region27: #{llama_forward.2} parent=11 // pred_region
          _
        $region28: #{llama_forward.2} parent=11 // pred_fallthru
          _
      $region12: #{llama_forward.2} parent=5 // pred_fallthru
        _
      %p340 = scmp.lt.s32.totalorder %s26, 2
      // Predicated region
      $region29: #{llama_forward.2} parent=5 // pred_check
        %p341 = pneg %p340
      $region30: #{llama_forward.2} parent=5 // pred_check_branch
        %343 = sbr.rel (%p341) target = $region32
      $region31: #{llama_forward.2} parent=5 // pred_region
        // Predicated region
        $region33: #{llama_forward.2} parent=31 // pred_check
          %p344 = pneg %p130
        $region34: #{llama_forward.2} parent=31 // pred_check_branch
          %346 = sbr.rel (%p344) target = $region36
        $region35: #{llama_forward.2} parent=31 // pred_region
          %s347 = sand.u32 %s120, 1
          %s348 = scalar_lea.sflag [#allocation3], %s347
          %s349 = sand.u32 %s120, 1
          %s350 = smul.addr %s349, 256
          %s351 = scalar_lea.vmem [#allocation2], %s350
          %353 = vsyncadd %s348, 0
          %s354 = smul.addr %s26, 64
          %s355 = smul.addr %s354, 4
          %s356 = scalar_lea.hbm %s4, %s355
          %s357 = sshll.u32 %s356, 4
          %s358 = int_to_ptr.hbm [resolvable:$true] %s357
          %s359 = sshll.u32 %s351, 4
          %s360 = int_to_ptr.vmem [resolvable:$true] %s359
          %365 = dma.hbm_to_vmem [thread:$0]  %s358, 4096, %s360, %s348, 128, 128, 8
        $region36: #{llama_forward.2} parent=31 // pred_fallthru
          _
        // Predicated region
        $region37: #{llama_forward.2} parent=31 // pred_check
          %p366 = pneg %p156
        $region38: #{llama_forward.2} parent=31 // pred_check_branch
          %368 = sbr.rel (%p366) target = $region40
        $region39: #{llama_forward.2} parent=31 // pred_region
          %s369 = sand.u32 %s26, 1
          %s370 = scalar_lea.sflag [#allocation5], %s369
          %s371 = sand.u32 %s146, 1
          %s372 = smul.addr %s371, 256
          %s373 = scalar_lea.vmem [#allocation4], %s372
          %375 = vsyncadd %s370, 0
          %s376 = smul.addr %s26, 64
          %s377 = smul.addr %s376, 4
          %s378 = scalar_lea.hbm %s5, %s377
          %s379 = sshll.u32 %s378, 4
          %s380 = int_to_ptr.hbm [resolvable:$true] %s379
          %s381 = sshll.u32 %s373, 4
          %s382 = int_to_ptr.vmem [resolvable:$true] %s381
          %387 = dma.hbm_to_vmem [thread:$0]  %s380, 4096, %s382, %s370, 128, 128, 8
        $region40: #{llama_forward.2} parent=31 // pred_fallthru
          _
        // Predicated region
        $region41: #{llama_forward.2} parent=31 // pred_check
          %p388 = pneg %p182
        $region42: #{llama_forward.2} parent=31 // pred_check_branch
          %390 = sbr.rel (%p388) target = $region44
        $region43: #{llama_forward.2} parent=31 // pred_region
          %p391 = scmp.lt.s32.totalorder %s26, 1
          %s392 = scalar_select %p391, %s26, 1
          %s393 = smul.addr %s392, 2
          %s394 = scalar_lea.vmem %s6, %s393
        $region44: #{llama_forward.2} parent=31 // pred_fallthru
          _
        // Predicated region
        $region45: #{llama_forward.2} parent=31 // pred_check
          %p395 = pneg %p208
        $region46: #{llama_forward.2} parent=31 // pred_check_branch
          %397 = sbr.rel (%p395) target = $region48
        $region47: #{llama_forward.2} parent=31 // pred_region
          %p398 = scmp.lt.s32.totalorder %s26, 1
          %s399 = scalar_select %p398, %s26, 1
          %s400 = smul.addr %s399, 2
          %s401 = scalar_lea.vmem %s7, %s400
        $region48: #{llama_forward.2} parent=31 // pred_fallthru
          _
        // Predicated region
        $region49: #{llama_forward.2} parent=31 // pred_check
          %p402 = pneg %p234
        $region50: #{llama_forward.2} parent=31 // pred_check_branch
          %404 = sbr.rel (%p402) target = $region52
        $region51: #{llama_forward.2} parent=31 // pred_region
          %s405 = sand.u32 %s26, 1
          %s406 = scalar_lea.sflag [#allocation5], %s405
          %s407 = sand.u32 %s224, 1
          %s408 = smul.addr %s407, 512
          %s409 = scalar_lea.vmem [#allocation6], %s408
          %411 = vsyncadd %s406, 0
          %s412 = smul.addr %s26, 128
          %s413 = smul.addr %s412, 4
          %s414 = scalar_lea.hbm %s8, %s413
          %s415 = sshll.u32 %s414, 4
          %s416 = int_to_ptr.hbm [resolvable:$true] %s415
          %s417 = sshll.u32 %s409, 4
          %s418 = int_to_ptr.vmem [resolvable:$true] %s417
          %423 = dma.hbm_to_vmem [thread:$0]  %s416, 8192, %s418, %s406, 256, 256, 16
        $region52: #{llama_forward.2} parent=31 // pred_fallthru
          _
        // Predicated region
        $region53: #{llama_forward.2} parent=31 // pred_check
          %p424 = pneg %p260
        $region54: #{llama_forward.2} parent=31 // pred_check_branch
          %426 = sbr.rel (%p424) target = $region56
        $region55: #{llama_forward.2} parent=31 // pred_region
          %s427 = sand.u32 %s26, 1
          %s428 = scalar_lea.sflag [#allocation8], %s427
          %s429 = sand.u32 %s250, 1
          %s430 = smul.addr %s429, 512
          %s431 = scalar_lea.vmem [#allocation7], %s430
          %433 = vsyncadd %s428, 0
          %s434 = smul.addr %s26, 128
          %s435 = smul.addr %s434, 4
          %s436 = scalar_lea.hbm %s9, %s435
          %s437 = sshll.u32 %s436, 4
          %s438 = int_to_ptr.hbm [resolvable:$true] %s437
          %s439 = sshll.u32 %s431, 4
          %s440 = int_to_ptr.vmem [resolvable:$true] %s439
          %445 = dma.hbm_to_vmem [thread:$0]  %s438, 8192, %s440, %s428, 256, 256, 16
        $region56: #{llama_forward.2} parent=31 // pred_fallthru
          _
        // Predicated region
        $region57: #{llama_forward.2} parent=31 // pred_check
          %p446 = pneg %p286
        $region58: #{llama_forward.2} parent=31 // pred_check_branch
          %448 = sbr.rel (%p446) target = $region60
        $region59: #{llama_forward.2} parent=31 // pred_region
          %s449 = sand.u32 %s26, 1
          %s450 = scalar_lea.sflag [#allocation8], %s449
          %s451 = sand.u32 %s276, 1
          %s452 = smul.addr %s451, 512
          %s453 = scalar_lea.vmem [#allocation9], %s452
          %455 = vsyncadd %s450, 0
          %s456 = smul.addr %s26, 128
          %s457 = smul.addr %s456, 4
          %s458 = scalar_lea.hbm %s10, %s457
          %s459 = sshll.u32 %s458, 4
          %s460 = int_to_ptr.hbm [resolvable:$true] %s459
          %s461 = sshll.u32 %s453, 4
          %s462 = int_to_ptr.vmem [resolvable:$true] %s461
          %467 = dma.hbm_to_vmem [thread:$0]  %s460, 8192, %s462, %s450, 128, 128, 8
        $region60: #{llama_forward.2} parent=31 // pred_fallthru
          _
      $region32: #{llama_forward.2} parent=5 // pred_fallthru
        _
      %p468 = scmp.le.s32.totalorder 1, %s26
      %p469 = scmp.lt.s32.totalorder %s26, 3
      %p470 = pnand %p468, %p469
      %p471 = pneg %p470
      // Predicated region
      $region61: #{llama_forward.2} parent=5 // pred_check
        _
      $region62: #{llama_forward.2} parent=5 // pred_check_branch
        %473 = sbr.rel (%p470) target = $region64
      $region63: #{llama_forward.2} parent=5 // pred_region
        %s474 = ssub.s32 %s26, 1
        %s475 = sand.u32 %s123, 1
        %s476 = scalar_lea.sflag [#allocation3], %s475
        %s477 = sand.u32 %s123, 1
        %s478 = smul.addr %s477, 256
        %s479 = scalar_lea.vmem [#allocation2], %s478
        // Predicated region
        $region65: #{llama_forward.2} parent=63 // pred_check
          %p480 = pneg %p136
        $region66: #{llama_forward.2} parent=63 // pred_check_branch
          %482 = sbr.rel (%p480) target = $region68
        $region67: #{llama_forward.2} parent=63 // pred_region
          %484 = dma.done %s476, 4096
        $region68: #{llama_forward.2} parent=63 // pred_fallthru
          _
        %s485 = sand.u32 %s31, 1
        %s486 = scalar_lea.sflag [#allocation5], %s485
        %s487 = sand.u32 %s149, 1
        %s488 = smul.addr %s487, 256
        %s489 = scalar_lea.vmem [#allocation4], %s488
        // Predicated region
        $region69: #{llama_forward.2} parent=63 // pred_check
          %p490 = pneg %p162
        $region70: #{llama_forward.2} parent=63 // pred_check_branch
          %492 = sbr.rel (%p490) target = $region72
        $region71: #{llama_forward.2} parent=63 // pred_region
          %494 = dma.done %s486, 4096
        $region72: #{llama_forward.2} parent=63 // pred_fallthru
          _
        %s495 = sand.u32 %s31, 1
        %s496 = scalar_lea.sflag [#allocation5], %s495
        %s497 = sand.u32 %s227, 1
        %s498 = smul.addr %s497, 512
        %s499 = scalar_lea.vmem [#allocation6], %s498
        // Predicated region
        $region73: #{llama_forward.2} parent=63 // pred_check
          %p500 = pneg %p240
        $region74: #{llama_forward.2} parent=63 // pred_check_branch
          %502 = sbr.rel (%p500) target = $region76
        $region75: #{llama_forward.2} parent=63 // pred_region
          %504 = dma.done %s496, 8192
        $region76: #{llama_forward.2} parent=63 // pred_fallthru
          _
        %s505 = sand.u32 %s31, 1
        %s506 = scalar_lea.sflag [#allocation8], %s505
        %s507 = sand.u32 %s253, 1
        %s508 = smul.addr %s507, 512
        %s509 = scalar_lea.vmem [#allocation7], %s508
        // Predicated region
        $region77: #{llama_forward.2} parent=63 // pred_check
          %p510 = pneg %p266
        $region78: #{llama_forward.2} parent=63 // pred_check_branch
          %512 = sbr.rel (%p510) target = $region80
        $region79: #{llama_forward.2} parent=63 // pred_region
          %514 = dma.done %s506, 8192
        $region80: #{llama_forward.2} parent=63 // pred_fallthru
          _
        %s515 = sand.u32 %s31, 1
        %s516 = scalar_lea.sflag [#allocation8], %s515
        %s517 = sand.u32 %s279, 1
        %s518 = smul.addr %s517, 512
        %s519 = scalar_lea.vmem [#allocation9], %s518
        // Predicated region
        $region81: #{llama_forward.2} parent=63 // pred_check
          %p520 = pneg %p292
        $region82: #{llama_forward.2} parent=63 // pred_check_branch
          %522 = sbr.rel (%p520) target = $region84
        $region83: #{llama_forward.2} parent=63 // pred_region
          %524 = dma.done %s516, 8192
        $region84: #{llama_forward.2} parent=63 // pred_fallthru
          _
        %p525 = pneg %p47
        %p526 = pneg %p44
        %p527 = pneg %p68
        %p528 = pneg %p65
        %p529 = pneg %p89
        %p530 = pneg %p86
        %p531 = pneg %p110
        %p532 = pneg %p107
        %s533 = sand.u32 %s123, 1
        %s534 = scalar_lea.sflag [#allocation3], %s533
        %s535 = sand.u32 %s123, 1
        %s536 = smul.addr %s535, 256
        %s537 = scalar_lea.vmem [#allocation2], %s536
        %p538 = pneg %p136
        %p539 = pneg %p133
        %s540 = sand.u32 %s31, 1
        %s541 = scalar_lea.sflag [#allocation5], %s540
        %s542 = sand.u32 %s149, 1
        %s543 = smul.addr %s542, 256
        %s544 = scalar_lea.vmem [#allocation4], %s543
        %p545 = pneg %p162
        %p546 = pneg %p159
        %p547 = scmp.lt.s32.totalorder %s31, 1
        %s548 = scalar_select %p547, %s31, 1
        %s549 = smul.addr %s548, 2
        %s550 = scalar_lea.vmem %s6, %s549
        %p551 = pneg %p188
        %p552 = pneg %p185
        %p553 = scmp.lt.s32.totalorder %s31, 1
        %s554 = scalar_select %p553, %s31, 1
        %s555 = smul.addr %s554, 2
        %s556 = scalar_lea.vmem %s7, %s555
        %p557 = pneg %p214
        %p558 = pneg %p211
        %s559 = sand.u32 %s31, 1
        %s560 = scalar_lea.sflag [#allocation5], %s559
        %s561 = sand.u32 %s227, 1
        %s562 = smul.addr %s561, 512
        %s563 = scalar_lea.vmem [#allocation6], %s562
        %p564 = pneg %p240
        %p565 = pneg %p237
        %s566 = sand.u32 %s31, 1
        %s567 = scalar_lea.sflag [#allocation8], %s566
        %s568 = sand.u32 %s253, 1
        %s569 = smul.addr %s568, 512
        %s570 = scalar_lea.vmem [#allocation7], %s569
        %p571 = pneg %p266
        %p572 = pneg %p263
        %s573 = sand.u32 %s31, 1
        %s574 = scalar_lea.sflag [#allocation8], %s573
        %s575 = sand.u32 %s279, 1
        %s576 = smul.addr %s575, 512
        %s577 = scalar_lea.vmem [#allocation9], %s576
        %p578 = pneg %p292
        %p579 = pneg %p289
        %p580 = pneg %p313
        %p581 = pneg %p310
        %p582 = scmp.lt.s32.totalorder %s31, 1
        %s583 = scalar_select %p582, %s31, 1
        %s584 = smul.addr %s583, 2
        %s585 = scalar_lea.vmem %s6, %s584
        %p586 = scmp.lt.s32.totalorder %s31, 1
        %s587 = scalar_select %p586, %s31, 1
        %s588 = smul.addr %s587, 2
        %s589 = scalar_lea.vmem %s7, %s588
        %p591 = scmp.eq.s32.totalorder %s31, 0
        // Predicated region
        $region85: #{llama_forward.2} parent=63 // pred_check
          %p592 = pneg %p591
        $region86: #{llama_forward.2} parent=63 // pred_check_branch
          %594 = sbr.rel (%p592) target = $region88
        $region87: #{llama_forward.2} parent=63 // pred_region
          %v595 = vld [vmem:[%s0] sm:$0xff]
          %v596 = vld [vmem:[%s0 + $0x8] sm:$0xff]
          %v597 = vld [vmem:[%s0 + $0x10] sm:$0xff]
          %v598 = vld [vmem:[%s0 + $0x18] sm:$0xff]
          %599 = vst [vmem:[%s11] sm:$0xff] %v595
          %600 = vst [vmem:[%s11 + $0x8] sm:$0xff] %v596
          %601 = vst [vmem:[%s11 + $0x10] sm:$0xff] %v597
          %602 = vst [vmem:[%s11 + $0x18] sm:$0xff] %v598
        $region88: #{llama_forward.2} parent=63 // pred_fallthru
          _
        %v603 = vld [vmem:[%s11] sm:$0xff]
        %v604 = vld [vmem:[%s11 + $0x8] sm:$0xff]
        %v605 = vld [vmem:[%s11 + $0x10] sm:$0xff]
        %v606 = vld [vmem:[%s11 + $0x18] sm:$0xff]
        %v607 = vld [vmem:[%s1] sm:$0xff]
        %v608 = vld [vmem:[%s1 + $0x8] sm:$0xff]
        %v609 = vld [vmem:[%s1 + $0x10] sm:$0xff]
        %v610 = vld [vmem:[%s1 + $0x18] sm:$0xff]
        %v611 = vld [vmem:[%s2] sm:$0xff]
        %v612 = vld [vmem:[%s2 + $0x8] sm:$0xff]
        %v613 = vld [vmem:[%s2 + $0x10] sm:$0xff]
        %v614 = vld [vmem:[%s2 + $0x18] sm:$0xff]
        %v615 = vld [vmem:[%s3] sm:$0xff]
        %v616 = vld [vmem:[%s3 + $0x8] sm:$0xff]
        %v617 = vld [vmem:[%s479] sm:$0xff]
        %v618 = vld [vmem:[%s479 + $0x8] sm:$0xff]
        %v619 = vld [vmem:[%s479 + $0x10] sm:$0xff]
        %v620 = vld [vmem:[%s479 + $0x18] sm:$0xff]
        %v621 = vld [vmem:[%s479 + $0x20] sm:$0xff]
        %v622 = vld [vmem:[%s479 + $0x28] sm:$0xff]
        %v623 = vld [vmem:[%s479 + $0x30] sm:$0xff]
        %v624 = vld [vmem:[%s479 + $0x38] sm:$0xff]
        %v625 = vld [vmem:[%s479 + $0x40] sm:$0xff]
        %v626 = vld [vmem:[%s479 + $0x48] sm:$0xff]
        %v627 = vld [vmem:[%s479 + $0x50] sm:$0xff]
        %v628 = vld [vmem:[%s479 + $0x58] sm:$0xff]
        %v629 = vld [vmem:[%s479 + $0x60] sm:$0xff]
        %v630 = vld [vmem:[%s479 + $0x68] sm:$0xff]
        %v631 = vld [vmem:[%s479 + $0x70] sm:$0xff]
        %v632 = vld [vmem:[%s479 + $0x78] sm:$0xff]
        %v633 = vld [vmem:[%s479 + $0x80] sm:$0xff]
        %v634 = vld [vmem:[%s479 + $0x88] sm:$0xff]
        %v635 = vld [vmem:[%s479 + $0x90] sm:$0xff]
        %v636 = vld [vmem:[%s479 + $0x98] sm:$0xff]
        %v637 = vld [vmem:[%s479 + $0xa0] sm:$0xff]
        %v638 = vld [vmem:[%s479 + $0xa8] sm:$0xff]
        %v639 = vld [vmem:[%s479 + $0xb0] sm:$0xff]
        %v640 = vld [vmem:[%s479 + $0xb8] sm:$0xff]
        %v641 = vld [vmem:[%s479 + $0xc0] sm:$0xff]
        %v642 = vld [vmem:[%s479 + $0xc8] sm:$0xff]
        %v643 = vld [vmem:[%s479 + $0xd0] sm:$0xff]
        %v644 = vld [vmem:[%s479 + $0xd8] sm:$0xff]
        %v645 = vld [vmem:[%s479 + $0xe0] sm:$0xff]
        %v646 = vld [vmem:[%s479 + $0xe8] sm:$0xff]
        %v647 = vld [vmem:[%s479 + $0xf0] sm:$0xff]
        %v648 = vld [vmem:[%s479 + $0xf8] sm:$0xff]
        %v649 = vld [vmem:[%s489] sm:$0xff]
        %v650 = vld [vmem:[%s489 + $0x8] sm:$0xff]
        %v651 = vld [vmem:[%s489 + $0x10] sm:$0xff]
        %v652 = vld [vmem:[%s489 + $0x18] sm:$0xff]
        %v653 = vld [vmem:[%s489 + $0x20] sm:$0xff]
        %v654 = vld [vmem:[%s489 + $0x28] sm:$0xff]
        %v655 = vld [vmem:[%s489 + $0x30] sm:$0xff]
        %v656 = vld [vmem:[%s489 + $0x38] sm:$0xff]
        %v657 = vld [vmem:[%s489 + $0x40] sm:$0xff]
        %v658 = vld [vmem:[%s489 + $0x48] sm:$0xff]
        %v659 = vld [vmem:[%s489 + $0x50] sm:$0xff]
        %v660 = vld [vmem:[%s489 + $0x58] sm:$0xff]
        %v661 = vld [vmem:[%s489 + $0x60] sm:$0xff]
        %v662 = vld [vmem:[%s489 + $0x68] sm:$0xff]
        %v663 = vld [vmem:[%s489 + $0x70] sm:$0xff]
        %v664 = vld [vmem:[%s489 + $0x78] sm:$0xff]
        %v665 = vld [vmem:[%s489 + $0x80] sm:$0xff]
        %v666 = vld [vmem:[%s489 + $0x88] sm:$0xff]
        %v667 = vld [vmem:[%s489 + $0x90] sm:$0xff]
        %v668 = vld [vmem:[%s489 + $0x98] sm:$0xff]
        %v669 = vld [vmem:[%s489 + $0xa0] sm:$0xff]
        %v670 = vld [vmem:[%s489 + $0xa8] sm:$0xff]
        %v671 = vld [vmem:[%s489 + $0xb0] sm:$0xff]
        %v672 = vld [vmem:[%s489 + $0xb8] sm:$0xff]
        %v673 = vld [vmem:[%s489 + $0xc0] sm:$0xff]
        %v674 = vld [vmem:[%s489 + $0xc8] sm:$0xff]
        %v675 = vld [vmem:[%s489 + $0xd0] sm:$0xff]
        %v676 = vld [vmem:[%s489 + $0xd8] sm:$0xff]
        %v677 = vld [vmem:[%s489 + $0xe0] sm:$0xff]
        %v678 = vld [vmem:[%s489 + $0xe8] sm:$0xff]
        %v679 = vld [vmem:[%s489 + $0xf0] sm:$0xff]
        %v680 = vld [vmem:[%s489 + $0xf8] sm:$0xff]
        %v681 = vld [vmem:[%s499] sm:$0xff]
        %v682 = vld [vmem:[%s499 + $0x8] sm:$0xff]
        %v683 = vld [vmem:[%s499 + $0x10] sm:$0xff]
        %v684 = vld [vmem:[%s499 + $0x18] sm:$0xff]
        %v685 = vld [vmem:[%s499 + $0x20] sm:$0xff]
        %v686 = vld [vmem:[%s499 + $0x28] sm:$0xff]
        %v687 = vld [vmem:[%s499 + $0x30] sm:$0xff]
        %v688 = vld [vmem:[%s499 + $0x38] sm:$0xff]
        %v689 = vld [vmem:[%s499 + $0x40] sm:$0xff]
        %v690 = vld [vmem:[%s499 + $0x48] sm:$0xff]
        %v691 = vld [vmem:[%s499 + $0x50] sm:$0xff]
        %v692 = vld [vmem:[%s499 + $0x58] sm:$0xff]
        %v693 = vld [vmem:[%s499 + $0x60] sm:$0xff]
        %v694 = vld [vmem:[%s499 + $0x68] sm:$0xff]
        %v695 = vld [vmem:[%s499 + $0x70] sm:$0xff]
        %v696 = vld [vmem:[%s499 + $0x78] sm:$0xff]
        %v697 = vld [vmem:[%s499 + $0x80] sm:$0xff]
        %v698 = vld [vmem:[%s499 + $0x88] sm:$0xff]
        %v699 = vld [vmem:[%s499 + $0x90] sm:$0xff]
        %v700 = vld [vmem:[%s499 + $0x98] sm:$0xff]
        %v701 = vld [vmem:[%s499 + $0xa0] sm:$0xff]
        %v702 = vld [vmem:[%s499 + $0xa8] sm:$0xff]
        %v703 = vld [vmem:[%s499 + $0xb0] sm:$0xff]
        %v704 = vld [vmem:[%s499 + $0xb8] sm:$0xff]
        %v705 = vld [vmem:[%s499 + $0xc0] sm:$0xff]
        %v706 = vld [vmem:[%s499 + $0xc8] sm:$0xff]
        %v707 = vld [vmem:[%s499 + $0xd0] sm:$0xff]
        %v708 = vld [vmem:[%s499 + $0xd8] sm:$0xff]
        %v709 = vld [vmem:[%s499 + $0xe0] sm:$0xff]
        %v710 = vld [vmem:[%s499 + $0xe8] sm:$0xff]
        %v711 = vld [vmem:[%s499 + $0xf0] sm:$0xff]
        %v712 = vld [vmem:[%s499 + $0xf8] sm:$0xff]
        %v713 = vld [vmem:[%s499 + $0x100] sm:$0xff]
        %v714 = vld [vmem:[%s499 + $0x108] sm:$0xff]
        %v715 = vld [vmem:[%s499 + $0x110] sm:$0xff]
        %v716 = vld [vmem:[%s499 + $0x118] sm:$0xff]
        %v717 = vld [vmem:[%s499 + $0x120] sm:$0xff]
        %v718 = vld [vmem:[%s499 + $0x128] sm:$0xff]
        %v719 = vld [vmem:[%s499 + $0x130] sm:$0xff]
        %v720 = vld [vmem:[%s499 + $0x138] sm:$0xff]
        %v721 = vld [vmem:[%s499 + $0x140] sm:$0xff]
        %v722 = vld [vmem:[%s499 + $0x148] sm:$0xff]
        %v723 = vld [vmem:[%s499 + $0x150] sm:$0xff]
        %v724 = vld [vmem:[%s499 + $0x158] sm:$0xff]
        %v725 = vld [vmem:[%s499 + $0x160] sm:$0xff]
        %v726 = vld [vmem:[%s499 + $0x168] sm:$0xff]
        %v727 = vld [vmem:[%s499 + $0x170] sm:$0xff]
        %v728 = vld [vmem:[%s499 + $0x178] sm:$0xff]
        %v729 = vld [vmem:[%s499 + $0x180] sm:$0xff]
        %v730 = vld [vmem:[%s499 + $0x188] sm:$0xff]
        %v731 = vld [vmem:[%s499 + $0x190] sm:$0xff]
        %v732 = vld [vmem:[%s499 + $0x198] sm:$0xff]
        %v733 = vld [vmem:[%s499 + $0x1a0] sm:$0xff]
        %v734 = vld [vmem:[%s499 + $0x1a8] sm:$0xff]
        %v735 = vld [vmem:[%s499 + $0x1b0] sm:$0xff]
        %v736 = vld [vmem:[%s499 + $0x1b8] sm:$0xff]
        %v737 = vld [vmem:[%s499 + $0x1c0] sm:$0xff]
        %v738 = vld [vmem:[%s499 + $0x1c8] sm:$0xff]
        %v739 = vld [vmem:[%s499 + $0x1d0] sm:$0xff]
        %v740 = vld [vmem:[%s499 + $0x1d8] sm:$0xff]
        %v741 = vld [vmem:[%s499 + $0x1e0] sm:$0xff]
        %v742 = vld [vmem:[%s499 + $0x1e8] sm:$0xff]
        %v743 = vld [vmem:[%s499 + $0x1f0] sm:$0xff]
        %v744 = vld [vmem:[%s499 + $0x1f8] sm:$0xff]
        %v745 = vld [vmem:[%s509] sm:$0xff]
        %v746 = vld [vmem:[%s509 + $0x8] sm:$0xff]
        %v747 = vld [vmem:[%s509 + $0x10] sm:$0xff]
        %v748 = vld [vmem:[%s509 + $0x18] sm:$0xff]
        %v749 = vld [vmem:[%s509 + $0x20] sm:$0xff]
        %v750 = vld [vmem:[%s509 + $0x28] sm:$0xff]
        %v751 = vld [vmem:[%s509 + $0x30] sm:$0xff]
        %v752 = vld [vmem:[%s509 + $0x38] sm:$0xff]
        %v753 = vld [vmem:[%s509 + $0x40] sm:$0xff]
        %v754 = vld [vmem:[%s509 + $0x48] sm:$0xff]
        %v755 = vld [vmem:[%s509 + $0x50] sm:$0xff]
        %v756 = vld [vmem:[%s509 + $0x58] sm:$0xff]
        %v757 = vld [vmem:[%s509 + $0x60] sm:$0xff]
        %v758 = vld [vmem:[%s509 + $0x68] sm:$0xff]
        %v759 = vld [vmem:[%s509 + $0x70] sm:$0xff]
        %v760 = vld [vmem:[%s509 + $0x78] sm:$0xff]
        %v761 = vld [vmem:[%s509 + $0x80] sm:$0xff]
        %v762 = vld [vmem:[%s509 + $0x88] sm:$0xff]
        %v763 = vld [vmem:[%s509 + $0x90] sm:$0xff]
        %v764 = vld [vmem:[%s509 + $0x98] sm:$0xff]
        %v765 = vld [vmem:[%s509 + $0xa0] sm:$0xff]
        %v766 = vld [vmem:[%s509 + $0xa8] sm:$0xff]
        %v767 = vld [vmem:[%s509 + $0xb0] sm:$0xff]
        %v768 = vld [vmem:[%s509 + $0xb8] sm:$0xff]
        %v769 = vld [vmem:[%s509 + $0xc0] sm:$0xff]
        %v770 = vld [vmem:[%s509 + $0xc8] sm:$0xff]
        %v771 = vld [vmem:[%s509 + $0xd0] sm:$0xff]
        %v772 = vld [vmem:[%s509 + $0xd8] sm:$0xff]
        %v773 = vld [vmem:[%s509 + $0xe0] sm:$0xff]
        %v774 = vld [vmem:[%s509 + $0xe8] sm:$0xff]
        %v775 = vld [vmem:[%s509 + $0xf0] sm:$0xff]
        %v776 = vld [vmem:[%s509 + $0xf8] sm:$0xff]
        %v777 = vld [vmem:[%s509 + $0x100] sm:$0xff]
        %v778 = vld [vmem:[%s509 + $0x108] sm:$0xff]
        %v779 = vld [vmem:[%s509 + $0x110] sm:$0xff]
        %v780 = vld [vmem:[%s509 + $0x118] sm:$0xff]
        %v781 = vld [vmem:[%s509 + $0x120] sm:$0xff]
        %v782 = vld [vmem:[%s509 + $0x128] sm:$0xff]
        %v783 = vld [vmem:[%s509 + $0x130] sm:$0xff]
        %v784 = vld [vmem:[%s509 + $0x138] sm:$0xff]
        %v785 = vld [vmem:[%s509 + $0x140] sm:$0xff]
        %v786 = vld [vmem:[%s509 + $0x148] sm:$0xff]
        %v787 = vld [vmem:[%s509 + $0x150] sm:$0xff]
        %v788 = vld [vmem:[%s509 + $0x158] sm:$0xff]
        %v789 = vld [vmem:[%s509 + $0x160] sm:$0xff]
        %v790 = vld [vmem:[%s509 + $0x168] sm:$0xff]
        %v791 = vld [vmem:[%s509 + $0x170] sm:$0xff]
        %v792 = vld [vmem:[%s509 + $0x178] sm:$0xff]
        %v793 = vld [vmem:[%s509 + $0x180] sm:$0xff]
        %v794 = vld [vmem:[%s509 + $0x188] sm:$0xff]
        %v795 = vld [vmem:[%s509 + $0x190] sm:$0xff]
        %v796 = vld [vmem:[%s509 + $0x198] sm:$0xff]
        %v797 = vld [vmem:[%s509 + $0x1a0] sm:$0xff]
        %v798 = vld [vmem:[%s509 + $0x1a8] sm:$0xff]
        %v799 = vld [vmem:[%s509 + $0x1b0] sm:$0xff]
        %v800 = vld [vmem:[%s509 + $0x1b8] sm:$0xff]
        %v801 = vld [vmem:[%s509 + $0x1c0] sm:$0xff]
        %v802 = vld [vmem:[%s509 + $0x1c8] sm:$0xff]
        %v803 = vld [vmem:[%s509 + $0x1d0] sm:$0xff]
        %v804 = vld [vmem:[%s509 + $0x1d8] sm:$0xff]
        %v805 = vld [vmem:[%s509 + $0x1e0] sm:$0xff]
        %v806 = vld [vmem:[%s509 + $0x1e8] sm:$0xff]
        %v807 = vld [vmem:[%s509 + $0x1f0] sm:$0xff]
        %v808 = vld [vmem:[%s509 + $0x1f8] sm:$0xff]
        %v809 = vld [vmem:[%s519] sm:$0xff]
        %v810 = vld [vmem:[%s519 + $0x8] sm:$0xff]
        %v811 = vld [vmem:[%s519 + $0x10] sm:$0xff]
        %v812 = vld [vmem:[%s519 + $0x18] sm:$0xff]
        %v813 = vld [vmem:[%s519 + $0x20] sm:$0xff]
        %v814 = vld [vmem:[%s519 + $0x28] sm:$0xff]
        %v815 = vld [vmem:[%s519 + $0x30] sm:$0xff]
        %v816 = vld [vmem:[%s519 + $0x38] sm:$0xff]
        %v817 = vld [vmem:[%s519 + $0x40] sm:$0xff]
        %v818 = vld [vmem:[%s519 + $0x48] sm:$0xff]
        %v819 = vld [vmem:[%s519 + $0x50] sm:$0xff]
        %v820 = vld [vmem:[%s519 + $0x58] sm:$0xff]
        %v821 = vld [vmem:[%s519 + $0x60] sm:$0xff]
        %v822 = vld [vmem:[%s519 + $0x68] sm:$0xff]
        %v823 = vld [vmem:[%s519 + $0x70] sm:$0xff]
        %v824 = vld [vmem:[%s519 + $0x78] sm:$0xff]
        %v825 = vld [vmem:[%s519 + $0x80] sm:$0xff]
        %v826 = vld [vmem:[%s519 + $0x88] sm:$0xff]
        %v827 = vld [vmem:[%s519 + $0x90] sm:$0xff]
        %v828 = vld [vmem:[%s519 + $0x98] sm:$0xff]
        %v829 = vld [vmem:[%s519 + $0xa0] sm:$0xff]
        %v830 = vld [vmem:[%s519 + $0xa8] sm:$0xff]
        %v831 = vld [vmem:[%s519 + $0xb0] sm:$0xff]
        %v832 = vld [vmem:[%s519 + $0xb8] sm:$0xff]
        %v833 = vld [vmem:[%s519 + $0xc0] sm:$0xff]
        %v834 = vld [vmem:[%s519 + $0xc8] sm:$0xff]
        %v835 = vld [vmem:[%s519 + $0xd0] sm:$0xff]
        %v836 = vld [vmem:[%s519 + $0xd8] sm:$0xff]
        %v837 = vld [vmem:[%s519 + $0xe0] sm:$0xff]
        %v838 = vld [vmem:[%s519 + $0xe8] sm:$0xff]
        %v839 = vld [vmem:[%s519 + $0xf0] sm:$0xff]
        %v840 = vld [vmem:[%s519 + $0xf8] sm:$0xff]
        %v841 = vld [vmem:[%s519 + $0x100] sm:$0xff]
        %v842 = vld [vmem:[%s519 + $0x108] sm:$0xff]
        %v843 = vld [vmem:[%s519 + $0x110] sm:$0xff]
        %v844 = vld [vmem:[%s519 + $0x118] sm:$0xff]
        %v845 = vld [vmem:[%s519 + $0x120] sm:$0xff]
        %v846 = vld [vmem:[%s519 + $0x128] sm:$0xff]
        %v847 = vld [vmem:[%s519 + $0x130] sm:$0xff]
        %v848 = vld [vmem:[%s519 + $0x138] sm:$0xff]
        %v849 = vld [vmem:[%s519 + $0x140] sm:$0xff]
        %v850 = vld [vmem:[%s519 + $0x148] sm:$0xff]
        %v851 = vld [vmem:[%s519 + $0x150] sm:$0xff]
        %v852 = vld [vmem:[%s519 + $0x158] sm:$0xff]
        %v853 = vld [vmem:[%s519 + $0x160] sm:$0xff]
        %v854 = vld [vmem:[%s519 + $0x168] sm:$0xff]
        %v855 = vld [vmem:[%s519 + $0x170] sm:$0xff]
        %v856 = vld [vmem:[%s519 + $0x178] sm:$0xff]
        %v857 = vld [vmem:[%s519 + $0x180] sm:$0xff]
        %v858 = vld [vmem:[%s519 + $0x188] sm:$0xff]
        %v859 = vld [vmem:[%s519 + $0x190] sm:$0xff]
        %v860 = vld [vmem:[%s519 + $0x198] sm:$0xff]
        %v861 = vld [vmem:[%s519 + $0x1a0] sm:$0xff]
        %v862 = vld [vmem:[%s519 + $0x1a8] sm:$0xff]
        %v863 = vld [vmem:[%s519 + $0x1b0] sm:$0xff]
        %v864 = vld [vmem:[%s519 + $0x1b8] sm:$0xff]
        %v865 = vld [vmem:[%s519 + $0x1c0] sm:$0xff]
        %v866 = vld [vmem:[%s519 + $0x1c8] sm:$0xff]
        %v867 = vld [vmem:[%s519 + $0x1d0] sm:$0xff]
        %v868 = vld [vmem:[%s519 + $0x1d8] sm:$0xff]
        %v869 = vld [vmem:[%s519 + $0x1e0] sm:$0xff]
        %v870 = vld [vmem:[%s519 + $0x1e8] sm:$0xff]
        %v871 = vld [vmem:[%s519 + $0x1f0] sm:$0xff]
        %v872 = vld [vmem:[%s519 + $0x1f8] sm:$0xff]
        %v873 = vld [vmem:[%s585] sm:$0x3]
        %v874 = vld [vmem:[%s589] sm:$0x3]
        %v875 = vmul.f32 %v603, %v603
        %v876 = vmul.f32 %v604, %v604
        %v877 = vmul.f32 %v605, %v605
        %v878 = vmul.f32 %v606, %v606
        %v879 = vadd.f32 %v875, %v876
        %880 = vadd.xlane.f32.xlu0 %v879
        %v881 = vpop.xlane.xlu0 %880
        %v882 = vadd.f32 %v877, %v878
        %883 = vadd.xlane.f32.xlu0 %v882
        %v884 = vpop.xlane.xlu0 %883
        %v885 = vrcp.pop 256.0
        %v886 = vmul.f32 256.0, %v885
        %v887 = vsub.f32 1.0, %v886
        %v888 = vmul.f32 %v885, %v887
        %v889 = vadd.f32 %v885, %v888
        %vm890 = vweird.f32 %v885
        %v891 = vsel %vm890, %v885, %v889
        %v892 = vmul.f32 %v881, %v891
        %v893 = vmul.f32 %v884, %v891
        %v894 = vadd.f32 %v892, 1e-06
        %v895 = vadd.f32 %v893, 1e-06
        %v896 = vrsqrt.pop %v894
        %v897 = vmul.f32 %v896, %v894
        %v898 = vmul.f32 %v897, %v896
        %v899 = vmul.f32 0.5, %v898
        %v900 = vsub.f32 1.5, %v899
        %v901 = vmul.f32 %v896, %v900
        %vm902 = vweird.f32 %v894
        %vm903 = vweird.f32 %v896
        %vm904 = vmor %vm902, %vm903
        %v905 = vsel %vm904, %v896, %v901
        %v906 = vrsqrt.pop %v895
        %v907 = vmul.f32 %v906, %v895
        %v908 = vmul.f32 %v907, %v906
        %v909 = vmul.f32 0.5, %v908
        %v910 = vsub.f32 1.5, %v909
        %v911 = vmul.f32 %v906, %v910
        %vm912 = vweird.f32 %v895
        %vm913 = vweird.f32 %v906
        %vm914 = vmor %vm912, %vm913
        %v915 = vsel %vm914, %v906, %v911
        %v916 = vmul.f32 %v603, %v905
        %v917 = vmul.f32 %v604, %v905
        %v918 = vmul.f32 %v605, %v915
        %v919 = vmul.f32 %v606, %v915
        %v921 = vperm.slane %v873, 0
        %v922 = vperm.slane %v873, 1
        %v925 = vmul.f32 %v916, %v921
        %v926 = vmul.f32 %v917, %v922
        %v927 = vmul.f32 %v918, %v921
        %v928 = vmul.f32 %v919, %v922
        %v929 = vpack.c.bf16 %v927, %v925
        %v930 = vpack.c.bf16 %v928, %v926
        %v963 = vunpack.c.l.b16 %v617
        %v964 = vunpack.c.h.b16 %v617
        %v965 = vunpack.c.l.b16 %v618
        %v966 = vunpack.c.h.b16 %v618
        %v967 = vunpack.c.l.b16 %v619
        %v968 = vunpack.c.h.b16 %v619
        %v969 = vunpack.c.l.b16 %v620
        %v970 = vunpack.c.h.b16 %v620
        %v971 = vunpack.c.l.b16 %v621
        %v972 = vunpack.c.h.b16 %v621
        %v973 = vunpack.c.l.b16 %v622
        %v974 = vunpack.c.h.b16 %v622
        %v975 = vunpack.c.l.b16 %v623
        %v976 = vunpack.c.h.b16 %v623
        %v977 = vunpack.c.l.b16 %v624
        %v978 = vunpack.c.h.b16 %v624
        %v979 = vunpack.c.l.b16 %v625
        %v980 = vunpack.c.h.b16 %v625
        %v981 = vunpack.c.l.b16 %v626
        %v982 = vunpack.c.h.b16 %v626
        %v983 = vunpack.c.l.b16 %v627
        %v984 = vunpack.c.h.b16 %v627
        %v985 = vunpack.c.l.b16 %v628
        %v986 = vunpack.c.h.b16 %v628
        %v987 = vunpack.c.l.b16 %v629
        %v988 = vunpack.c.h.b16 %v629
        %v989 = vunpack.c.l.b16 %v630
        %v990 = vunpack.c.h.b16 %v630
        %v991 = vunpack.c.l.b16 %v631
        %v992 = vunpack.c.h.b16 %v631
        %v993 = vunpack.c.l.b16 %v632
        %v994 = vunpack.c.h.b16 %v632
        %v995 = vunpack.c.l.b16 %v633
        %v996 = vunpack.c.h.b16 %v633
        %v997 = vunpack.c.l.b16 %v634
        %v998 = vunpack.c.h.b16 %v634
        %v999 = vunpack.c.l.b16 %v635
        %v1000 = vunpack.c.h.b16 %v635
        %v1001 = vunpack.c.l.b16 %v636
        %v1002 = vunpack.c.h.b16 %v636
        %v1003 = vunpack.c.l.b16 %v637
        %v1004 = vunpack.c.h.b16 %v637
        %v1005 = vunpack.c.l.b16 %v638
        %v1006 = vunpack.c.h.b16 %v638
        %v1007 = vunpack.c.l.b16 %v639
        %v1008 = vunpack.c.h.b16 %v639
        %v1009 = vunpack.c.l.b16 %v640
        %v1010 = vunpack.c.h.b16 %v640
        %v1011 = vunpack.c.l.b16 %v641
        %v1012 = vunpack.c.h.b16 %v641
        %v1013 = vunpack.c.l.b16 %v642
        %v1014 = vunpack.c.h.b16 %v642
        %v1015 = vunpack.c.l.b16 %v643
        %v1016 = vunpack.c.h.b16 %v643
        %v1017 = vunpack.c.l.b16 %v644
        %v1018 = vunpack.c.h.b16 %v644
        %v1019 = vunpack.c.l.b16 %v645
        %v1020 = vunpack.c.h.b16 %v645
        %v1021 = vunpack.c.l.b16 %v646
        %v1022 = vunpack.c.h.b16 %v646
        %v1023 = vunpack.c.l.b16 %v647
        %v1024 = vunpack.c.h.b16 %v647
        %v1025 = vunpack.c.l.b16 %v648
        %v1026 = vunpack.c.h.b16 %v648
        %v1027 = vpack.c.b16 %v965, %v963
        %v1028 = vpack.c.b16 %v966, %v964
        %v1029 = vpack.c.b16 %v969, %v967
        %v1030 = vpack.c.b16 %v970, %v968
        %v1031 = vpack.c.b16 %v973, %v971
        %v1032 = vpack.c.b16 %v974, %v972
        %v1033 = vpack.c.b16 %v977, %v975
        %v1034 = vpack.c.b16 %v978, %v976
        %v1035 = vpack.c.b16 %v981, %v979
        %v1036 = vpack.c.b16 %v982, %v980
        %v1037 = vpack.c.b16 %v985, %v983
        %v1038 = vpack.c.b16 %v986, %v984
        %v1039 = vpack.c.b16 %v989, %v987
        %v1040 = vpack.c.b16 %v990, %v988
        %v1041 = vpack.c.b16 %v993, %v991
        %v1042 = vpack.c.b16 %v994, %v992
        %v1043 = vpack.c.b16 %v997, %v995
        %v1044 = vpack.c.b16 %v998, %v996
        %v1045 = vpack.c.b16 %v1001, %v999
        %v1046 = vpack.c.b16 %v1002, %v1000
        %v1047 = vpack.c.b16 %v1005, %v1003
        %v1048 = vpack.c.b16 %v1006, %v1004
        %v1049 = vpack.c.b16 %v1009, %v1007
        %v1050 = vpack.c.b16 %v1010, %v1008
        %v1051 = vpack.c.b16 %v1013, %v1011
        %v1052 = vpack.c.b16 %v1014, %v1012
        %v1053 = vpack.c.b16 %v1017, %v1015
        %v1054 = vpack.c.b16 %v1018, %v1016
        %v1055 = vpack.c.b16 %v1021, %v1019
        %v1056 = vpack.c.b16 %v1022, %v1020
        %v1057 = vpack.c.b16 %v1025, %v1023
        %v1058 = vpack.c.b16 %v1026, %v1024
        %1091 = vmatpush.bf16.msra.mxu0 %v1041
        %1092 = vmatpush.bf16.msra.mxu0 %v1039
        %1093 = vmatpush.bf16.msra.mxu0 %v1037
        %1094 = vmatpush.bf16.msra.mxu0 %v1035
        %1095 = vmatpush.bf16.msra.mxu0 %v1033
        %1096 = vmatpush.bf16.msra.mxu0 %v1031
        %1097 = vmatpush.bf16.msra.mxu0 %v1029
        %1098 = vmatpush.bf16.msra.mxu0 %v1027
        %1099 = vmatmul.bf16.gmra.mxu0 %v929
        %v1100 = vpop.f32.mrf.mxu0
        %v1101 = vadd.f32 0.0, %v1100
        %v1102 = vpop.f32.mrf.mxu0
        %v1103 = vadd.f32 0.0, %v1102
        %1104 = vdwg.mxu0
        %1105 = vmatpush.bf16.msra.mxu0 %v1057
        %1106 = vmatpush.bf16.msra.mxu0 %v1055
        %1107 = vmatpush.bf16.msra.mxu0 %v1053
        %1108 = vmatpush.bf16.msra.mxu0 %v1051
        %1109 = vmatpush.bf16.msra.mxu0 %v1049
        %1110 = vmatpush.bf16.msra.mxu0 %v1047
        %1111 = vmatpush.bf16.msra.mxu0 %v1045
        %1112 = vmatpush.bf16.msra.mxu0 %v1043
        %1113 = vmatmul.bf16.gmra.mxu0 %v930
        %v1114 = vpop.f32.mrf.mxu0
        %v1115 = vadd.f32 %v1101, %v1114
        %v1116 = vpop.f32.mrf.mxu0
        %v1117 = vadd.f32 %v1103, %v1116
        %1118 = vdwg.mxu0
        %1119 = vmatpush.bf16.msra.mxu0 %v1042
        %1120 = vmatpush.bf16.msra.mxu0 %v1040
        %1121 = vmatpush.bf16.msra.mxu0 %v1038
        %1122 = vmatpush.bf16.msra.mxu0 %v1036
        %1123 = vmatpush.bf16.msra.mxu0 %v1034
        %1124 = vmatpush.bf16.msra.mxu0 %v1032
        %1125 = vmatpush.bf16.msra.mxu0 %v1030
        %1126 = vmatpush.bf16.msra.mxu0 %v1028
        %1127 = vmatmul.bf16.gmra.mxu0 %v929
        %v1128 = vpop.f32.mrf.mxu0
        %v1129 = vadd.f32 0.0, %v1128
        %v1130 = vpop.f32.mrf.mxu0
        %v1131 = vadd.f32 0.0, %v1130
        %1132 = vdwg.mxu0
        %1133 = vmatpush.bf16.msra.mxu0 %v1058
        %1134 = vmatpush.bf16.msra.mxu0 %v1056
        %1135 = vmatpush.bf16.msra.mxu0 %v1054
        %1136 = vmatpush.bf16.msra.mxu0 %v1052
        %1137 = vmatpush.bf16.msra.mxu0 %v1050
        %1138 = vmatpush.bf16.msra.mxu0 %v1048
        %1139 = vmatpush.bf16.msra.mxu0 %v1046
        %1140 = vmatpush.bf16.msra.mxu0 %v1044
        %1141 = vmatmul.bf16.gmra.mxu0 %v930
        %v1142 = vpop.f32.mrf.mxu0
        %v1143 = vadd.f32 %v1129, %v1142
        %v1144 = vpop.f32.mrf.mxu0
        %v1145 = vadd.f32 %v1131, %v1144
        %1146 = vdwg.mxu0
        %v1179 = vunpack.c.l.b16 %v649
        %v1180 = vunpack.c.h.b16 %v649
        %v1181 = vunpack.c.l.b16 %v650
        %v1182 = vunpack.c.h.b16 %v650
        %v1183 = vunpack.c.l.b16 %v651
        %v1184 = vunpack.c.h.b16 %v651
        %v1185 = vunpack.c.l.b16 %v652
        %v1186 = vunpack.c.h.b16 %v652
        %v1187 = vunpack.c.l.b16 %v653
        %v1188 = vunpack.c.h.b16 %v653
        %v1189 = vunpack.c.l.b16 %v654
        %v1190 = vunpack.c.h.b16 %v654
        %v1191 = vunpack.c.l.b16 %v655
        %v1192 = vunpack.c.h.b16 %v655
        %v1193 = vunpack.c.l.b16 %v656
        %v1194 = vunpack.c.h.b16 %v656
        %v1195 = vunpack.c.l.b16 %v657
        %v1196 = vunpack.c.h.b16 %v657
        %v1197 = vunpack.c.l.b16 %v658
        %v1198 = vunpack.c.h.b16 %v658
        %v1199 = vunpack.c.l.b16 %v659
        %v1200 = vunpack.c.h.b16 %v659
        %v1201 = vunpack.c.l.b16 %v660
        %v1202 = vunpack.c.h.b16 %v660
        %v1203 = vunpack.c.l.b16 %v661
        %v1204 = vunpack.c.h.b16 %v661
        %v1205 = vunpack.c.l.b16 %v662
        %v1206 = vunpack.c.h.b16 %v662
        %v1207 = vunpack.c.l.b16 %v663
        %v1208 = vunpack.c.h.b16 %v663
        %v1209 = vunpack.c.l.b16 %v664
        %v1210 = vunpack.c.h.b16 %v664
        %v1211 = vunpack.c.l.b16 %v665
        %v1212 = vunpack.c.h.b16 %v665
        %v1213 = vunpack.c.l.b16 %v666
        %v1214 = vunpack.c.h.b16 %v666
        %v1215 = vunpack.c.l.b16 %v667
        %v1216 = vunpack.c.h.b16 %v667
        %v1217 = vunpack.c.l.b16 %v668
        %v1218 = vunpack.c.h.b16 %v668
        %v1219 = vunpack.c.l.b16 %v669
        %v1220 = vunpack.c.h.b16 %v669
        %v1221 = vunpack.c.l.b16 %v670
        %v1222 = vunpack.c.h.b16 %v670
        %v1223 = vunpack.c.l.b16 %v671
        %v1224 = vunpack.c.h.b16 %v671
        %v1225 = vunpack.c.l.b16 %v672
        %v1226 = vunpack.c.h.b16 %v672
        %v1227 = vunpack.c.l.b16 %v673
        %v1228 = vunpack.c.h.b16 %v673
        %v1229 = vunpack.c.l.b16 %v674
        %v1230 = vunpack.c.h.b16 %v674
        %v1231 = vunpack.c.l.b16 %v675
        %v1232 = vunpack.c.h.b16 %v675
        %v1233 = vunpack.c.l.b16 %v676
        %v1234 = vunpack.c.h.b16 %v676
        %v1235 = vunpack.c.l.b16 %v677
        %v1236 = vunpack.c.h.b16 %v677
        %v1237 = vunpack.c.l.b16 %v678
        %v1238 = vunpack.c.h.b16 %v678
        %v1239 = vunpack.c.l.b16 %v679
        %v1240 = vunpack.c.h.b16 %v679
        %v1241 = vunpack.c.l.b16 %v680
        %v1242 = vunpack.c.h.b16 %v680
        %v1243 = vpack.c.b16 %v1181, %v1179
        %v1244 = vpack.c.b16 %v1182, %v1180
        %v1245 = vpack.c.b16 %v1185, %v1183
        %v1246 = vpack.c.b16 %v1186, %v1184
        %v1247 = vpack.c.b16 %v1189, %v1187
        %v1248 = vpack.c.b16 %v1190, %v1188
        %v1249 = vpack.c.b16 %v1193, %v1191
        %v1250 = vpack.c.b16 %v1194, %v1192
        %v1251 = vpack.c.b16 %v1197, %v1195
        %v1252 = vpack.c.b16 %v1198, %v1196
        %v1253 = vpack.c.b16 %v1201, %v1199
        %v1254 = vpack.c.b16 %v1202, %v1200
        %v1255 = vpack.c.b16 %v1205, %v1203
        %v1256 = vpack.c.b16 %v1206, %v1204
        %v1257 = vpack.c.b16 %v1209, %v1207
        %v1258 = vpack.c.b16 %v1210, %v1208
        %v1259 = vpack.c.b16 %v1213, %v1211
        %v1260 = vpack.c.b16 %v1214, %v1212
        %v1261 = vpack.c.b16 %v1217, %v1215
        %v1262 = vpack.c.b16 %v1218, %v1216
        %v1263 = vpack.c.b16 %v1221, %v1219
        %v1264 = vpack.c.b16 %v1222, %v1220
        %v1265 = vpack.c.b16 %v1225, %v1223
        %v1266 = vpack.c.b16 %v1226, %v1224
        %v1267 = vpack.c.b16 %v1229, %v1227
        %v1268 = vpack.c.b16 %v1230, %v1228
        %v1269 = vpack.c.b16 %v1233, %v1231
        %v1270 = vpack.c.b16 %v1234, %v1232
        %v1271 = vpack.c.b16 %v1237, %v1235
        %v1272 = vpack.c.b16 %v1238, %v1236
        %v1273 = vpack.c.b16 %v1241, %v1239
        %v1274 = vpack.c.b16 %v1242, %v1240
        %1307 = vmatpush.bf16.msra.mxu0 %v1257
        %1308 = vmatpush.bf16.msra.mxu0 %v1255
        %1309 = vmatpush.bf16.msra.mxu0 %v1253
        %1310 = vmatpush.bf16.msra.mxu0 %v1251
        %1311 = vmatpush.bf16.msra.mxu0 %v1249
        %1312 = vmatpush.bf16.msra.mxu0 %v1247
        %1313 = vmatpush.bf16.msra.mxu0 %v1245
        %1314 = vmatpush.bf16.msra.mxu0 %v1243
        %1315 = vmatmul.bf16.gmra.mxu0 %v929
        %v1316 = vpop.f32.mrf.mxu0
        %v1317 = vadd.f32 0.0, %v1316
        %v1318 = vpop.f32.mrf.mxu0
        %v1319 = vadd.f32 0.0, %v1318
        %1320 = vdwg.mxu0
        %1321 = vmatpush.bf16.msra.mxu0 %v1273
        %1322 = vmatpush.bf16.msra.mxu0 %v1271
        %1323 = vmatpush.bf16.msra.mxu0 %v1269
        %1324 = vmatpush.bf16.msra.mxu0 %v1267
        %1325 = vmatpush.bf16.msra.mxu0 %v1265
        %1326 = vmatpush.bf16.msra.mxu0 %v1263
        %1327 = vmatpush.bf16.msra.mxu0 %v1261
        %1328 = vmatpush.bf16.msra.mxu0 %v1259
        %1329 = vmatmul.bf16.gmra.mxu0 %v930
        %v1330 = vpop.f32.mrf.mxu0
        %v1331 = vadd.f32 %v1317, %v1330
        %v1332 = vpop.f32.mrf.mxu0
        %v1333 = vadd.f32 %v1319, %v1332
        %1334 = vdwg.mxu0
        %1335 = vmatpush.bf16.msra.mxu0 %v1258
        %1336 = vmatpush.bf16.msra.mxu0 %v1256
        %1337 = vmatpush.bf16.msra.mxu0 %v1254
        %1338 = vmatpush.bf16.msra.mxu0 %v1252
        %1339 = vmatpush.bf16.msra.mxu0 %v1250
        %1340 = vmatpush.bf16.msra.mxu0 %v1248
        %1341 = vmatpush.bf16.msra.mxu0 %v1246
        %1342 = vmatpush.bf16.msra.mxu0 %v1244
        %1343 = vmatmul.bf16.gmra.mxu0 %v929
        %v1344 = vpop.f32.mrf.mxu0
        %v1345 = vadd.f32 0.0, %v1344
        %v1346 = vpop.f32.mrf.mxu0
        %v1347 = vadd.f32 0.0, %v1346
        %1348 = vdwg.mxu0
        %1349 = vmatpush.bf16.msra.mxu0 %v1274
        %1350 = vmatpush.bf16.msra.mxu0 %v1272
        %1351 = vmatpush.bf16.msra.mxu0 %v1270
        %1352 = vmatpush.bf16.msra.mxu0 %v1268
        %1353 = vmatpush.bf16.msra.mxu0 %v1266
        %1354 = vmatpush.bf16.msra.mxu0 %v1264
        %1355 = vmatpush.bf16.msra.mxu0 %v1262
        %1356 = vmatpush.bf16.msra.mxu0 %v1260
        %1357 = vmatmul.bf16.gmra.mxu0 %v930
        %v1358 = vpop.f32.mrf.mxu0
        %v1359 = vadd.f32 %v1345, %v1358
        %v1360 = vpop.f32.mrf.mxu0
        %v1361 = vadd.f32 %v1347, %v1360
        %1362 = vdwg.mxu0
        %v1363 = vmul.f32 %v1115, %v607
        %v1364 = vmul.f32 %v1143, %v608
        %v1365 = vmul.f32 %v1117, %v609
        %v1366 = vmul.f32 %v1145, %v610
        %v1367 = vmul.f32 %v1143, %v611
        %v1368 = vmul.f32 %v1115, %v612
        %v1369 = vmul.f32 %v1145, %v613
        %v1370 = vmul.f32 %v1117, %v614
        %v1371 = vadd.f32 %v1363, %v1367
        %v1372 = vadd.f32 %v1364, %v1368
        %v1373 = vadd.f32 %v1365, %v1369
        %v1374 = vadd.f32 %v1366, %v1370
        %v1375 = vpack.c.bf16 %v1373, %v1371
        %v1376 = vpack.c.bf16 %v1333, %v1331
        %1377 = vmatpush.bf16.xpose.msra.mxu0 0
        %1378 = vmatpush.bf16.xpose.msra.mxu0 0
        %1379 = vmatpush.bf16.xpose.msra.mxu0 0
        %1380 = vmatpush.bf16.xpose.msra.mxu0 0
        %1381 = vmatpush.bf16.xpose.msra.mxu0 0
        %1382 = vmatpush.bf16.xpose.msra.mxu0 0
        %1383 = vmatpush.bf16.xpose.msra.mxu0 0
        %1384 = vmatpush.bf16.xpose.msra.mxu0 %v1375
        %1385 = vmatmul.bf16.gmra.mxu0 %v1375
        %v1386 = vpop.f32.mrf.mxu0
        %v1387 = vadd.f32 0.0, %v1386
        %v1388 = vpop.f32.mrf.mxu0
        %v1389 = vadd.f32 0.0, %v1388
        %1390 = vdwg.mxu0
        %v1391 = vmul.f32 %v1387, 0.088388346
        %v1392 = vmul.f32 %v1389, 0.088388346
        %v1393 = vadd.f32 %v1391, %v615
        %v1394 = vadd.f32 %v1392, %v616
        %vm1395 = vcmask 130048
        %v1396 = vsel %vm1395, %v1393, -inf
        %1397 = vmax.xlane.f32.xlu0 %v1396
        %v1398 = vpop.xlane.xlu0 %1397
        %v1399 = vsel %vm1395, %v1394, -inf
        %1400 = vmax.xlane.f32.xlu0 %v1399
        %v1401 = vpop.xlane.xlu0 %1400
        %v1402 = vsub.f32 %v1393, %v1398
        %v1403 = vsub.f32 %v1394, %v1401
        %v1404 = vmul.f32 %v1402, 1.442695
        %v1405 = vpow.pop %v1404
        %v1406 = vmul.f32 %v1403, 1.442695
        %v1407 = vpow.pop %v1406
        %v1408 = vsel %vm1395, %v1405, 0.0
        %1409 = vadd.xlane.f32.xlu0 %v1408
        %v1410 = vpop.xlane.xlu0 %1409
        %v1411 = vsel %vm1395, %v1407, 0.0
        %1412 = vadd.xlane.f32.xlu0 %v1411
        %v1413 = vpop.xlane.xlu0 %1412
        %v1414 = vrcp.pop %v1410
        %v1415 = vrcp.pop %v1413
        %v1416 = vmul.f32 %v1405, %v1414
        %v1417 = vmul.f32 %v1407, %v1415
        %v1418 = vpack.c.bf16 %v1417, %v1416
        %v1420 = vsel %vm1395, %v1418, 0
        %1422 = vmatpush.bf16.msra.mxu0 0
        %1423 = vmatpush.bf16.msra.mxu0 0
        %1424 = vmatpush.bf16.msra.mxu0 0
        %1425 = vmatpush.bf16.msra.mxu0 0
        %1426 = vmatpush.bf16.msra.mxu0 0
        %1427 = vmatpush.bf16.msra.mxu0 0
        %1428 = vmatpush.bf16.msra.mxu0 0
        %1429 = vmatpush.bf16.msra.mxu0 %v1376
        %1430 = vmatmul.bf16.gmra.mxu0 %v1420
        %v1431 = vpop.f32.mrf.mxu0
        %v1432 = vadd.f32 0.0, %v1431
        %v1433 = vpop.f32.mrf.mxu0
        %v1434 = vadd.f32 0.0, %v1433
        %1435 = vdwg.mxu0
        %v1436 = vpack.c.bf16 %v1374, %v1372
        %v1437 = vpack.c.bf16 %v1361, %v1359
        %1438 = vmatpush.bf16.xpose.msra.mxu0 0
        %1439 = vmatpush.bf16.xpose.msra.mxu0 0
        %1440 = vmatpush.bf16.xpose.msra.mxu0 0
        %1441 = vmatpush.bf16.xpose.msra.mxu0 0
        %1442 = vmatpush.bf16.xpose.msra.mxu0 0
        %1443 = vmatpush.bf16.xpose.msra.mxu0 0
        %1444 = vmatpush.bf16.xpose.msra.mxu0 0
        %1445 = vmatpush.bf16.xpose.msra.mxu0 %v1436
        %1446 = vmatmul.bf16.gmra.mxu0 %v1436
        %v1447 = vpop.f32.mrf.mxu0
        %v1448 = vadd.f32 0.0, %v1447
        %v1449 = vpop.f32.mrf.mxu0
        %v1450 = vadd.f32 0.0, %v1449
        %1451 = vdwg.mxu0
        %v1452 = vmul.f32 %v1448, 0.088388346
        %v1453 = vmul.f32 %v1450, 0.088388346
        %v1454 = vadd.f32 %v1452, %v615
        %v1455 = vadd.f32 %v1453, %v616
        %v1456 = vsel %vm1395, %v1454, -inf
        %1457 = vmax.xlane.f32.xlu0 %v1456
        %v1458 = vpop.xlane.xlu0 %1457
        %v1459 = vsel %vm1395, %v1455, -inf
        %1460 = vmax.xlane.f32.xlu0 %v1459
        %v1461 = vpop.xlane.xlu0 %1460
        %v1462 = vsub.f32 %v1454, %v1458
        %v1463 = vsub.f32 %v1455, %v1461
        %v1464 = vmul.f32 %v1462, 1.442695
        %v1465 = vpow.pop %v1464
        %v1466 = vmul.f32 %v1463, 1.442695
        %v1467 = vpow.pop %v1466
        %v1468 = vsel %vm1395, %v1465, 0.0
        %1469 = vadd.xlane.f32.xlu0 %v1468
        %v1470 = vpop.xlane.xlu0 %1469
        %v1471 = vsel %vm1395, %v1467, 0.0
        %1472 = vadd.xlane.f32.xlu0 %v1471
        %v1473 = vpop.xlane.xlu0 %1472
        %v1474 = vrcp.pop %v1470
        %v1475 = vrcp.pop %v1473
        %v1476 = vmul.f32 %v1465, %v1474
        %v1477 = vmul.f32 %v1467, %v1475
        %v1478 = vpack.c.bf16 %v1477, %v1476
        %v1480 = vsel %vm1395, %v1478, 0
        %1482 = vmatpush.bf16.msra.mxu0 0
        %1483 = vmatpush.bf16.msra.mxu0 0
        %1484 = vmatpush.bf16.msra.mxu0 0
        %1485 = vmatpush.bf16.msra.mxu0 0
        %1486 = vmatpush.bf16.msra.mxu0 0
        %1487 = vmatpush.bf16.msra.mxu0 0
        %1488 = vmatpush.bf16.msra.mxu0 0
        %1489 = vmatpush.bf16.msra.mxu0 %v1437
        %1490 = vmatmul.bf16.gmra.mxu0 %v1480
        %v1491 = vpop.f32.mrf.mxu0
        %v1492 = vadd.f32 0.0, %v1491
        %v1493 = vpop.f32.mrf.mxu0
        %v1494 = vadd.f32 0.0, %v1493
        %1495 = vdwg.mxu0
        %v1496 = vadd.f32 %v603, %v1432
        %v1497 = vadd.f32 %v604, %v1492
        %v1498 = vadd.f32 %v605, %v1434
        %v1499 = vadd.f32 %v606, %v1494
        %v1500 = vmul.f32 %v1496, %v1496
        %v1501 = vmul.f32 %v1497, %v1497
        %v1502 = vmul.f32 %v1498, %v1498
        %v1503 = vmul.f32 %v1499, %v1499
        %v1504 = vadd.f32 %v1500, %v1501
        %1505 = vadd.xlane.f32.xlu0 %v1504
        %v1506 = vpop.xlane.xlu0 %1505
        %v1507 = vadd.f32 %v1502, %v1503
        %1508 = vadd.xlane.f32.xlu0 %v1507
        %v1509 = vpop.xlane.xlu0 %1508
        %v1510 = vmul.f32 %v1506, %v891
        %v1511 = vmul.f32 %v1509, %v891
        %v1512 = vadd.f32 %v1510, 1e-06
        %v1513 = vadd.f32 %v1511, 1e-06
        %v1514 = vrsqrt.pop %v1512
        %v1515 = vmul.f32 %v1514, %v1512
        %v1516 = vmul.f32 %v1515, %v1514
        %v1517 = vmul.f32 0.5, %v1516
        %v1518 = vsub.f32 1.5, %v1517
        %v1519 = vmul.f32 %v1514, %v1518
        %vm1520 = vweird.f32 %v1512
        %vm1521 = vweird.f32 %v1514
        %vm1522 = vmor %vm1520, %vm1521
        %v1523 = vsel %vm1522, %v1514, %v1519
        %v1524 = vrsqrt.pop %v1513
        %v1525 = vmul.f32 %v1524, %v1513
        %v1526 = vmul.f32 %v1525, %v1524
        %v1527 = vmul.f32 0.5, %v1526
        %v1528 = vsub.f32 1.5, %v1527
        %v1529 = vmul.f32 %v1524, %v1528
        %vm1530 = vweird.f32 %v1513
        %vm1531 = vweird.f32 %v1524
        %vm1532 = vmor %vm1530, %vm1531
        %v1533 = vsel %vm1532, %v1524, %v1529
        %v1534 = vmul.f32 %v1496, %v1523
        %v1535 = vmul.f32 %v1497, %v1523
        %v1536 = vmul.f32 %v1498, %v1533
        %v1537 = vmul.f32 %v1499, %v1533
        %v1539 = vperm.slane %v874, 0
        %v1540 = vperm.slane %v874, 1
        %v1543 = vmul.f32 %v1534, %v1539
        %v1544 = vmul.f32 %v1535, %v1540
        %v1545 = vmul.f32 %v1536, %v1539
        %v1546 = vmul.f32 %v1537, %v1540
        %v1547 = vpack.c.bf16 %v1545, %v1543
        %v1548 = vpack.c.bf16 %v1546, %v1544
        %v1613 = vunpack.c.l.b16 %v681
        %v1614 = vunpack.c.h.b16 %v681
        %v1615 = vunpack.c.l.b16 %v682
        %v1616 = vunpack.c.h.b16 %v682
        %v1617 = vunpack.c.l.b16 %v683
        %v1618 = vunpack.c.h.b16 %v683
        %v1619 = vunpack.c.l.b16 %v684
        %v1620 = vunpack.c.h.b16 %v684
        %v1621 = vunpack.c.l.b16 %v685
        %v1622 = vunpack.c.h.b16 %v685
        %v1623 = vunpack.c.l.b16 %v686
        %v1624 = vunpack.c.h.b16 %v686
        %v1625 = vunpack.c.l.b16 %v687
        %v1626 = vunpack.c.h.b16 %v687
        %v1627 = vunpack.c.l.b16 %v688
        %v1628 = vunpack.c.h.b16 %v688
        %v1629 = vunpack.c.l.b16 %v689
        %v1630 = vunpack.c.h.b16 %v689
        %v1631 = vunpack.c.l.b16 %v690
        %v1632 = vunpack.c.h.b16 %v690
        %v1633 = vunpack.c.l.b16 %v691
        %v1634 = vunpack.c.h.b16 %v691
        %v1635 = vunpack.c.l.b16 %v692
        %v1636 = vunpack.c.h.b16 %v692
        %v1637 = vunpack.c.l.b16 %v693
        %v1638 = vunpack.c.h.b16 %v693
        %v1639 = vunpack.c.l.b16 %v694
        %v1640 = vunpack.c.h.b16 %v694
        %v1641 = vunpack.c.l.b16 %v695
        %v1642 = vunpack.c.h.b16 %v695
        %v1643 = vunpack.c.l.b16 %v696
        %v1644 = vunpack.c.h.b16 %v696
        %v1645 = vunpack.c.l.b16 %v697
        %v1646 = vunpack.c.h.b16 %v697
        %v1647 = vunpack.c.l.b16 %v698
        %v1648 = vunpack.c.h.b16 %v698
        %v1649 = vunpack.c.l.b16 %v699
        %v1650 = vunpack.c.h.b16 %v699
        %v1651 = vunpack.c.l.b16 %v700
        %v1652 = vunpack.c.h.b16 %v700
        %v1653 = vunpack.c.l.b16 %v701
        %v1654 = vunpack.c.h.b16 %v701
        %v1655 = vunpack.c.l.b16 %v702
        %v1656 = vunpack.c.h.b16 %v702
        %v1657 = vunpack.c.l.b16 %v703
        %v1658 = vunpack.c.h.b16 %v703
        %v1659 = vunpack.c.l.b16 %v704
        %v1660 = vunpack.c.h.b16 %v704
        %v1661 = vunpack.c.l.b16 %v705
        %v1662 = vunpack.c.h.b16 %v705
        %v1663 = vunpack.c.l.b16 %v706
        %v1664 = vunpack.c.h.b16 %v706
        %v1665 = vunpack.c.l.b16 %v707
        %v1666 = vunpack.c.h.b16 %v707
        %v1667 = vunpack.c.l.b16 %v708
        %v1668 = vunpack.c.h.b16 %v708
        %v1669 = vunpack.c.l.b16 %v709
        %v1670 = vunpack.c.h.b16 %v709
        %v1671 = vunpack.c.l.b16 %v710
        %v1672 = vunpack.c.h.b16 %v710
        %v1673 = vunpack.c.l.b16 %v711
        %v1674 = vunpack.c.h.b16 %v711
        %v1675 = vunpack.c.l.b16 %v712
        %v1676 = vunpack.c.h.b16 %v712
        %v1677 = vunpack.c.l.b16 %v713
        %v1678 = vunpack.c.h.b16 %v713
        %v1679 = vunpack.c.l.b16 %v714
        %v1680 = vunpack.c.h.b16 %v714
        %v1681 = vunpack.c.l.b16 %v715
        %v1682 = vunpack.c.h.b16 %v715
        %v1683 = vunpack.c.l.b16 %v716
        %v1684 = vunpack.c.h.b16 %v716
        %v1685 = vunpack.c.l.b16 %v717
        %v1686 = vunpack.c.h.b16 %v717
        %v1687 = vunpack.c.l.b16 %v718
        %v1688 = vunpack.c.h.b16 %v718
        %v1689 = vunpack.c.l.b16 %v719
        %v1690 = vunpack.c.h.b16 %v719
        %v1691 = vunpack.c.l.b16 %v720
        %v1692 = vunpack.c.h.b16 %v720
        %v1693 = vunpack.c.l.b16 %v721
        %v1694 = vunpack.c.h.b16 %v721
        %v1695 = vunpack.c.l.b16 %v722
        %v1696 = vunpack.c.h.b16 %v722
        %v1697 = vunpack.c.l.b16 %v723
        %v1698 = vunpack.c.h.b16 %v723
        %v1699 = vunpack.c.l.b16 %v724
        %v1700 = vunpack.c.h.b16 %v724
        %v1701 = vunpack.c.l.b16 %v725
        %v1702 = vunpack.c.h.b16 %v725
        %v1703 = vunpack.c.l.b16 %v726
        %v1704 = vunpack.c.h.b16 %v726
        %v1705 = vunpack.c.l.b16 %v727
        %v1706 = vunpack.c.h.b16 %v727
        %v1707 = vunpack.c.l.b16 %v728
        %v1708 = vunpack.c.h.b16 %v728
        %v1709 = vunpack.c.l.b16 %v729
        %v1710 = vunpack.c.h.b16 %v729
        %v1711 = vunpack.c.l.b16 %v730
        %v1712 = vunpack.c.h.b16 %v730
        %v1713 = vunpack.c.l.b16 %v731
        %v1714 = vunpack.c.h.b16 %v731
        %v1715 = vunpack.c.l.b16 %v732
        %v1716 = vunpack.c.h.b16 %v732
        %v1717 = vunpack.c.l.b16 %v733
        %v1718 = vunpack.c.h.b16 %v733
        %v1719 = vunpack.c.l.b16 %v734
        %v1720 = vunpack.c.h.b16 %v734
        %v1721 = vunpack.c.l.b16 %v735
        %v1722 = vunpack.c.h.b16 %v735
        %v1723 = vunpack.c.l.b16 %v736
        %v1724 = vunpack.c.h.b16 %v736
        %v1725 = vunpack.c.l.b16 %v737
        %v1726 = vunpack.c.h.b16 %v737
        %v1727 = vunpack.c.l.b16 %v738
        %v1728 = vunpack.c.h.b16 %v738
        %v1729 = vunpack.c.l.b16 %v739
        %v1730 = vunpack.c.h.b16 %v739
        %v1731 = vunpack.c.l.b16 %v740
        %v1732 = vunpack.c.h.b16 %v740
        %v1733 = vunpack.c.l.b16 %v741
        %v1734 = vunpack.c.h.b16 %v741
        %v1735 = vunpack.c.l.b16 %v742
        %v1736 = vunpack.c.h.b16 %v742
        %v1737 = vunpack.c.l.b16 %v743
        %v1738 = vunpack.c.h.b16 %v743
        %v1739 = vunpack.c.l.b16 %v744
        %v1740 = vunpack.c.h.b16 %v744
        %v1741 = vpack.c.b16 %v1617, %v1613
        %v1742 = vpack.c.b16 %v1618, %v1614
        %v1743 = vpack.c.b16 %v1619, %v1615
        %v1744 = vpack.c.b16 %v1620, %v1616
        %v1745 = vpack.c.b16 %v1625, %v1621
        %v1746 = vpack.c.b16 %v1626, %v1622
        %v1747 = vpack.c.b16 %v1627, %v1623
        %v1748 = vpack.c.b16 %v1628, %v1624
        %v1749 = vpack.c.b16 %v1633, %v1629
        %v1750 = vpack.c.b16 %v1634, %v1630
        %v1751 = vpack.c.b16 %v1635, %v1631
        %v1752 = vpack.c.b16 %v1636, %v1632
        %v1753 = vpack.c.b16 %v1641, %v1637
        %v1754 = vpack.c.b16 %v1642, %v1638
        %v1755 = vpack.c.b16 %v1643, %v1639
        %v1756 = vpack.c.b16 %v1644, %v1640
        %v1757 = vpack.c.b16 %v1649, %v1645
        %v1758 = vpack.c.b16 %v1650, %v1646
        %v1759 = vpack.c.b16 %v1651, %v1647
        %v1760 = vpack.c.b16 %v1652, %v1648
        %v1761 = vpack.c.b16 %v1657, %v1653
        %v1762 = vpack.c.b16 %v1658, %v1654
        %v1763 = vpack.c.b16 %v1659, %v1655
        %v1764 = vpack.c.b16 %v1660, %v1656
        %v1765 = vpack.c.b16 %v1665, %v1661
        %v1766 = vpack.c.b16 %v1666, %v1662
        %v1767 = vpack.c.b16 %v1667, %v1663
        %v1768 = vpack.c.b16 %v1668, %v1664
        %v1769 = vpack.c.b16 %v1673, %v1669
        %v1770 = vpack.c.b16 %v1674, %v1670
        %v1771 = vpack.c.b16 %v1675, %v1671
        %v1772 = vpack.c.b16 %v1676, %v1672
        %v1773 = vpack.c.b16 %v1681, %v1677
        %v1774 = vpack.c.b16 %v1682, %v1678
        %v1775 = vpack.c.b16 %v1683, %v1679
        %v1776 = vpack.c.b16 %v1684, %v1680
        %v1777 = vpack.c.b16 %v1689, %v1685
        %v1778 = vpack.c.b16 %v1690, %v1686
        %v1779 = vpack.c.b16 %v1691, %v1687
        %v1780 = vpack.c.b16 %v1692, %v1688
        %v1781 = vpack.c.b16 %v1697, %v1693
        %v1782 = vpack.c.b16 %v1698, %v1694
        %v1783 = vpack.c.b16 %v1699, %v1695
        %v1784 = vpack.c.b16 %v1700, %v1696
        %v1785 = vpack.c.b16 %v1705, %v1701
        %v1786 = vpack.c.b16 %v1706, %v1702
        %v1787 = vpack.c.b16 %v1707, %v1703
        %v1788 = vpack.c.b16 %v1708, %v1704
        %v1789 = vpack.c.b16 %v1713, %v1709
        %v1790 = vpack.c.b16 %v1714, %v1710
        %v1791 = vpack.c.b16 %v1715, %v1711
        %v1792 = vpack.c.b16 %v1716, %v1712
        %v1793 = vpack.c.b16 %v1721, %v1717
        %v1794 = vpack.c.b16 %v1722, %v1718
        %v1795 = vpack.c.b16 %v1723, %v1719
        %v1796 = vpack.c.b16 %v1724, %v1720
        %v1797 = vpack.c.b16 %v1729, %v1725
        %v1798 = vpack.c.b16 %v1730, %v1726
        %v1799 = vpack.c.b16 %v1731, %v1727
        %v1800 = vpack.c.b16 %v1732, %v1728
        %v1801 = vpack.c.b16 %v1737, %v1733
        %v1802 = vpack.c.b16 %v1738, %v1734
        %v1803 = vpack.c.b16 %v1739, %v1735
        %v1804 = vpack.c.b16 %v1740, %v1736
        %1869 = vmatpush.bf16.msra.mxu0 %v1769
        %1870 = vmatpush.bf16.msra.mxu0 %v1765
        %1871 = vmatpush.bf16.msra.mxu0 %v1761
        %1872 = vmatpush.bf16.msra.mxu0 %v1757
        %1873 = vmatpush.bf16.msra.mxu0 %v1753
        %1874 = vmatpush.bf16.msra.mxu0 %v1749
        %1875 = vmatpush.bf16.msra.mxu0 %v1745
        %1876 = vmatpush.bf16.msra.mxu0 %v1741
        %1877 = vmatmul.bf16.gmra.mxu0 %v1547
        %v1878 = vpop.f32.mrf.mxu0
        %v1879 = vadd.f32 0.0, %v1878
        %v1880 = vpop.f32.mrf.mxu0
        %v1881 = vadd.f32 0.0, %v1880
        %1882 = vdwg.mxu0
        %1883 = vmatpush.bf16.msra.mxu0 %v1801
        %1884 = vmatpush.bf16.msra.mxu0 %v1797
        %1885 = vmatpush.bf16.msra.mxu0 %v1793
        %1886 = vmatpush.bf16.msra.mxu0 %v1789
        %1887 = vmatpush.bf16.msra.mxu0 %v1785
        %1888 = vmatpush.bf16.msra.mxu0 %v1781
        %1889 = vmatpush.bf16.msra.mxu0 %v1777
        %1890 = vmatpush.bf16.msra.mxu0 %v1773
        %1891 = vmatmul.bf16.gmra.mxu0 %v1548
        %v1892 = vpop.f32.mrf.mxu0
        %v1893 = vadd.f32 %v1879, %v1892
        %v1894 = vpop.f32.mrf.mxu0
        %v1895 = vadd.f32 %v1881, %v1894
        %1896 = vdwg.mxu0
        %1897 = vmatpush.bf16.msra.mxu0 %v1770
        %1898 = vmatpush.bf16.msra.mxu0 %v1766
        %1899 = vmatpush.bf16.msra.mxu0 %v1762
        %1900 = vmatpush.bf16.msra.mxu0 %v1758
        %1901 = vmatpush.bf16.msra.mxu0 %v1754
        %1902 = vmatpush.bf16.msra.mxu0 %v1750
        %1903 = vmatpush.bf16.msra.mxu0 %v1746
        %1904 = vmatpush.bf16.msra.mxu0 %v1742
        %1905 = vmatmul.bf16.gmra.mxu0 %v1547
        %v1906 = vpop.f32.mrf.mxu0
        %v1907 = vadd.f32 0.0, %v1906
        %v1908 = vpop.f32.mrf.mxu0
        %v1909 = vadd.f32 0.0, %v1908
        %1910 = vdwg.mxu0
        %1911 = vmatpush.bf16.msra.mxu0 %v1802
        %1912 = vmatpush.bf16.msra.mxu0 %v1798
        %1913 = vmatpush.bf16.msra.mxu0 %v1794
        %1914 = vmatpush.bf16.msra.mxu0 %v1790
        %1915 = vmatpush.bf16.msra.mxu0 %v1786
        %1916 = vmatpush.bf16.msra.mxu0 %v1782
        %1917 = vmatpush.bf16.msra.mxu0 %v1778
        %1918 = vmatpush.bf16.msra.mxu0 %v1774
        %1919 = vmatmul.bf16.gmra.mxu0 %v1548
        %v1920 = vpop.f32.mrf.mxu0
        %v1921 = vadd.f32 %v1907, %v1920
        %v1922 = vpop.f32.mrf.mxu0
        %v1923 = vadd.f32 %v1909, %v1922
        %1924 = vdwg.mxu0
        %1925 = vmatpush.bf16.msra.mxu0 %v1771
        %1926 = vmatpush.bf16.msra.mxu0 %v1767
        %1927 = vmatpush.bf16.msra.mxu0 %v1763
        %1928 = vmatpush.bf16.msra.mxu0 %v1759
        %1929 = vmatpush.bf16.msra.mxu0 %v1755
        %1930 = vmatpush.bf16.msra.mxu0 %v1751
        %1931 = vmatpush.bf16.msra.mxu0 %v1747
        %1932 = vmatpush.bf16.msra.mxu0 %v1743
        %1933 = vmatmul.bf16.gmra.mxu0 %v1547
        %v1934 = vpop.f32.mrf.mxu0
        %v1935 = vadd.f32 0.0, %v1934
        %v1936 = vpop.f32.mrf.mxu0
        %v1937 = vadd.f32 0.0, %v1936
        %1938 = vdwg.mxu0
        %1939 = vmatpush.bf16.msra.mxu0 %v1803
        %1940 = vmatpush.bf16.msra.mxu0 %v1799
        %1941 = vmatpush.bf16.msra.mxu0 %v1795
        %1942 = vmatpush.bf16.msra.mxu0 %v1791
        %1943 = vmatpush.bf16.msra.mxu0 %v1787
        %1944 = vmatpush.bf16.msra.mxu0 %v1783
        %1945 = vmatpush.bf16.msra.mxu0 %v1779
        %1946 = vmatpush.bf16.msra.mxu0 %v1775
        %1947 = vmatmul.bf16.gmra.mxu0 %v1548
        %v1948 = vpop.f32.mrf.mxu0
        %v1949 = vadd.f32 %v1935, %v1948
        %v1950 = vpop.f32.mrf.mxu0
        %v1951 = vadd.f32 %v1937, %v1950
        %1952 = vdwg.mxu0
        %1953 = vmatpush.bf16.msra.mxu0 %v1772
        %1954 = vmatpush.bf16.msra.mxu0 %v1768
        %1955 = vmatpush.bf16.msra.mxu0 %v1764
        %1956 = vmatpush.bf16.msra.mxu0 %v1760
        %1957 = vmatpush.bf16.msra.mxu0 %v1756
        %1958 = vmatpush.bf16.msra.mxu0 %v1752
        %1959 = vmatpush.bf16.msra.mxu0 %v1748
        %1960 = vmatpush.bf16.msra.mxu0 %v1744
        %1961 = vmatmul.bf16.gmra.mxu0 %v1547
        %v1962 = vpop.f32.mrf.mxu0
        %v1963 = vadd.f32 0.0, %v1962
        %v1964 = vpop.f32.mrf.mxu0
        %v1965 = vadd.f32 0.0, %v1964
        %1966 = vdwg.mxu0
        %1967 = vmatpush.bf16.msra.mxu0 %v1804
        %1968 = vmatpush.bf16.msra.mxu0 %v1800
        %1969 = vmatpush.bf16.msra.mxu0 %v1796
        %1970 = vmatpush.bf16.msra.mxu0 %v1792
        %1971 = vmatpush.bf16.msra.mxu0 %v1788
        %1972 = vmatpush.bf16.msra.mxu0 %v1784
        %1973 = vmatpush.bf16.msra.mxu0 %v1780
        %1974 = vmatpush.bf16.msra.mxu0 %v1776
        %1975 = vmatmul.bf16.gmra.mxu0 %v1548
        %v1976 = vpop.f32.mrf.mxu0
        %v1977 = vadd.f32 %v1963, %v1976
        %v1978 = vpop.f32.mrf.mxu0
        %v1979 = vadd.f32 %v1965, %v1978
        %1980 = vdwg.mxu0
        %v1981 = vxor.u32 %v1893, 2147483648
        %v1982 = vxor.u32 %v1921, 2147483648
        %v1983 = vxor.u32 %v1949, 2147483648
        %v1984 = vxor.u32 %v1977, 2147483648
        %v1985 = vxor.u32 %v1895, 2147483648
        %v1986 = vxor.u32 %v1923, 2147483648
        %v1987 = vxor.u32 %v1951, 2147483648
        %v1988 = vxor.u32 %v1979, 2147483648
        %v1989 = vmul.f32 %v1981, 1.442695
        %v1990 = vpow.pop %v1989
        %v1991 = vmul.f32 %v1982, 1.442695
        %v1992 = vpow.pop %v1991
        %v1993 = vmul.f32 %v1983, 1.442695
        %v1994 = vpow.pop %v1993
        %v1995 = vmul.f32 %v1984, 1.442695
        %v1996 = vpow.pop %v1995
        %v1997 = vmul.f32 %v1985, 1.442695
        %v1998 = vpow.pop %v1997
        %v1999 = vmul.f32 %v1986, 1.442695
        %v2000 = vpow.pop %v1999
        %v2001 = vmul.f32 %v1987, 1.442695
        %v2002 = vpow.pop %v2001
        %v2003 = vmul.f32 %v1988, 1.442695
        %v2004 = vpow.pop %v2003
        %v2005 = vadd.f32 %v1990, 1.0
        %v2006 = vadd.f32 %v1992, 1.0
        %v2007 = vadd.f32 %v1994, 1.0
        %v2008 = vadd.f32 %v1996, 1.0
        %v2009 = vadd.f32 %v1998, 1.0
        %v2010 = vadd.f32 %v2000, 1.0
        %v2011 = vadd.f32 %v2002, 1.0
        %v2012 = vadd.f32 %v2004, 1.0
        %v2013 = vrcp.pop %v2005
        %v2014 = vmul.f32 %v2005, %v2013
        %v2015 = vsub.f32 1.0, %v2014
        %v2016 = vmul.f32 %v2013, %v2015
        %v2017 = vadd.f32 %v2013, %v2016
        %vm2018 = vweird.f32 %v2005
        %vm2019 = vweird.f32 %v2013
        %vm2020 = vmor %vm2018, %vm2019
        %v2021 = vsel %vm2020, %v2013, %v2017
        %v2022 = vand.u32 2147483647, %v2005
        %vm2023 = vcmp.eq.f32.partialorder %v2022, 8.507059e+37
        %v2024 = vand.u32 %v2005, 2147483648
        %v2025 = vor.u32 1.1754944e-38, %v2024
        %v2026 = vsel %vm2023, %v2025, %v2021
        %v2027 = vmul.f32 1.0, %v2026
        %v2028 = vrcp.pop %v2006
        %v2029 = vmul.f32 %v2006, %v2028
        %v2030 = vsub.f32 1.0, %v2029
        %v2031 = vmul.f32 %v2028, %v2030
        %v2032 = vadd.f32 %v2028, %v2031
        %vm2033 = vweird.f32 %v2006
        %vm2034 = vweird.f32 %v2028
        %vm2035 = vmor %vm2033, %vm2034
        %v2036 = vsel %vm2035, %v2028, %v2032
        %v2037 = vand.u32 2147483647, %v2006
        %vm2038 = vcmp.eq.f32.partialorder %v2037, 8.507059e+37
        %v2039 = vand.u32 %v2006, 2147483648
        %v2040 = vor.u32 1.1754944e-38, %v2039
        %v2041 = vsel %vm2038, %v2040, %v2036
        %v2042 = vmul.f32 1.0, %v2041
        %v2043 = vrcp.pop %v2007
        %v2044 = vmul.f32 %v2007, %v2043
        %v2045 = vsub.f32 1.0, %v2044
        %v2046 = vmul.f32 %v2043, %v2045
        %v2047 = vadd.f32 %v2043, %v2046
        %vm2048 = vweird.f32 %v2007
        %vm2049 = vweird.f32 %v2043
        %vm2050 = vmor %vm2048, %vm2049
        %v2051 = vsel %vm2050, %v2043, %v2047
        %v2052 = vand.u32 2147483647, %v2007
        %vm2053 = vcmp.eq.f32.partialorder %v2052, 8.507059e+37
        %v2054 = vand.u32 %v2007, 2147483648
        %v2055 = vor.u32 1.1754944e-38, %v2054
        %v2056 = vsel %vm2053, %v2055, %v2051
        %v2057 = vmul.f32 1.0, %v2056
        %v2058 = vrcp.pop %v2008
        %v2059 = vmul.f32 %v2008, %v2058
        %v2060 = vsub.f32 1.0, %v2059
        %v2061 = vmul.f32 %v2058, %v2060
        %v2062 = vadd.f32 %v2058, %v2061
        %vm2063 = vweird.f32 %v2008
        %vm2064 = vweird.f32 %v2058
        %vm2065 = vmor %vm2063, %vm2064
        %v2066 = vsel %vm2065, %v2058, %v2062
        %v2067 = vand.u32 2147483647, %v2008
        %vm2068 = vcmp.eq.f32.partialorder %v2067, 8.507059e+37
        %v2069 = vand.u32 %v2008, 2147483648
        %v2070 = vor.u32 1.1754944e-38, %v2069
        %v2071 = vsel %vm2068, %v2070, %v2066
        %v2072 = vmul.f32 1.0, %v2071
        %v2073 = vrcp.pop %v2009
        %v2074 = vmul.f32 %v2009, %v2073
        %v2075 = vsub.f32 1.0, %v2074
        %v2076 = vmul.f32 %v2073, %v2075
        %v2077 = vadd.f32 %v2073, %v2076
        %vm2078 = vweird.f32 %v2009
        %vm2079 = vweird.f32 %v2073
        %vm2080 = vmor %vm2078, %vm2079
        %v2081 = vsel %vm2080, %v2073, %v2077
        %v2082 = vand.u32 2147483647, %v2009
        %vm2083 = vcmp.eq.f32.partialorder %v2082, 8.507059e+37
        %v2084 = vand.u32 %v2009, 2147483648
        %v2085 = vor.u32 1.1754944e-38, %v2084
        %v2086 = vsel %vm2083, %v2085, %v2081
        %v2087 = vmul.f32 1.0, %v2086
        %v2088 = vrcp.pop %v2010
        %v2089 = vmul.f32 %v2010, %v2088
        %v2090 = vsub.f32 1.0, %v2089
        %v2091 = vmul.f32 %v2088, %v2090
        %v2092 = vadd.f32 %v2088, %v2091
        %vm2093 = vweird.f32 %v2010
        %vm2094 = vweird.f32 %v2088
        %vm2095 = vmor %vm2093, %vm2094
        %v2096 = vsel %vm2095, %v2088, %v2092
        %v2097 = vand.u32 2147483647, %v2010
        %vm2098 = vcmp.eq.f32.partialorder %v2097, 8.507059e+37
        %v2099 = vand.u32 %v2010, 2147483648
        %v2100 = vor.u32 1.1754944e-38, %v2099
        %v2101 = vsel %vm2098, %v2100, %v2096
        %v2102 = vmul.f32 1.0, %v2101
        %v2103 = vrcp.pop %v2011
        %v2104 = vmul.f32 %v2011, %v2103
        %v2105 = vsub.f32 1.0, %v2104
        %v2106 = vmul.f32 %v2103, %v2105
        %v2107 = vadd.f32 %v2103, %v2106
        %vm2108 = vweird.f32 %v2011
        %vm2109 = vweird.f32 %v2103
        %vm2110 = vmor %vm2108, %vm2109
        %v2111 = vsel %vm2110, %v2103, %v2107
        %v2112 = vand.u32 2147483647, %v2011
        %vm2113 = vcmp.eq.f32.partialorder %v2112, 8.507059e+37
        %v2114 = vand.u32 %v2011, 2147483648
        %v2115 = vor.u32 1.1754944e-38, %v2114
        %v2116 = vsel %vm2113, %v2115, %v2111
        %v2117 = vmul.f32 1.0, %v2116
        %v2118 = vrcp.pop %v2012
        %v2119 = vmul.f32 %v2012, %v2118
        %v2120 = vsub.f32 1.0, %v2119
        %v2121 = vmul.f32 %v2118, %v2120
        %v2122 = vadd.f32 %v2118, %v2121
        %vm2123 = vweird.f32 %v2012
        %vm2124 = vweird.f32 %v2118
        %vm2125 = vmor %vm2123, %vm2124
        %v2126 = vsel %vm2125, %v2118, %v2122
        %v2127 = vand.u32 2147483647, %v2012
        %vm2128 = vcmp.eq.f32.partialorder %v2127, 8.507059e+37
        %v2129 = vand.u32 %v2012, 2147483648
        %v2130 = vor.u32 1.1754944e-38, %v2129
        %v2131 = vsel %vm2128, %v2130, %v2126
        %v2132 = vmul.f32 1.0, %v2131
        %v2133 = vmul.f32 %v1893, %v2027
        %v2134 = vmul.f32 %v1921, %v2042
        %v2135 = vmul.f32 %v1949, %v2057
        %v2136 = vmul.f32 %v1977, %v2072
        %v2137 = vmul.f32 %v1895, %v2087
        %v2138 = vmul.f32 %v1923, %v2102
        %v2139 = vmul.f32 %v1951, %v2117
        %v2140 = vmul.f32 %v1979, %v2132
        %v2205 = vunpack.c.l.b16 %v745
        %v2206 = vunpack.c.h.b16 %v745
        %v2207 = vunpack.c.l.b16 %v746
        %v2208 = vunpack.c.h.b16 %v746
        %v2209 = vunpack.c.l.b16 %v747
        %v2210 = vunpack.c.h.b16 %v747
        %v2211 = vunpack.c.l.b16 %v748
        %v2212 = vunpack.c.h.b16 %v748
        %v2213 = vunpack.c.l.b16 %v749
        %v2214 = vunpack.c.h.b16 %v749
        %v2215 = vunpack.c.l.b16 %v750
        %v2216 = vunpack.c.h.b16 %v750
        %v2217 = vunpack.c.l.b16 %v751
        %v2218 = vunpack.c.h.b16 %v751
        %v2219 = vunpack.c.l.b16 %v752
        %v2220 = vunpack.c.h.b16 %v752
        %v2221 = vunpack.c.l.b16 %v753
        %v2222 = vunpack.c.h.b16 %v753
        %v2223 = vunpack.c.l.b16 %v754
        %v2224 = vunpack.c.h.b16 %v754
        %v2225 = vunpack.c.l.b16 %v755
        %v2226 = vunpack.c.h.b16 %v755
        %v2227 = vunpack.c.l.b16 %v756
        %v2228 = vunpack.c.h.b16 %v756
        %v2229 = vunpack.c.l.b16 %v757
        %v2230 = vunpack.c.h.b16 %v757
        %v2231 = vunpack.c.l.b16 %v758
        %v2232 = vunpack.c.h.b16 %v758
        %v2233 = vunpack.c.l.b16 %v759
        %v2234 = vunpack.c.h.b16 %v759
        %v2235 = vunpack.c.l.b16 %v760
        %v2236 = vunpack.c.h.b16 %v760
        %v2237 = vunpack.c.l.b16 %v761
        %v2238 = vunpack.c.h.b16 %v761
        %v2239 = vunpack.c.l.b16 %v762
        %v2240 = vunpack.c.h.b16 %v762
        %v2241 = vunpack.c.l.b16 %v763
        %v2242 = vunpack.c.h.b16 %v763
        %v2243 = vunpack.c.l.b16 %v764
        %v2244 = vunpack.c.h.b16 %v764
        %v2245 = vunpack.c.l.b16 %v765
        %v2246 = vunpack.c.h.b16 %v765
        %v2247 = vunpack.c.l.b16 %v766
        %v2248 = vunpack.c.h.b16 %v766
        %v2249 = vunpack.c.l.b16 %v767
        %v2250 = vunpack.c.h.b16 %v767
        %v2251 = vunpack.c.l.b16 %v768
        %v2252 = vunpack.c.h.b16 %v768
        %v2253 = vunpack.c.l.b16 %v769
        %v2254 = vunpack.c.h.b16 %v769
        %v2255 = vunpack.c.l.b16 %v770
        %v2256 = vunpack.c.h.b16 %v770
        %v2257 = vunpack.c.l.b16 %v771
        %v2258 = vunpack.c.h.b16 %v771
        %v2259 = vunpack.c.l.b16 %v772
        %v2260 = vunpack.c.h.b16 %v772
        %v2261 = vunpack.c.l.b16 %v773
        %v2262 = vunpack.c.h.b16 %v773
        %v2263 = vunpack.c.l.b16 %v774
        %v2264 = vunpack.c.h.b16 %v774
        %v2265 = vunpack.c.l.b16 %v775
        %v2266 = vunpack.c.h.b16 %v775
        %v2267 = vunpack.c.l.b16 %v776
        %v2268 = vunpack.c.h.b16 %v776
        %v2269 = vunpack.c.l.b16 %v777
        %v2270 = vunpack.c.h.b16 %v777
        %v2271 = vunpack.c.l.b16 %v778
        %v2272 = vunpack.c.h.b16 %v778
        %v2273 = vunpack.c.l.b16 %v779
        %v2274 = vunpack.c.h.b16 %v779
        %v2275 = vunpack.c.l.b16 %v780
        %v2276 = vunpack.c.h.b16 %v780
        %v2277 = vunpack.c.l.b16 %v781
        %v2278 = vunpack.c.h.b16 %v781
        %v2279 = vunpack.c.l.b16 %v782
        %v2280 = vunpack.c.h.b16 %v782
        %v2281 = vunpack.c.l.b16 %v783
        %v2282 = vunpack.c.h.b16 %v783
        %v2283 = vunpack.c.l.b16 %v784
        %v2284 = vunpack.c.h.b16 %v784
        %v2285 = vunpack.c.l.b16 %v785
        %v2286 = vunpack.c.h.b16 %v785
        %v2287 = vunpack.c.l.b16 %v786
        %v2288 = vunpack.c.h.b16 %v786
        %v2289 = vunpack.c.l.b16 %v787
        %v2290 = vunpack.c.h.b16 %v787
        %v2291 = vunpack.c.l.b16 %v788
        %v2292 = vunpack.c.h.b16 %v788
        %v2293 = vunpack.c.l.b16 %v789
        %v2294 = vunpack.c.h.b16 %v789
        %v2295 = vunpack.c.l.b16 %v790
        %v2296 = vunpack.c.h.b16 %v790
        %v2297 = vunpack.c.l.b16 %v791
        %v2298 = vunpack.c.h.b16 %v791
        %v2299 = vunpack.c.l.b16 %v792
        %v2300 = vunpack.c.h.b16 %v792
        %v2301 = vunpack.c.l.b16 %v793
        %v2302 = vunpack.c.h.b16 %v793
        %v2303 = vunpack.c.l.b16 %v794
        %v2304 = vunpack.c.h.b16 %v794
        %v2305 = vunpack.c.l.b16 %v795
        %v2306 = vunpack.c.h.b16 %v795
        %v2307 = vunpack.c.l.b16 %v796
        %v2308 = vunpack.c.h.b16 %v796
        %v2309 = vunpack.c.l.b16 %v797
        %v2310 = vunpack.c.h.b16 %v797
        %v2311 = vunpack.c.l.b16 %v798
        %v2312 = vunpack.c.h.b16 %v798
        %v2313 = vunpack.c.l.b16 %v799
        %v2314 = vunpack.c.h.b16 %v799
        %v2315 = vunpack.c.l.b16 %v800
        %v2316 = vunpack.c.h.b16 %v800
        %v2317 = vunpack.c.l.b16 %v801
        %v2318 = vunpack.c.h.b16 %v801
        %v2319 = vunpack.c.l.b16 %v802
        %v2320 = vunpack.c.h.b16 %v802
        %v2321 = vunpack.c.l.b16 %v803
        %v2322 = vunpack.c.h.b16 %v803
        %v2323 = vunpack.c.l.b16 %v804
        %v2324 = vunpack.c.h.b16 %v804
        %v2325 = vunpack.c.l.b16 %v805
        %v2326 = vunpack.c.h.b16 %v805
        %v2327 = vunpack.c.l.b16 %v806
        %v2328 = vunpack.c.h.b16 %v806
        %v2329 = vunpack.c.l.b16 %v807
        %v2330 = vunpack.c.h.b16 %v807
        %v2331 = vunpack.c.l.b16 %v808
        %v2332 = vunpack.c.h.b16 %v808
        %v2333 = vpack.c.b16 %v2209, %v2205
        %v2334 = vpack.c.b16 %v2210, %v2206
        %v2335 = vpack.c.b16 %v2211, %v2207
        %v2336 = vpack.c.b16 %v2212, %v2208
        %v2337 = vpack.c.b16 %v2217, %v2213
        %v2338 = vpack.c.b16 %v2218, %v2214
        %v2339 = vpack.c.b16 %v2219, %v2215
        %v2340 = vpack.c.b16 %v2220, %v2216
        %v2341 = vpack.c.b16 %v2225, %v2221
        %v2342 = vpack.c.b16 %v2226, %v2222
        %v2343 = vpack.c.b16 %v2227, %v2223
        %v2344 = vpack.c.b16 %v2228, %v2224
        %v2345 = vpack.c.b16 %v2233, %v2229
        %v2346 = vpack.c.b16 %v2234, %v2230
        %v2347 = vpack.c.b16 %v2235, %v2231
        %v2348 = vpack.c.b16 %v2236, %v2232
        %v2349 = vpack.c.b16 %v2241, %v2237
        %v2350 = vpack.c.b16 %v2242, %v2238
        %v2351 = vpack.c.b16 %v2243, %v2239
        %v2352 = vpack.c.b16 %v2244, %v2240
        %v2353 = vpack.c.b16 %v2249, %v2245
        %v2354 = vpack.c.b16 %v2250, %v2246
        %v2355 = vpack.c.b16 %v2251, %v2247
        %v2356 = vpack.c.b16 %v2252, %v2248
        %v2357 = vpack.c.b16 %v2257, %v2253
        %v2358 = vpack.c.b16 %v2258, %v2254
        %v2359 = vpack.c.b16 %v2259, %v2255
        %v2360 = vpack.c.b16 %v2260, %v2256
        %v2361 = vpack.c.b16 %v2265, %v2261
        %v2362 = vpack.c.b16 %v2266, %v2262
        %v2363 = vpack.c.b16 %v2267, %v2263
        %v2364 = vpack.c.b16 %v2268, %v2264
        %v2365 = vpack.c.b16 %v2273, %v2269
        %v2366 = vpack.c.b16 %v2274, %v2270
        %v2367 = vpack.c.b16 %v2275, %v2271
        %v2368 = vpack.c.b16 %v2276, %v2272
        %v2369 = vpack.c.b16 %v2281, %v2277
        %v2370 = vpack.c.b16 %v2282, %v2278
        %v2371 = vpack.c.b16 %v2283, %v2279
        %v2372 = vpack.c.b16 %v2284, %v2280
        %v2373 = vpack.c.b16 %v2289, %v2285
        %v2374 = vpack.c.b16 %v2290, %v2286
        %v2375 = vpack.c.b16 %v2291, %v2287
        %v2376 = vpack.c.b16 %v2292, %v2288
        %v2377 = vpack.c.b16 %v2297, %v2293
        %v2378 = vpack.c.b16 %v2298, %v2294
        %v2379 = vpack.c.b16 %v2299, %v2295
        %v2380 = vpack.c.b16 %v2300, %v2296
        %v2381 = vpack.c.b16 %v2305, %v2301
        %v2382 = vpack.c.b16 %v2306, %v2302
        %v2383 = vpack.c.b16 %v2307, %v2303
        %v2384 = vpack.c.b16 %v2308, %v2304
        %v2385 = vpack.c.b16 %v2313, %v2309
        %v2386 = vpack.c.b16 %v2314, %v2310
        %v2387 = vpack.c.b16 %v2315, %v2311
        %v2388 = vpack.c.b16 %v2316, %v2312
        %v2389 = vpack.c.b16 %v2321, %v2317
        %v2390 = vpack.c.b16 %v2322, %v2318
        %v2391 = vpack.c.b16 %v2323, %v2319
        %v2392 = vpack.c.b16 %v2324, %v2320
        %v2393 = vpack.c.b16 %v2329, %v2325
        %v2394 = vpack.c.b16 %v2330, %v2326
        %v2395 = vpack.c.b16 %v2331, %v2327
        %v2396 = vpack.c.b16 %v2332, %v2328
        %2461 = vmatpush.bf16.msra.mxu0 %v2361
        %2462 = vmatpush.bf16.msra.mxu0 %v2357
        %2463 = vmatpush.bf16.msra.mxu0 %v2353
        %2464 = vmatpush.bf16.msra.mxu0 %v2349
        %2465 = vmatpush.bf16.msra.mxu0 %v2345
        %2466 = vmatpush.bf16.msra.mxu0 %v2341
        %2467 = vmatpush.bf16.msra.mxu0 %v2337
        %2468 = vmatpush.bf16.msra.mxu0 %v2333
        %2469 = vmatmul.bf16.gmra.mxu0 %v1547
        %v2470 = vpop.f32.mrf.mxu0
        %v2471 = vadd.f32 0.0, %v2470
        %v2472 = vpop.f32.mrf.mxu0
        %v2473 = vadd.f32 0.0, %v2472
        %2474 = vdwg.mxu0
        %2475 = vmatpush.bf16.msra.mxu0 %v2393
        %2476 = vmatpush.bf16.msra.mxu0 %v2389
        %2477 = vmatpush.bf16.msra.mxu0 %v2385
        %2478 = vmatpush.bf16.msra.mxu0 %v2381
        %2479 = vmatpush.bf16.msra.mxu0 %v2377
        %2480 = vmatpush.bf16.msra.mxu0 %v2373
        %2481 = vmatpush.bf16.msra.mxu0 %v2369
        %2482 = vmatpush.bf16.msra.mxu0 %v2365
        %2483 = vmatmul.bf16.gmra.mxu0 %v1548
        %v2484 = vpop.f32.mrf.mxu0
        %v2485 = vadd.f32 %v2471, %v2484
        %v2486 = vpop.f32.mrf.mxu0
        %v2487 = vadd.f32 %v2473, %v2486
        %2488 = vdwg.mxu0
        %2489 = vmatpush.bf16.msra.mxu0 %v2362
        %2490 = vmatpush.bf16.msra.mxu0 %v2358
        %2491 = vmatpush.bf16.msra.mxu0 %v2354
        %2492 = vmatpush.bf16.msra.mxu0 %v2350
        %2493 = vmatpush.bf16.msra.mxu0 %v2346
        %2494 = vmatpush.bf16.msra.mxu0 %v2342
        %2495 = vmatpush.bf16.msra.mxu0 %v2338
        %2496 = vmatpush.bf16.msra.mxu0 %v2334
        %2497 = vmatmul.bf16.gmra.mxu0 %v1547
        %v2498 = vpop.f32.mrf.mxu0
        %v2499 = vadd.f32 0.0, %v2498
        %v2500 = vpop.f32.mrf.mxu0
        %v2501 = vadd.f32 0.0, %v2500
        %2502 = vdwg.mxu0
        %2503 = vmatpush.bf16.msra.mxu0 %v2394
        %2504 = vmatpush.bf16.msra.mxu0 %v2390
        %2505 = vmatpush.bf16.msra.mxu0 %v2386
        %2506 = vmatpush.bf16.msra.mxu0 %v2382
        %2507 = vmatpush.bf16.msra.mxu0 %v2378
        %2508 = vmatpush.bf16.msra.mxu0 %v2374
        %2509 = vmatpush.bf16.msra.mxu0 %v2370
        %2510 = vmatpush.bf16.msra.mxu0 %v2366
        %2511 = vmatmul.bf16.gmra.mxu0 %v1548
        %v2512 = vpop.f32.mrf.mxu0
        %v2513 = vadd.f32 %v2499, %v2512
        %v2514 = vpop.f32.mrf.mxu0
        %v2515 = vadd.f32 %v2501, %v2514
        %2516 = vdwg.mxu0
        %2517 = vmatpush.bf16.msra.mxu0 %v2363
        %2518 = vmatpush.bf16.msra.mxu0 %v2359
        %2519 = vmatpush.bf16.msra.mxu0 %v2355
        %2520 = vmatpush.bf16.msra.mxu0 %v2351
        %2521 = vmatpush.bf16.msra.mxu0 %v2347
        %2522 = vmatpush.bf16.msra.mxu0 %v2343
        %2523 = vmatpush.bf16.msra.mxu0 %v2339
        %2524 = vmatpush.bf16.msra.mxu0 %v2335
        %2525 = vmatmul.bf16.gmra.mxu0 %v1547
        %v2526 = vpop.f32.mrf.mxu0
        %v2527 = vadd.f32 0.0, %v2526
        %v2528 = vpop.f32.mrf.mxu0
        %v2529 = vadd.f32 0.0, %v2528
        %2530 = vdwg.mxu0
        %2531 = vmatpush.bf16.msra.mxu0 %v2395
        %2532 = vmatpush.bf16.msra.mxu0 %v2391
        %2533 = vmatpush.bf16.msra.mxu0 %v2387
        %2534 = vmatpush.bf16.msra.mxu0 %v2383
        %2535 = vmatpush.bf16.msra.mxu0 %v2379
        %2536 = vmatpush.bf16.msra.mxu0 %v2375
        %2537 = vmatpush.bf16.msra.mxu0 %v2371
        %2538 = vmatpush.bf16.msra.mxu0 %v2367
        %2539 = vmatmul.bf16.gmra.mxu0 %v1548
        %v2540 = vpop.f32.mrf.mxu0
        %v2541 = vadd.f32 %v2527, %v2540
        %v2542 = vpop.f32.mrf.mxu0
        %v2543 = vadd.f32 %v2529, %v2542
        %2544 = vdwg.mxu0
        %2545 = vmatpush.bf16.msra.mxu0 %v2364
        %2546 = vmatpush.bf16.msra.mxu0 %v2360
        %2547 = vmatpush.bf16.msra.mxu0 %v2356
        %2548 = vmatpush.bf16.msra.mxu0 %v2352
        %2549 = vmatpush.bf16.msra.mxu0 %v2348
        %2550 = vmatpush.bf16.msra.mxu0 %v2344
        %2551 = vmatpush.bf16.msra.mxu0 %v2340
        %2552 = vmatpush.bf16.msra.mxu0 %v2336
        %2553 = vmatmul.bf16.gmra.mxu0 %v1547
        %v2554 = vpop.f32.mrf.mxu0
        %v2555 = vadd.f32 0.0, %v2554
        %v2556 = vpop.f32.mrf.mxu0
        %v2557 = vadd.f32 0.0, %v2556
        %2558 = vdwg.mxu0
        %2559 = vmatpush.bf16.msra.mxu0 %v2396
        %2560 = vmatpush.bf16.msra.mxu0 %v2392
        %2561 = vmatpush.bf16.msra.mxu0 %v2388
        %2562 = vmatpush.bf16.msra.mxu0 %v2384
        %2563 = vmatpush.bf16.msra.mxu0 %v2380
        %2564 = vmatpush.bf16.msra.mxu0 %v2376
        %2565 = vmatpush.bf16.msra.mxu0 %v2372
        %2566 = vmatpush.bf16.msra.mxu0 %v2368
        %2567 = vmatmul.bf16.gmra.mxu0 %v1548
        %v2568 = vpop.f32.mrf.mxu0
        %v2569 = vadd.f32 %v2555, %v2568
        %v2570 = vpop.f32.mrf.mxu0
        %v2571 = vadd.f32 %v2557, %v2570
        %2572 = vdwg.mxu0
        %v2573 = vmul.f32 %v2133, %v2485
        %v2574 = vmul.f32 %v2134, %v2513
        %v2575 = vmul.f32 %v2135, %v2541
        %v2576 = vmul.f32 %v2136, %v2569
        %v2577 = vmul.f32 %v2137, %v2487
        %v2578 = vmul.f32 %v2138, %v2515
        %v2579 = vmul.f32 %v2139, %v2543
        %v2580 = vmul.f32 %v2140, %v2571
        %v2581 = vpack.c.bf16 %v2577, %v2573
        %v2582 = vpack.c.bf16 %v2578, %v2574
        %v2583 = vpack.c.bf16 %v2579, %v2575
        %v2584 = vpack.c.bf16 %v2580, %v2576
        %v2649 = vunpack.c.l.b16 %v809
        %v2650 = vunpack.c.h.b16 %v809
        %v2651 = vunpack.c.l.b16 %v810
        %v2652 = vunpack.c.h.b16 %v810
        %v2653 = vunpack.c.l.b16 %v811
        %v2654 = vunpack.c.h.b16 %v811
        %v2655 = vunpack.c.l.b16 %v812
        %v2656 = vunpack.c.h.b16 %v812
        %v2657 = vunpack.c.l.b16 %v813
        %v2658 = vunpack.c.h.b16 %v813
        %v2659 = vunpack.c.l.b16 %v814
        %v2660 = vunpack.c.h.b16 %v814
        %v2661 = vunpack.c.l.b16 %v815
        %v2662 = vunpack.c.h.b16 %v815
        %v2663 = vunpack.c.l.b16 %v816
        %v2664 = vunpack.c.h.b16 %v816
        %v2665 = vunpack.c.l.b16 %v817
        %v2666 = vunpack.c.h.b16 %v817
        %v2667 = vunpack.c.l.b16 %v818
        %v2668 = vunpack.c.h.b16 %v818
        %v2669 = vunpack.c.l.b16 %v819
        %v2670 = vunpack.c.h.b16 %v819
        %v2671 = vunpack.c.l.b16 %v820
        %v2672 = vunpack.c.h.b16 %v820
        %v2673 = vunpack.c.l.b16 %v821
        %v2674 = vunpack.c.h.b16 %v821
        %v2675 = vunpack.c.l.b16 %v822
        %v2676 = vunpack.c.h.b16 %v822
        %v2677 = vunpack.c.l.b16 %v823
        %v2678 = vunpack.c.h.b16 %v823
        %v2679 = vunpack.c.l.b16 %v824
        %v2680 = vunpack.c.h.b16 %v824
        %v2681 = vunpack.c.l.b16 %v825
        %v2682 = vunpack.c.h.b16 %v825
        %v2683 = vunpack.c.l.b16 %v826
        %v2684 = vunpack.c.h.b16 %v826
        %v2685 = vunpack.c.l.b16 %v827
        %v2686 = vunpack.c.h.b16 %v827
        %v2687 = vunpack.c.l.b16 %v828
        %v2688 = vunpack.c.h.b16 %v828
        %v2689 = vunpack.c.l.b16 %v829
        %v2690 = vunpack.c.h.b16 %v829
        %v2691 = vunpack.c.l.b16 %v830
        %v2692 = vunpack.c.h.b16 %v830
        %v2693 = vunpack.c.l.b16 %v831
        %v2694 = vunpack.c.h.b16 %v831
        %v2695 = vunpack.c.l.b16 %v832
        %v2696 = vunpack.c.h.b16 %v832
        %v2697 = vunpack.c.l.b16 %v833
        %v2698 = vunpack.c.h.b16 %v833
        %v2699 = vunpack.c.l.b16 %v834
        %v2700 = vunpack.c.h.b16 %v834
        %v2701 = vunpack.c.l.b16 %v835
        %v2702 = vunpack.c.h.b16 %v835
        %v2703 = vunpack.c.l.b16 %v836
        %v2704 = vunpack.c.h.b16 %v836
        %v2705 = vunpack.c.l.b16 %v837
        %v2706 = vunpack.c.h.b16 %v837
        %v2707 = vunpack.c.l.b16 %v838
        %v2708 = vunpack.c.h.b16 %v838
        %v2709 = vunpack.c.l.b16 %v839
        %v2710 = vunpack.c.h.b16 %v839
        %v2711 = vunpack.c.l.b16 %v840
        %v2712 = vunpack.c.h.b16 %v840
        %v2713 = vunpack.c.l.b16 %v841
        %v2714 = vunpack.c.h.b16 %v841
        %v2715 = vunpack.c.l.b16 %v842
        %v2716 = vunpack.c.h.b16 %v842
        %v2717 = vunpack.c.l.b16 %v843
        %v2718 = vunpack.c.h.b16 %v843
        %v2719 = vunpack.c.l.b16 %v844
        %v2720 = vunpack.c.h.b16 %v844
        %v2721 = vunpack.c.l.b16 %v845
        %v2722 = vunpack.c.h.b16 %v845
        %v2723 = vunpack.c.l.b16 %v846
        %v2724 = vunpack.c.h.b16 %v846
        %v2725 = vunpack.c.l.b16 %v847
        %v2726 = vunpack.c.h.b16 %v847
        %v2727 = vunpack.c.l.b16 %v848
        %v2728 = vunpack.c.h.b16 %v848
        %v2729 = vunpack.c.l.b16 %v849
        %v2730 = vunpack.c.h.b16 %v849
        %v2731 = vunpack.c.l.b16 %v850
        %v2732 = vunpack.c.h.b16 %v850
        %v2733 = vunpack.c.l.b16 %v851
        %v2734 = vunpack.c.h.b16 %v851
        %v2735 = vunpack.c.l.b16 %v852
        %v2736 = vunpack.c.h.b16 %v852
        %v2737 = vunpack.c.l.b16 %v853
        %v2738 = vunpack.c.h.b16 %v853
        %v2739 = vunpack.c.l.b16 %v854
        %v2740 = vunpack.c.h.b16 %v854
        %v2741 = vunpack.c.l.b16 %v855
        %v2742 = vunpack.c.h.b16 %v855
        %v2743 = vunpack.c.l.b16 %v856
        %v2744 = vunpack.c.h.b16 %v856
        %v2745 = vunpack.c.l.b16 %v857
        %v2746 = vunpack.c.h.b16 %v857
        %v2747 = vunpack.c.l.b16 %v858
        %v2748 = vunpack.c.h.b16 %v858
        %v2749 = vunpack.c.l.b16 %v859
        %v2750 = vunpack.c.h.b16 %v859
        %v2751 = vunpack.c.l.b16 %v860
        %v2752 = vunpack.c.h.b16 %v860
        %v2753 = vunpack.c.l.b16 %v861
        %v2754 = vunpack.c.h.b16 %v861
        %v2755 = vunpack.c.l.b16 %v862
        %v2756 = vunpack.c.h.b16 %v862
        %v2757 = vunpack.c.l.b16 %v863
        %v2758 = vunpack.c.h.b16 %v863
        %v2759 = vunpack.c.l.b16 %v864
        %v2760 = vunpack.c.h.b16 %v864
        %v2761 = vunpack.c.l.b16 %v865
        %v2762 = vunpack.c.h.b16 %v865
        %v2763 = vunpack.c.l.b16 %v866
        %v2764 = vunpack.c.h.b16 %v866
        %v2765 = vunpack.c.l.b16 %v867
        %v2766 = vunpack.c.h.b16 %v867
        %v2767 = vunpack.c.l.b16 %v868
        %v2768 = vunpack.c.h.b16 %v868
        %v2769 = vunpack.c.l.b16 %v869
        %v2770 = vunpack.c.h.b16 %v869
        %v2771 = vunpack.c.l.b16 %v870
        %v2772 = vunpack.c.h.b16 %v870
        %v2773 = vunpack.c.l.b16 %v871
        %v2774 = vunpack.c.h.b16 %v871
        %v2775 = vunpack.c.l.b16 %v872
        %v2776 = vunpack.c.h.b16 %v872
        %v2777 = vpack.c.b16 %v2651, %v2649
        %v2778 = vpack.c.b16 %v2652, %v2650
        %v2779 = vpack.c.b16 %v2655, %v2653
        %v2780 = vpack.c.b16 %v2656, %v2654
        %v2781 = vpack.c.b16 %v2659, %v2657
        %v2782 = vpack.c.b16 %v2660, %v2658
        %v2783 = vpack.c.b16 %v2663, %v2661
        %v2784 = vpack.c.b16 %v2664, %v2662
        %v2785 = vpack.c.b16 %v2667, %v2665
        %v2786 = vpack.c.b16 %v2668, %v2666
        %v2787 = vpack.c.b16 %v2671, %v2669
        %v2788 = vpack.c.b16 %v2672, %v2670
        %v2789 = vpack.c.b16 %v2675, %v2673
        %v2790 = vpack.c.b16 %v2676, %v2674
        %v2791 = vpack.c.b16 %v2679, %v2677
        %v2792 = vpack.c.b16 %v2680, %v2678
        %v2793 = vpack.c.b16 %v2683, %v2681
        %v2794 = vpack.c.b16 %v2684, %v2682
        %v2795 = vpack.c.b16 %v2687, %v2685
        %v2796 = vpack.c.b16 %v2688, %v2686
        %v2797 = vpack.c.b16 %v2691, %v2689
        %v2798 = vpack.c.b16 %v2692, %v2690
        %v2799 = vpack.c.b16 %v2695, %v2693
        %v2800 = vpack.c.b16 %v2696, %v2694
        %v2801 = vpack.c.b16 %v2699, %v2697
        %v2802 = vpack.c.b16 %v2700, %v2698
        %v2803 = vpack.c.b16 %v2703, %v2701
        %v2804 = vpack.c.b16 %v2704, %v2702
        %v2805 = vpack.c.b16 %v2707, %v2705
        %v2806 = vpack.c.b16 %v2708, %v2706
        %v2807 = vpack.c.b16 %v2711, %v2709
        %v2808 = vpack.c.b16 %v2712, %v2710
        %v2809 = vpack.c.b16 %v2715, %v2713
        %v2810 = vpack.c.b16 %v2716, %v2714
        %v2811 = vpack.c.b16 %v2719, %v2717
        %v2812 = vpack.c.b16 %v2720, %v2718
        %v2813 = vpack.c.b16 %v2723, %v2721
        %v2814 = vpack.c.b16 %v2724, %v2722
        %v2815 = vpack.c.b16 %v2727, %v2725
        %v2816 = vpack.c.b16 %v2728, %v2726
        %v2817 = vpack.c.b16 %v2731, %v2729
        %v2818 = vpack.c.b16 %v2732, %v2730
        %v2819 = vpack.c.b16 %v2735, %v2733
        %v2820 = vpack.c.b16 %v2736, %v2734
        %v2821 = vpack.c.b16 %v2739, %v2737
        %v2822 = vpack.c.b16 %v2740, %v2738
        %v2823 = vpack.c.b16 %v2743, %v2741
        %v2824 = vpack.c.b16 %v2744, %v2742
        %v2825 = vpack.c.b16 %v2747, %v2745
        %v2826 = vpack.c.b16 %v2748, %v2746
        %v2827 = vpack.c.b16 %v2751, %v2749
        %v2828 = vpack.c.b16 %v2752, %v2750
        %v2829 = vpack.c.b16 %v2755, %v2753
        %v2830 = vpack.c.b16 %v2756, %v2754
        %v2831 = vpack.c.b16 %v2759, %v2757
        %v2832 = vpack.c.b16 %v2760, %v2758
        %v2833 = vpack.c.b16 %v2763, %v2761
        %v2834 = vpack.c.b16 %v2764, %v2762
        %v2835 = vpack.c.b16 %v2767, %v2765
        %v2836 = vpack.c.b16 %v2768, %v2766
        %v2837 = vpack.c.b16 %v2771, %v2769
        %v2838 = vpack.c.b16 %v2772, %v2770
        %v2839 = vpack.c.b16 %v2775, %v2773
        %v2840 = vpack.c.b16 %v2776, %v2774
        %2905 = vmatpush.bf16.msra.mxu0 %v2791
        %2906 = vmatpush.bf16.msra.mxu0 %v2789
        %2907 = vmatpush.bf16.msra.mxu0 %v2787
        %2908 = vmatpush.bf16.msra.mxu0 %v2785
        %2909 = vmatpush.bf16.msra.mxu0 %v2783
        %2910 = vmatpush.bf16.msra.mxu0 %v2781
        %2911 = vmatpush.bf16.msra.mxu0 %v2779
        %2912 = vmatpush.bf16.msra.mxu0 %v2777
        %2913 = vmatmul.bf16.gmra.mxu0 %v2581
        %v2914 = vpop.f32.mrf.mxu0
        %v2915 = vadd.f32 0.0, %v2914
        %v2916 = vpop.f32.mrf.mxu0
        %v2917 = vadd.f32 0.0, %v2916
        %2918 = vdwg.mxu0
        %2919 = vmatpush.bf16.msra.mxu0 %v2807
        %2920 = vmatpush.bf16.msra.mxu0 %v2805
        %2921 = vmatpush.bf16.msra.mxu0 %v2803
        %2922 = vmatpush.bf16.msra.mxu0 %v2801
        %2923 = vmatpush.bf16.msra.mxu0 %v2799
        %2924 = vmatpush.bf16.msra.mxu0 %v2797
        %2925 = vmatpush.bf16.msra.mxu0 %v2795
        %2926 = vmatpush.bf16.msra.mxu0 %v2793
        %2927 = vmatmul.bf16.gmra.mxu0 %v2582
        %v2928 = vpop.f32.mrf.mxu0
        %v2929 = vadd.f32 %v2915, %v2928
        %v2930 = vpop.f32.mrf.mxu0
        %v2931 = vadd.f32 %v2917, %v2930
        %2932 = vdwg.mxu0
        %2933 = vmatpush.bf16.msra.mxu0 %v2823
        %2934 = vmatpush.bf16.msra.mxu0 %v2821
        %2935 = vmatpush.bf16.msra.mxu0 %v2819
        %2936 = vmatpush.bf16.msra.mxu0 %v2817
        %2937 = vmatpush.bf16.msra.mxu0 %v2815
        %2938 = vmatpush.bf16.msra.mxu0 %v2813
        %2939 = vmatpush.bf16.msra.mxu0 %v2811
        %2940 = vmatpush.bf16.msra.mxu0 %v2809
        %2941 = vmatmul.bf16.gmra.mxu0 %v2583
        %v2942 = vpop.f32.mrf.mxu0
        %v2943 = vadd.f32 %v2929, %v2942
        %v2944 = vpop.f32.mrf.mxu0
        %v2945 = vadd.f32 %v2931, %v2944
        %2946 = vdwg.mxu0
        %2947 = vmatpush.bf16.msra.mxu0 %v2839
        %2948 = vmatpush.bf16.msra.mxu0 %v2837
        %2949 = vmatpush.bf16.msra.mxu0 %v2835
        %2950 = vmatpush.bf16.msra.mxu0 %v2833
        %2951 = vmatpush.bf16.msra.mxu0 %v2831
        %2952 = vmatpush.bf16.msra.mxu0 %v2829
        %2953 = vmatpush.bf16.msra.mxu0 %v2827
        %2954 = vmatpush.bf16.msra.mxu0 %v2825
        %2955 = vmatmul.bf16.gmra.mxu0 %v2584
        %v2956 = vpop.f32.mrf.mxu0
        %v2957 = vadd.f32 %v2943, %v2956
        %v2958 = vpop.f32.mrf.mxu0
        %v2959 = vadd.f32 %v2945, %v2958
        %2960 = vdwg.mxu0
        %2961 = vmatpush.bf16.msra.mxu0 %v2792
        %2962 = vmatpush.bf16.msra.mxu0 %v2790
        %2963 = vmatpush.bf16.msra.mxu0 %v2788
        %2964 = vmatpush.bf16.msra.mxu0 %v2786
        %2965 = vmatpush.bf16.msra.mxu0 %v2784
        %2966 = vmatpush.bf16.msra.mxu0 %v2782
        %2967 = vmatpush.bf16.msra.mxu0 %v2780
        %2968 = vmatpush.bf16.msra.mxu0 %v2778
        %2969 = vmatmul.bf16.gmra.mxu0 %v2581
        %v2970 = vpop.f32.mrf.mxu0
        %v2971 = vadd.f32 0.0, %v2970
        %v2972 = vpop.f32.mrf.mxu0
        %v2973 = vadd.f32 0.0, %v2972
        %2974 = vdwg.mxu0
        %2975 = vmatpush.bf16.msra.mxu0 %v2808
        %2976 = vmatpush.bf16.msra.mxu0 %v2806
        %2977 = vmatpush.bf16.msra.mxu0 %v2804
        %2978 = vmatpush.bf16.msra.mxu0 %v2802
        %2979 = vmatpush.bf16.msra.mxu0 %v2800
        %2980 = vmatpush.bf16.msra.mxu0 %v2798
        %2981 = vmatpush.bf16.msra.mxu0 %v2796
        %2982 = vmatpush.bf16.msra.mxu0 %v2794
        %2983 = vmatmul.bf16.gmra.mxu0 %v2582
        %v2984 = vpop.f32.mrf.mxu0
        %v2985 = vadd.f32 %v2971, %v2984
        %v2986 = vpop.f32.mrf.mxu0
        %v2987 = vadd.f32 %v2973, %v2986
        %2988 = vdwg.mxu0
        %2989 = vmatpush.bf16.msra.mxu0 %v2824
        %2990 = vmatpush.bf16.msra.mxu0 %v2822
        %2991 = vmatpush.bf16.msra.mxu0 %v2820
        %2992 = vmatpush.bf16.msra.mxu0 %v2818
        %2993 = vmatpush.bf16.msra.mxu0 %v2816
        %2994 = vmatpush.bf16.msra.mxu0 %v2814
        %2995 = vmatpush.bf16.msra.mxu0 %v2812
        %2996 = vmatpush.bf16.msra.mxu0 %v2810
        %2997 = vmatmul.bf16.gmra.mxu0 %v2583
        %v2998 = vpop.f32.mrf.mxu0
        %v2999 = vadd.f32 %v2985, %v2998
        %v3000 = vpop.f32.mrf.mxu0
        %v3001 = vadd.f32 %v2987, %v3000
        %3002 = vdwg.mxu0
        %3003 = vmatpush.bf16.msra.mxu0 %v2840
        %3004 = vmatpush.bf16.msra.mxu0 %v2838
        %3005 = vmatpush.bf16.msra.mxu0 %v2836
        %3006 = vmatpush.bf16.msra.mxu0 %v2834
        %3007 = vmatpush.bf16.msra.mxu0 %v2832
        %3008 = vmatpush.bf16.msra.mxu0 %v2830
        %3009 = vmatpush.bf16.msra.mxu0 %v2828
        %3010 = vmatpush.bf16.msra.mxu0 %v2826
        %3011 = vmatmul.bf16.gmra.mxu0 %v2584
        %v3012 = vpop.f32.mrf.mxu0
        %v3013 = vadd.f32 %v2999, %v3012
        %v3014 = vpop.f32.mrf.mxu0
        %v3015 = vadd.f32 %v3001, %v3014
        %3016 = vdwg.mxu0
        %v3017 = vadd.f32 %v1496, %v2957
        %v3018 = vadd.f32 %v1497, %v3013
        %v3019 = vadd.f32 %v1498, %v2959
        %v3020 = vadd.f32 %v1499, %v3015
        %3021 = vst [vmem:[%s11] sm:$0xff] %v3017
        %3022 = vst [vmem:[%s11 + $0x8] sm:$0xff] %v3018
        %3023 = vst [vmem:[%s11 + $0x10] sm:$0xff] %v3019
        %3024 = vst [vmem:[%s11 + $0x18] sm:$0xff] %v3020
        // Predicated region
        $region89: #{llama_forward.2} parent=63 // pred_check
          %p3025 = pneg %p310
        $region90: #{llama_forward.2} parent=63 // pred_check_branch
          %3027 = sbr.rel (%p3025) target = $region92
        $region91: #{llama_forward.2} parent=63 // pred_region
          _
        $region92: #{llama_forward.2} parent=63 // pred_fallthru
          _
        // Predicated region
        $region93: #{llama_forward.2} parent=63 // pred_check
          %p3028 = pneg %p310
        $region94: #{llama_forward.2} parent=63 // pred_check_branch
          %3030 = sbr.rel (%p3028) target = $region96
        $region95: #{llama_forward.2} parent=63 // pred_region
          _
        $region96: #{llama_forward.2} parent=63 // pred_fallthru
          _
      $region64: #{llama_forward.2} parent=5 // pred_fallthru
        _
      %p3031 = scmp.le.s32.totalorder 2, %s26
      // Predicated region
      $region97: #{llama_forward.2} parent=5 // pred_check
        %p3032 = pneg %p3031
      $region98: #{llama_forward.2} parent=5 // pred_check_branch
        %3034 = sbr.rel (%p3032) target = $region100
      $region99: #{llama_forward.2} parent=5 // pred_region
        %s3035 = ssub.s32 %s26, 2
      $region100: #{llama_forward.2} parent=5 // pred_fallthru
        _
    $region6: #{llama_forward.2} parent=1 // loop_footer
      %s30 = sadd.s32 1, %s26
    $region7: #{llama_forward.2} parent=1 // loop_footer_branch
      %25 = sbr.rel target = $region3
    $region8: #{llama_forward.2} parent=1 // loop_exit
      _
    %3036 = vsyncpa [#allocation3], 1
    %s3037 = scalar_lea.sflag [#allocation3], 1
    %3038 = vsyncpa %s3037, 1
    %3039 = vsyncpa [#allocation5], 1
    %s3040 = scalar_lea.sflag [#allocation5], 1
    %3041 = vsyncpa %s3040, 1
    %3042 = vsyncpa [#allocation8], 1
    %s3043 = scalar_lea.sflag [#allocation8], 1
    %3044 = vsyncpa %s3043, 1

</llo_original>
